<compile_context>
chip_gen: v6e
topology: v6e:2x2x1
jax: 0.10.0
libtpu: 0.0.40
codegen_flags: <defaults>
</compile_context>

<pallas_src>
import functools

import jax
import jax.numpy as jnp
import numpy as np
from jax.experimental import pallas as pl
from jax.experimental.pallas import tpu as pltpu

_F32 = jnp.float32
_BF16 = jnp.bfloat16


def _fse_kernel_mode1(x_ref, a1_ref, a2_ref, ez_ref, w1_ref, w2_ref, em_ref,
                      o_ref):
    """mode 1: x = x * z_gate; the conv branch pools the gated x; out = x * m_gate."""
    xv = x_ref[...]
    x = xv.astype(_F32)          # elementwise path in f32
    xb = xv.astype(_BF16)        # MXU operands in bf16

    # fc branch: mean over (c, W) folded into fc1 (a1), then fc2 (a2), then
    # broadcast back over (c, W) via the 0/1 expansion ez.
    h1 = jnp.maximum(jnp.dot(xb, a1_ref[...], preferred_element_type=_F32), 0.0)
    gate = jax.nn.sigmoid(
        jnp.dot(h1.astype(_BF16), a2_ref[...], preferred_element_type=_F32))
    gate_full = jnp.dot(gate.astype(_BF16), ez_ref[...],
                        preferred_element_type=_F32)
    x_mid = x * gate_full        # x = x * z

    # conv branch: mean over H folded into the first 1x1 conv (w1), second 1x1
    # conv (w2), broadcast back over H via the 0/1 expansion em.
    m1 = jnp.maximum(
        jnp.dot(x_mid.astype(_BF16), w1_ref[...], preferred_element_type=_F32),
        0.0)
    m2 = jax.nn.sigmoid(
        jnp.dot(m1.astype(_BF16), w2_ref[...], preferred_element_type=_F32))
    m_full = jnp.dot(m2.astype(_BF16), em_ref[...], preferred_element_type=_F32)

    o_ref[...] = (x_mid * m_full).astype(o_ref.dtype)


def _fse_kernel_mode2(x_ref, p1_ref, bd_ref, ez_ref, em_ref, o_ref, *, h_split):
    """mode 2: z = x * z_gate; out = x * m_gate * z (both branches pool x)."""
    xv = x_ref[...]
    x = xv.astype(_F32)
    xb = xv.astype(_BF16)

    # Fused pooling (fc + conv share the single K=CHW pass of x) and fused
    # block-diagonal second-stage matmul.
    p = jnp.maximum(jnp.dot(xb, p1_ref[...], preferred_element_type=_F32), 0.0)
    q = jax.nn.sigmoid(
        jnp.dot(p.astype(_BF16), bd_ref[...], preferred_element_type=_F32))
    gate = q[:, :h_split]        # (TB, H)
    m2 = q[:, h_split:]          # (TB, c*W)

    gate_full = jnp.dot(gate.astype(_BF16), ez_ref[...],
                        preferred_element_type=_F32)
    m_full = jnp.dot(m2.astype(_BF16), em_ref[...], preferred_element_type=_F32)

    o_ref[...] = ((x * gate_full) * (x * m_full)).astype(o_ref.dtype)


def _fse_kernel_mode3(x_ref, p1_ref, bd_ref, exp_ref, o_ref):
    """mode 3: out = x*m_gate + x*z_gate = x * (m_gate + z_gate)."""
    xv = x_ref[...]
    x = xv.astype(_F32)
    xb = xv.astype(_BF16)

    p = jnp.maximum(jnp.dot(xb, p1_ref[...], preferred_element_type=_F32), 0.0)
    q = jax.nn.sigmoid(
        jnp.dot(p.astype(_BF16), bd_ref[...], preferred_element_type=_F32))
    # Single fused expansion: [gate | m2] @ vstack([ez, em]) = gate_full + m_full.
    comb = jnp.dot(q.astype(_BF16), exp_ref[...], preferred_element_type=_F32)

    o_ref[...] = (x * comb).astype(o_ref.dtype)


def _build_constants(c, H, W, fc1, fc2, cv1, cv2):
    """Fold pooling + Linear / 1x1 Conv1d weights into flat-layout matrices."""
    HW = H * W
    CHW = c * HW
    c_r = cv1.shape[0]

    # Flat index decomposition: idx = ci*H*W + h*W + w.
    idx = jnp.arange(CHW)
    ci_of = idx // HW
    h_of = (idx % HW) // W
    w_of = idx % W

    # fc branch: fold the 1/(c*W) mean over (c, W) into fc1.
    a1 = jnp.take(fc1.T, h_of, axis=0) / float(c * W)             # (CHW, h_r)
    a2 = fc2.T                                                     # (h_r, H)
    ez = (h_of[None, :] == jnp.arange(H)[:, None]).astype(_F32)    # (H, CHW) 0/1

    # conv branch: fold the 1/H mean over H into the first 1x1 conv.
    eye_w = jnp.eye(W, dtype=_F32)
    w1 = (jnp.take(cv1.T, ci_of, axis=0)[:, :, None] *
          eye_w[w_of][:, None, :]).reshape(CHW, c_r * W) / float(H)  # (CHW, c_r*W)
    w2 = jnp.kron(cv2.T, eye_w)                                    # (c_r*W, c*W)
    jcw = jnp.arange(c * W)
    em = ((jcw[:, None] // W == ci_of[None, :]) &
          (jcw[:, None] % W == w_of[None, :])).astype(_F32)        # (c*W, CHW) 0/1
    return a1, a2, ez, w1, w2, em


def fse_layer2(x, fc1_w, fc2_w, cv1_w, cv2_w, *, mode=1, block_b=None):
    b, c, H, W = x.shape
    CHW = c * H * W
    h_r = fc1_w.shape[0]
    c_r = cv1_w.shape[0]
    assert fc1_w.shape == (h_r, H) and fc2_w.shape == (H, h_r)
    assert cv1_w.shape == (c_r, c) and cv2_w.shape == (c, c_r)

    fc1 = fc1_w.astype(_F32)
    fc2 = fc2_w.astype(_F32)
    cv1 = cv1_w.astype(_F32)
    cv2 = cv2_w.astype(_F32)

    a1, a2, ez, w1, w2, em = _build_constants(c, H, W, fc1, fc2, cv1, cv2)

    if mode == 1:
        # Mode 1 cannot fuse the pooling dots (conv branch pools x * z_gate).
        weights = (a1, a2, ez, w1, w2, em)
        kernel = _fse_kernel_mode1
    else:
        # Modes 2/3: both branches pool the original x -> fuse the pooling
        # matmuls (p1) and the tiny second-stage matmuls (block-diagonal bd).
        p1 = jnp.concatenate([a1, w1], axis=1)                     # (CHW, h_r+c_r*W)
        bd = jnp.zeros((h_r + c_r * W, H + c * W), _F32)
        bd = bd.at[:h_r, :H].set(a2)
        bd = bd.at[h_r:, H:].set(w2)
        if mode == 2:
            weights = (p1, bd, ez, em)
            kernel = functools.partial(_fse_kernel_mode2, h_split=H)
        else:
            exp_mat = jnp.concatenate([ez, em], axis=0)            # (H+c*W, CHW)
            weights = (p1, bd, exp_mat)
            kernel = _fse_kernel_mode3

    # bf16 matmul operands: ez/em are 0/1 (exact in bf16); the folded weight
    # matrices tolerate bf16 rounding.  Also halves the weight DMA/VMEM.
    weights = tuple(wm.astype(_BF16) for wm in weights)

    x_flat = x.reshape(b, CHW)   # free reshape of the contiguous NCHW tensor

    # Batch tile: ~2 MiB of payload per grid step (amortizes the ~0.35 us/step
    # pipeline overhead, leaves room for the full-width f32 intermediates in
    # v7x's 64 MiB VMEM), capped so there are >= 2 grid steps whenever b can
    # be split into multiple-of-8 row blocks (v7x has two TensorCores).
    if block_b is None:
        bytes_per_image = CHW * x.dtype.itemsize
        block_b = max(8, ((2 * 1024 * 1024) // max(bytes_per_image, 1)) // 8 * 8)
        half_b = -(-b // 2)              # ceil(b / 2)
        half_b = -(-half_b // 8) * 8     # round up to a multiple of 8
        if 8 <= half_b < b:
            block_b = min(block_b, half_b)
    if block_b >= b:
        block_b = b
    grid = (pl.cdiv(b, block_b),)

    in_specs = [pl.BlockSpec((block_b, CHW), lambda i: (i, 0))]
    # Constant index_maps: the weight matrices are DMA'd once.
    in_specs += [pl.BlockSpec(wm.shape, lambda i: (0, 0)) for wm in weights]

    out_flat = pl.pallas_call(
        kernel,
        out_shape=jax.ShapeDtypeStruct((b, CHW), x.dtype),
        grid_spec=pltpu.PrefetchScalarGridSpec(
            num_scalar_prefetch=0,
            grid=grid,
            in_specs=in_specs,
            out_specs=pl.BlockSpec((block_b, CHW), lambda i: (i, 0)),
        ),
        compiler_params=pltpu.CompilerParams(
            dimension_semantics=("parallel",),
            # Explicit limit: overrides v5e's 16 MiB default, stays well under
            # v7x's 64 MiB physical VMEM.
            vmem_limit_bytes=48 * 1024 * 1024,
        ),
    )(x_flat, *weights)

    return out_flat.reshape(b, c, H, W)


def fse_layer2_ref(x, fc1_w, fc2_w, cv1_w, cv2_w, mode=1):
    """Pure-JAX f32 reference mirroring the PyTorch forward."""
    b, c, H, W = x.shape
    z = jnp.mean(x, axis=(1, 3))                                   # (b, H)
    z = jnp.maximum(z @ fc1_w.T, 0.0)
    z = jax.nn.sigmoid(z @ fc2_w.T)                                # (b, H)
    z = z.reshape(b, 1, H, 1)
    if mode == 1:
        x = x * z
    else:
        z = x * z
    m = jnp.mean(x, axis=2)                                        # (b, c, W)
    m = jnp.maximum(jnp.einsum("oc,bcw->bow", cv1_w, m), 0.0)
    m = jax.nn.sigmoid(jnp.einsum("co,bow->bcw", cv2_w, m))
    m = m.reshape(b, c, 1, W)
    if mode == 1:
        x = x * m
    elif mode == 2:
        x = x * m * z
    else:
        x = x * m + z
    return x


if __name__ == "__main__":
    # H must be 42: the module's fc branch is nn.Linear(42, 42 // reduction).
    b, c, H, W = 2, 4, 42, 16
    reduction = 4

    key = jax.random.PRNGKey(0)
    kx, k1, k2, k3, k4 = jax.random.split(key, 5)

    x = jax.random.normal(kx, (b, c, H, W), dtype=jnp.float32)
    fc1_w = 0.3 * jax.random.normal(k1, (42 // reduction, 42), dtype=jnp.float32)
    fc2_w = 0.3 * jax.random.normal(k2, (42, 42 // reduction), dtype=jnp.float32)
    cv1_w = 0.3 * jax.random.normal(k3, (c // reduction, c), dtype=jnp.float32)
    cv2_w = 0.3 * jax.random.normal(k4, (c, c // reduction), dtype=jnp.float32)

    for mode in (1, 2, 3):
        out = jax.block_until_ready(
            fse_layer2(x, fc1_w, fc2_w, cv1_w, cv2_w, mode=mode))
        ref = jax.block_until_ready(
            fse_layer2_ref(x, fc1_w, fc2_w, cv1_w, cv2_w, mode=mode))
        # bf16 matmul operands with f32 accumulation vs. a pure-f32 reference:
        # use a bf16-appropriate tolerance.
        np.testing.assert_allclose(np.asarray(out), np.asarray(ref),
                                   rtol=2e-2, atol=2e-2)
    print("KERNEL_OK")
</pallas_src>

<mosaic_0001>
module attributes {stable_mosaic.version = 11 : i64} {
  func.func @_fse_kernel_mode1(%arg0: i32, %arg1: memref<2x2688xf32, #tpu.memory_space<vmem>>, %arg2: memref<2688x10xbf16, #tpu.memory_space<vmem>>, %arg3: memref<10x42xbf16, #tpu.memory_space<vmem>>, %arg4: memref<42x2688xbf16, #tpu.memory_space<vmem>>, %arg5: memref<2688x16xbf16, #tpu.memory_space<vmem>>, %arg6: memref<16x64xbf16, #tpu.memory_space<vmem>>, %arg7: memref<64x2688xbf16, #tpu.memory_space<vmem>>, %arg8: memref<2x2688xf32, #tpu.memory_space<vmem>>) attributes {dimension_semantics = [#tpu.dimension_semantics<parallel>], iteration_bounds = array<i64: 1>, scalar_prefetch = 0 : i64, scratch_operands = 0 : i64, tpu.core_type = #tpu.core_type<tc>, window_params = [{transform_indices = @transform_0, window_bounds = array<i64: 2, 2688>}, {pipeline_mode = #tpu.pipeline_mode<synchronous>, transform_indices = @transform_1, window_bounds = array<i64: 2688, 10>}, {pipeline_mode = #tpu.pipeline_mode<synchronous>, transform_indices = @transform_2, window_bounds = array<i64: 10, 42>}, {pipeline_mode = #tpu.pipeline_mode<synchronous>, transform_indices = @transform_3, window_bounds = array<i64: 42, 2688>}, {pipeline_mode = #tpu.pipeline_mode<synchronous>, transform_indices = @transform_4, window_bounds = array<i64: 2688, 16>}, {pipeline_mode = #tpu.pipeline_mode<synchronous>, transform_indices = @transform_5, window_bounds = array<i64: 16, 64>}, {pipeline_mode = #tpu.pipeline_mode<synchronous>, transform_indices = @transform_6, window_bounds = array<i64: 64, 2688>}, {transform_indices = @transform_7, window_bounds = array<i64: 2, 2688>}]} {
    %c0 = arith.constant 0 : index
    %c0_0 = arith.constant 0 : index
    %0 = vector.load %arg1[%c0, %c0_0] : memref<2x2688xf32, #tpu.memory_space<vmem>>, vector<2x2688xf32>
    %1 = arith.truncf %0 : vector<2x2688xf32> to vector<2x2688xbf16>
    %c0_1 = arith.constant 0 : index
    %c0_2 = arith.constant 0 : index
    %2 = vector.load %arg2[%c0_1, %c0_2] : memref<2688x10xbf16, #tpu.memory_space<vmem>>, vector<2688x10xbf16>
    %cst = arith.constant dense<0.000000e+00> : vector<2x10xf32>
    %3 = tpu.matmul %1, %2, %cst {dimension_numbers = #tpu.dot_dimension_numbers<[1], [0], [0], [1], [0, 0, 1, 1], [], []>} : vector<2x2688xbf16>, vector<2688x10xbf16>, vector<2x10xf32> -> vector<2x10xf32>
    %cst_3 = arith.constant 0.000000e+00 : f32
    %4 = vector.broadcast %cst_3 : f32 to vector<2x10xf32>
    %5 = arith.maximumf %3, %4 : vector<2x10xf32>
    %6 = arith.truncf %5 : vector<2x10xf32> to vector<2x10xbf16>
    %c0_4 = arith.constant 0 : index
    %c0_5 = arith.constant 0 : index
    %7 = vector.load %arg3[%c0_4, %c0_5] : memref<10x42xbf16, #tpu.memory_space<vmem>>, vector<10x42xbf16>
    %cst_6 = arith.constant dense<0.000000e+00> : vector<2x42xf32>
    %8 = tpu.matmul %6, %7, %cst_6 {dimension_numbers = #tpu.dot_dimension_numbers<[1], [0], [0], [1], [0, 0, 1, 1], [], []>} : vector<2x10xbf16>, vector<10x42xbf16>, vector<2x42xf32> -> vector<2x42xf32>
    %9 = arith.negf %8 : vector<2x42xf32>
    %10 = math.exp %9 : vector<2x42xf32>
    %cst_7 = arith.constant 1.000000e+00 : f32
    %11 = vector.broadcast %cst_7 : f32 to vector<2x42xf32>
    %12 = arith.addf %11, %10 : vector<2x42xf32>
    %13 = arith.divf %11, %12 : vector<2x42xf32>
    %14 = arith.truncf %13 : vector<2x42xf32> to vector<2x42xbf16>
    %c0_8 = arith.constant 0 : index
    %c0_9 = arith.constant 0 : index
    %15 = vector.load %arg4[%c0_8, %c0_9] : memref<42x2688xbf16, #tpu.memory_space<vmem>>, vector<42x2688xbf16>
    %cst_10 = arith.constant dense<0.000000e+00> : vector<2x2688xf32>
    %16 = tpu.matmul %14, %15, %cst_10 {dimension_numbers = #tpu.dot_dimension_numbers<[1], [0], [0], [1], [0, 0, 1, 1], [], []>} : vector<2x42xbf16>, vector<42x2688xbf16>, vector<2x2688xf32> -> vector<2x2688xf32>
    %17 = arith.mulf %0, %16 : vector<2x2688xf32>
    %18 = arith.truncf %17 : vector<2x2688xf32> to vector<2x2688xbf16>
    %c0_11 = arith.constant 0 : index
    %c0_12 = arith.constant 0 : index
    %19 = vector.load %arg5[%c0_11, %c0_12] : memref<2688x16xbf16, #tpu.memory_space<vmem>>, vector<2688x16xbf16>
    %cst_13 = arith.constant dense<0.000000e+00> : vector<2x16xf32>
    %20 = tpu.matmul %18, %19, %cst_13 {dimension_numbers = #tpu.dot_dimension_numbers<[1], [0], [0], [1], [0, 0, 1, 1], [], []>} : vector<2x2688xbf16>, vector<2688x16xbf16>, vector<2x16xf32> -> vector<2x16xf32>
    %cst_14 = arith.constant 0.000000e+00 : f32
    %21 = vector.broadcast %cst_14 : f32 to vector<2x16xf32>
    %22 = arith.maximumf %20, %21 : vector<2x16xf32>
    %23 = arith.truncf %22 : vector<2x16xf32> to vector<2x16xbf16>
    %c0_15 = arith.constant 0 : index
    %c0_16 = arith.constant 0 : index
    %24 = vector.load %arg6[%c0_15, %c0_16] : memref<16x64xbf16, #tpu.memory_space<vmem>>, vector<16x64xbf16>
    %cst_17 = arith.constant dense<0.000000e+00> : vector<2x64xf32>
    %25 = tpu.matmul %23, %24, %cst_17 {dimension_numbers = #tpu.dot_dimension_numbers<[1], [0], [0], [1], [0, 0, 1, 1], [], []>} : vector<2x16xbf16>, vector<16x64xbf16>, vector<2x64xf32> -> vector<2x64xf32>
    %26 = arith.negf %25 : vector<2x64xf32>
    %27 = math.exp %26 : vector<2x64xf32>
    %cst_18 = arith.constant 1.000000e+00 : f32
    %28 = vector.broadcast %cst_18 : f32 to vector<2x64xf32>
    %29 = arith.addf %28, %27 : vector<2x64xf32>
    %30 = arith.divf %28, %29 : vector<2x64xf32>
    %31 = arith.truncf %30 : vector<2x64xf32> to vector<2x64xbf16>
    %c0_19 = arith.constant 0 : index
    %c0_20 = arith.constant 0 : index
    %32 = vector.load %arg7[%c0_19, %c0_20] : memref<64x2688xbf16, #tpu.memory_space<vmem>>, vector<64x2688xbf16>
    %cst_21 = arith.constant dense<0.000000e+00> : vector<2x2688xf32>
    %33 = tpu.matmul %31, %32, %cst_21 {dimension_numbers = #tpu.dot_dimension_numbers<[1], [0], [0], [1], [0, 0, 1, 1], [], []>} : vector<2x64xbf16>, vector<64x2688xbf16>, vector<2x2688xf32> -> vector<2x2688xf32>
    %34 = arith.mulf %17, %33 : vector<2x2688xf32>
    %c0_22 = arith.constant 0 : index
    %c0_23 = arith.constant 0 : index
    %35 = vector.load %arg8[%c0_22, %c0_23] : memref<2x2688xf32, #tpu.memory_space<vmem>>, vector<2x2688xf32>
    tpu.vector_store %arg8[%c0_22, %c0_23], %34 {strides = array<i32>} : memref<2x2688xf32, #tpu.memory_space<vmem>>, vector<2x2688xf32>,
    return
  }
  func.func @transform_0(%arg0: i32) -> (i32, i32) {
    %c0_i32 = arith.constant 0 : i32
    %c0_i32_0 = arith.constant 0 : i32
    return %arg0, %c0_i32 : i32, i32
  }
  func.func @transform_1(%arg0: i32) -> (i32, i32) {
    %c0_i32 = arith.constant 0 : i32
    %c0_i32_0 = arith.constant 0 : i32
    %c0_i32_1 = arith.constant 0 : i32
    return %c0_i32, %c0_i32_0 : i32, i32
  }
  func.func @transform_2(%arg0: i32) -> (i32, i32) {
    %c0_i32 = arith.constant 0 : i32
    %c0_i32_0 = arith.constant 0 : i32
    %c0_i32_1 = arith.constant 0 : i32
    return %c0_i32, %c0_i32_0 : i32, i32
  }
  func.func @transform_3(%arg0: i32) -> (i32, i32) {
    %c0_i32 = arith.constant 0 : i32
    %c0_i32_0 = arith.constant 0 : i32
    %c0_i32_1 = arith.constant 0 : i32
    return %c0_i32, %c0_i32_0 : i32, i32
  }
  func.func @transform_4(%arg0: i32) -> (i32, i32) {
    %c0_i32 = arith.constant 0 : i32
    %c0_i32_0 = arith.constant 0 : i32
    %c0_i32_1 = arith.constant 0 : i32
    return %c0_i32, %c0_i32_0 : i32, i32
  }
  func.func @transform_5(%arg0: i32) -> (i32, i32) {
    %c0_i32 = arith.constant 0 : i32
    %c0_i32_0 = arith.constant 0 : i32
    %c0_i32_1 = arith.constant 0 : i32
    return %c0_i32, %c0_i32_0 : i32, i32
  }
  func.func @transform_6(%arg0: i32) -> (i32, i32) {
    %c0_i32 = arith.constant 0 : i32
    %c0_i32_0 = arith.constant 0 : i32
    %c0_i32_1 = arith.constant 0 : i32
    return %c0_i32, %c0_i32_0 : i32, i32
  }
  func.func @transform_7(%arg0: i32) -> (i32, i32) {
    %c0_i32 = arith.constant 0 : i32
    %c0_i32_0 = arith.constant 0 : i32
    return %arg0, %c0_i32 : i32, i32
  }
}

</mosaic_0001>

<llo_original>
// kernel: tpu_custom_call.1
$region0: #{tpu_custom_call.1}
  #allocation0 [shape = 'u32[]', space=smem, size = 0x4, offset = 0x4, fixed_abs, tag = 'smem constant byte address 0x4 - core index']
  #allocation1 [shape = 'u32[144,128]{1,0:T(1,128)}', space=vmem, size = 0x12000, scoped, tag = 'internal scratch']
  %s0 = inlined_call_operand.vmem [shape: f32[2,2688], index: 0, kind: input, shape index: {}]
  %s1 = inlined_call_operand.vmem [shape: bf16[2688,10], index: 1, kind: input, shape index: {}]
  %s2 = inlined_call_operand.vmem [shape: bf16[10,42], index: 2, kind: input, shape index: {}]
  %s3 = inlined_call_operand.vmem [shape: bf16[42,2688], index: 3, kind: input, shape index: {}]
  %s4 = inlined_call_operand.vmem [shape: bf16[2688,16], index: 4, kind: input, shape index: {}]
  %s5 = inlined_call_operand.vmem [shape: bf16[16,64], index: 5, kind: input, shape index: {}]
  %s6 = inlined_call_operand.vmem [shape: bf16[64,2688], index: 6, kind: input, shape index: {}]
  %s7 = inlined_call_operand.hbm [shape: f32[2,2688], index: 7, kind: output, shape index: {}]
  %s8 = sld [smem:[#allocation0]]
  $region38: #{tpu_custom_call.1} parent=0
    _
  %s10 = ssub.s32 1, %s8
  %s11 = scalar_select 0, %s10, %s8
  $region1: #{tpu_custom_call.1} parent=0
    #allocation2 [shape = 'u8[21504]{0}', space=vmem, size = 0x5400, scoped, tag = 'output window, operand 0, single buffered']
    #allocation3 [shape = 's32[1]{0}', space=sflag, size = 0x4, scoped, tag = 'scoped memory for tpu_custom_call.1']
    %12 = vsyncpa [#allocation3], 0
    // Predicated region
    $region2: #{tpu_custom_call.1} parent=1 // pred_check
      _
    $region3: #{tpu_custom_call.1} parent=1 // pred_check_branch
      %14 = sbr.rel (0) target = $region5
    $region4: #{tpu_custom_call.1} parent=1 // pred_region
      _
    $region5: #{tpu_custom_call.1} parent=1 // pred_fallthru
      _
    // Predicated region
    $region6: #{tpu_custom_call.1} parent=1 // pred_check
      _
    $region7: #{tpu_custom_call.1} parent=1 // pred_check_branch
      %16 = sbr.rel (0) target = $region9
    $region8: #{tpu_custom_call.1} parent=1 // pred_region
      _
    $region9: #{tpu_custom_call.1} parent=1 // pred_fallthru
      _
    // Predicated region
    $region10: #{tpu_custom_call.1} parent=1 // pred_check
      _
    $region11: #{tpu_custom_call.1} parent=1 // pred_check_branch
      %18 = sbr.rel (0) target = $region13
    $region12: #{tpu_custom_call.1} parent=1 // pred_region
      _
    $region13: #{tpu_custom_call.1} parent=1 // pred_fallthru
      _
    // Predicated region
    $region14: #{tpu_custom_call.1} parent=1 // pred_check
      _
    $region15: #{tpu_custom_call.1} parent=1 // pred_check_branch
      %20 = sbr.rel (0) target = $region17
    $region16: #{tpu_custom_call.1} parent=1 // pred_region
      _
    $region17: #{tpu_custom_call.1} parent=1 // pred_fallthru
      _
    // Predicated region
    $region18: #{tpu_custom_call.1} parent=1 // pred_check
      _
    $region19: #{tpu_custom_call.1} parent=1 // pred_check_branch
      %22 = sbr.rel (0) target = $region21
    $region20: #{tpu_custom_call.1} parent=1 // pred_region
      _
    $region21: #{tpu_custom_call.1} parent=1 // pred_fallthru
      _
    // Predicated region
    $region22: #{tpu_custom_call.1} parent=1 // pred_check
      _
    $region23: #{tpu_custom_call.1} parent=1 // pred_check_branch
      %24 = sbr.rel (0) target = $region25
    $region24: #{tpu_custom_call.1} parent=1 // pred_region
      _
    $region25: #{tpu_custom_call.1} parent=1 // pred_fallthru
      _
    // Predicated region
    $region26: #{tpu_custom_call.1} parent=1 // pred_check
      _
    $region27: #{tpu_custom_call.1} parent=1 // pred_check_branch
      %26 = sbr.rel (0) target = $region29
    $region28: #{tpu_custom_call.1} parent=1 // pred_region
      _
    $region29: #{tpu_custom_call.1} parent=1 // pred_fallthru
      _
    %v28 = vld [vmem:[%s0] sm:$0xff]
    %v29 = vld [vmem:[%s0 + $0x8] sm:$0xff]
    %v30 = vld [vmem:[%s0 + $0x10] sm:$0xff]
    %v31 = vld [vmem:[%s0 + $0x18] sm:$0xff]
    %v32 = vld [vmem:[%s0 + $0x20] sm:$0xff]
    %v33 = vld [vmem:[%s0 + $0x28] sm:$0x3]
    %v40 = vcombine.high %v28, %v28
    %v42 = vunpack.c.l.s4 1983009808
    %v43 = vunpack.c.0.s8 %v42
    %v44 = vlaneseq
    %v45 = vshrl.u32 %v44, 7
    %v46 = vsub.s32 %v43, %v45
    %v47 = vrot.slane %v28, %v46
    %v49 = vunpack.c.l.s4 1983009808
    %v50 = vunpack.c.0.s8 %v49
    %v51 = vlaneseq
    %v52 = vshrl.u32 %v51, 7
    %v53 = vsub.s32 %v50, %v52
    %v54 = vrot.slane %v40, %v53
    %v55 = vcombine.high %v47, %v47
    %v56 = vcombine.high %v54, %v54
    %v57 = vcombine.high %v29, %v29
    %v59 = vunpack.c.l.s4 1983009808
    %v60 = vunpack.c.0.s8 %v59
    %v61 = vlaneseq
    %v62 = vshrl.u32 %v61, 7
    %v63 = vsub.s32 %v60, %v62
    %v64 = vrot.slane %v29, %v63
    %v66 = vunpack.c.l.s4 1983009808
    %v67 = vunpack.c.0.s8 %v66
    %v68 = vlaneseq
    %v69 = vshrl.u32 %v68, 7
    %v70 = vsub.s32 %v67, %v69
    %v71 = vrot.slane %v57, %v70
    %v72 = vcombine.high %v64, %v64
    %v73 = vcombine.high %v71, %v71
    %v74 = vcombine.high %v30, %v30
    %v76 = vunpack.c.l.s4 1983009808
    %v77 = vunpack.c.0.s8 %v76
    %v78 = vlaneseq
    %v79 = vshrl.u32 %v78, 7
    %v80 = vsub.s32 %v77, %v79
    %v81 = vrot.slane %v30, %v80
    %v83 = vunpack.c.l.s4 1983009808
    %v84 = vunpack.c.0.s8 %v83
    %v85 = vlaneseq
    %v86 = vshrl.u32 %v85, 7
    %v87 = vsub.s32 %v84, %v86
    %v88 = vrot.slane %v74, %v87
    %v89 = vcombine.high %v81, %v81
    %v90 = vcombine.high %v88, %v88
    %v91 = vcombine.high %v31, %v31
    %v93 = vunpack.c.l.s4 1983009808
    %v94 = vunpack.c.0.s8 %v93
    %v95 = vlaneseq
    %v96 = vshrl.u32 %v95, 7
    %v97 = vsub.s32 %v94, %v96
    %v98 = vrot.slane %v31, %v97
    %v100 = vunpack.c.l.s4 1983009808
    %v101 = vunpack.c.0.s8 %v100
    %v102 = vlaneseq
    %v103 = vshrl.u32 %v102, 7
    %v104 = vsub.s32 %v101, %v103
    %v105 = vrot.slane %v91, %v104
    %v106 = vcombine.high %v98, %v98
    %v107 = vcombine.high %v105, %v105
    %v108 = vcombine.high %v32, %v32
    %v110 = vunpack.c.l.s4 1983009808
    %v111 = vunpack.c.0.s8 %v110
    %v112 = vlaneseq
    %v113 = vshrl.u32 %v112, 7
    %v114 = vsub.s32 %v111, %v113
    %v115 = vrot.slane %v32, %v114
    %v117 = vunpack.c.l.s4 1983009808
    %v118 = vunpack.c.0.s8 %v117
    %v119 = vlaneseq
    %v120 = vshrl.u32 %v119, 7
    %v121 = vsub.s32 %v118, %v120
    %v122 = vrot.slane %v108, %v121
    %v123 = vcombine.high %v115, %v115
    %v124 = vcombine.high %v122, %v122
    %v126 = vunpack.c.l.s4 1983009808
    %v127 = vunpack.c.0.s8 %v126
    %v128 = vlaneseq
    %v129 = vshrl.u32 %v128, 7
    %v130 = vsub.s32 %v127, %v129
    %v131 = vrot.slane %v33, %v130
    %v153 = vpack.c.bf16 %v47, %v47
    %v154 = vpack.c.bf16 %v55, %v55
    %v155 = vpack.c.bf16 %v54, %v54
    %v156 = vpack.c.bf16 %v56, %v56
    %v157 = vpack.c.bf16 %v64, %v64
    %v158 = vpack.c.bf16 %v72, %v72
    %v159 = vpack.c.bf16 %v71, %v71
    %v160 = vpack.c.bf16 %v73, %v73
    %v161 = vpack.c.bf16 %v81, %v81
    %v162 = vpack.c.bf16 %v89, %v89
    %v163 = vpack.c.bf16 %v88, %v88
    %v164 = vpack.c.bf16 %v90, %v90
    %v165 = vpack.c.bf16 %v98, %v98
    %v166 = vpack.c.bf16 %v106, %v106
    %v167 = vpack.c.bf16 %v105, %v105
    %v168 = vpack.c.bf16 %v107, %v107
    %v169 = vpack.c.bf16 %v115, %v115
    %v170 = vpack.c.bf16 %v123, %v123
    %v171 = vpack.c.bf16 %v122, %v122
    %v172 = vpack.c.bf16 %v124, %v124
    %v173 = vpack.c.bf16 %v131, %v131
    %v174 = vld [vmem:[%s1] sm:$0xf]
    %v175 = vld [vmem:[%s1 + $0x4] sm:$0xf]
    %v176 = vld [vmem:[%s1 + $0x8] sm:$0xf]
    %v177 = vld [vmem:[%s1 + $0xc] sm:$0xf]
    %v178 = vld [vmem:[%s1 + $0x10] sm:$0xf]
    %v179 = vld [vmem:[%s1 + $0x14] sm:$0xf]
    %v180 = vld [vmem:[%s1 + $0x18] sm:$0xf]
    %v181 = vld [vmem:[%s1 + $0x1c] sm:$0xf]
    %v182 = vld [vmem:[%s1 + $0x20] sm:$0xf]
    %v183 = vld [vmem:[%s1 + $0x24] sm:$0xf]
    %v184 = vld [vmem:[%s1 + $0x28] sm:$0xf]
    %v185 = vld [vmem:[%s1 + $0x2c] sm:$0xf]
    %v186 = vld [vmem:[%s1 + $0x30] sm:$0xf]
    %v187 = vld [vmem:[%s1 + $0x34] sm:$0xf]
    %v188 = vld [vmem:[%s1 + $0x38] sm:$0xf]
    %v189 = vld [vmem:[%s1 + $0x3c] sm:$0xf]
    %v190 = vld [vmem:[%s1 + $0x40] sm:$0xf]
    %v191 = vld [vmem:[%s1 + $0x44] sm:$0xf]
    %v192 = vld [vmem:[%s1 + $0x48] sm:$0xf]
    %v193 = vld [vmem:[%s1 + $0x4c] sm:$0xf]
    %v194 = vld [vmem:[%s1 + $0x50] sm:$0xf]
    %v195 = vld [vmem:[%s1 + $0x54] sm:$0xf]
    %v196 = vld [vmem:[%s1 + $0x58] sm:$0xf]
    %v197 = vld [vmem:[%s1 + $0x5c] sm:$0xf]
    %v198 = vld [vmem:[%s1 + $0x60] sm:$0xf]
    %v199 = vld [vmem:[%s1 + $0x64] sm:$0xf]
    %v200 = vld [vmem:[%s1 + $0x68] sm:$0xf]
    %v201 = vld [vmem:[%s1 + $0x6c] sm:$0xf]
    %v202 = vld [vmem:[%s1 + $0x70] sm:$0xf]
    %v203 = vld [vmem:[%s1 + $0x74] sm:$0xf]
    %v204 = vld [vmem:[%s1 + $0x78] sm:$0xf]
    %v205 = vld [vmem:[%s1 + $0x7c] sm:$0xf]
    %v206 = vld [vmem:[%s1 + $0x80] sm:$0xf]
    %v207 = vld [vmem:[%s1 + $0x84] sm:$0xf]
    %v208 = vld [vmem:[%s1 + $0x88] sm:$0xf]
    %v209 = vld [vmem:[%s1 + $0x8c] sm:$0xf]
    %v210 = vld [vmem:[%s1 + $0x90] sm:$0xf]
    %v211 = vld [vmem:[%s1 + $0x94] sm:$0xf]
    %v212 = vld [vmem:[%s1 + $0x98] sm:$0xf]
    %v213 = vld [vmem:[%s1 + $0x9c] sm:$0xf]
    %v214 = vld [vmem:[%s1 + $0xa0] sm:$0xf]
    %v215 = vld [vmem:[%s1 + $0xa4] sm:$0xf]
    %v216 = vld [vmem:[%s1 + $0xa8] sm:$0xf]
    %v217 = vld [vmem:[%s1 + $0xac] sm:$0xf]
    %v218 = vld [vmem:[%s1 + $0xb0] sm:$0xf]
    %v219 = vld [vmem:[%s1 + $0xb4] sm:$0xf]
    %v220 = vld [vmem:[%s1 + $0xb8] sm:$0xf]
    %v221 = vld [vmem:[%s1 + $0xbc] sm:$0xf]
    %v222 = vld [vmem:[%s1 + $0xc0] sm:$0xf]
    %v223 = vld [vmem:[%s1 + $0xc4] sm:$0xf]
    %v224 = vld [vmem:[%s1 + $0xc8] sm:$0xf]
    %v225 = vld [vmem:[%s1 + $0xcc] sm:$0xf]
    %v226 = vld [vmem:[%s1 + $0xd0] sm:$0xf]
    %v227 = vld [vmem:[%s1 + $0xd4] sm:$0xf]
    %v228 = vld [vmem:[%s1 + $0xd8] sm:$0xf]
    %v229 = vld [vmem:[%s1 + $0xdc] sm:$0xf]
    %v230 = vld [vmem:[%s1 + $0xe0] sm:$0xf]
    %v231 = vld [vmem:[%s1 + $0xe4] sm:$0xf]
    %v232 = vld [vmem:[%s1 + $0xe8] sm:$0xf]
    %v233 = vld [vmem:[%s1 + $0xec] sm:$0xf]
    %v234 = vld [vmem:[%s1 + $0xf0] sm:$0xf]
    %v235 = vld [vmem:[%s1 + $0xf4] sm:$0xf]
    %v236 = vld [vmem:[%s1 + $0xf8] sm:$0xf]
    %v237 = vld [vmem:[%s1 + $0xfc] sm:$0xf]
    %v238 = vld [vmem:[%s1 + $0x100] sm:$0xf]
    %v239 = vld [vmem:[%s1 + $0x104] sm:$0xf]
    %v240 = vld [vmem:[%s1 + $0x108] sm:$0xf]
    %v241 = vld [vmem:[%s1 + $0x10c] sm:$0xf]
    %v242 = vld [vmem:[%s1 + $0x110] sm:$0xf]
    %v243 = vld [vmem:[%s1 + $0x114] sm:$0xf]
    %v244 = vld [vmem:[%s1 + $0x118] sm:$0xf]
    %v245 = vld [vmem:[%s1 + $0x11c] sm:$0xf]
    %v246 = vld [vmem:[%s1 + $0x120] sm:$0xf]
    %v247 = vld [vmem:[%s1 + $0x124] sm:$0xf]
    %v248 = vld [vmem:[%s1 + $0x128] sm:$0xf]
    %v249 = vld [vmem:[%s1 + $0x12c] sm:$0xf]
    %v250 = vld [vmem:[%s1 + $0x130] sm:$0xf]
    %v251 = vld [vmem:[%s1 + $0x134] sm:$0xf]
    %v252 = vld [vmem:[%s1 + $0x138] sm:$0xf]
    %v253 = vld [vmem:[%s1 + $0x13c] sm:$0xf]
    %v254 = vld [vmem:[%s1 + $0x140] sm:$0xf]
    %v255 = vld [vmem:[%s1 + $0x144] sm:$0xf]
    %v256 = vld [vmem:[%s1 + $0x148] sm:$0xf]
    %v257 = vld [vmem:[%s1 + $0x14c] sm:$0xf]
    %v258 = vld [vmem:[%s1 + $0x150] sm:$0xf]
    %v259 = vld [vmem:[%s1 + $0x154] sm:$0xf]
    %v260 = vld [vmem:[%s1 + $0x158] sm:$0xf]
    %v261 = vld [vmem:[%s1 + $0x15c] sm:$0xf]
    %v262 = vld [vmem:[%s1 + $0x160] sm:$0xf]
    %v263 = vld [vmem:[%s1 + $0x164] sm:$0xf]
    %v264 = vld [vmem:[%s1 + $0x168] sm:$0xf]
    %v265 = vld [vmem:[%s1 + $0x16c] sm:$0xf]
    %v266 = vld [vmem:[%s1 + $0x170] sm:$0xf]
    %v267 = vld [vmem:[%s1 + $0x174] sm:$0xf]
    %v268 = vld [vmem:[%s1 + $0x178] sm:$0xf]
    %v269 = vld [vmem:[%s1 + $0x17c] sm:$0xf]
    %v270 = vld [vmem:[%s1 + $0x180] sm:$0xf]
    %v271 = vld [vmem:[%s1 + $0x184] sm:$0xf]
    %v272 = vld [vmem:[%s1 + $0x188] sm:$0xf]
    %v273 = vld [vmem:[%s1 + $0x18c] sm:$0xf]
    %v274 = vld [vmem:[%s1 + $0x190] sm:$0xf]
    %v275 = vld [vmem:[%s1 + $0x194] sm:$0xf]
    %v276 = vld [vmem:[%s1 + $0x198] sm:$0xf]
    %v277 = vld [vmem:[%s1 + $0x19c] sm:$0xf]
    %v278 = vld [vmem:[%s1 + $0x1a0] sm:$0xf]
    %v279 = vld [vmem:[%s1 + $0x1a4] sm:$0xf]
    %v280 = vld [vmem:[%s1 + $0x1a8] sm:$0xf]
    %v281 = vld [vmem:[%s1 + $0x1ac] sm:$0xf]
    %v282 = vld [vmem:[%s1 + $0x1b0] sm:$0xf]
    %v283 = vld [vmem:[%s1 + $0x1b4] sm:$0xf]
    %v284 = vld [vmem:[%s1 + $0x1b8] sm:$0xf]
    %v285 = vld [vmem:[%s1 + $0x1bc] sm:$0xf]
    %v286 = vld [vmem:[%s1 + $0x1c0] sm:$0xf]
    %v287 = vld [vmem:[%s1 + $0x1c4] sm:$0xf]
    %v288 = vld [vmem:[%s1 + $0x1c8] sm:$0xf]
    %v289 = vld [vmem:[%s1 + $0x1cc] sm:$0xf]
    %v290 = vld [vmem:[%s1 + $0x1d0] sm:$0xf]
    %v291 = vld [vmem:[%s1 + $0x1d4] sm:$0xf]
    %v292 = vld [vmem:[%s1 + $0x1d8] sm:$0xf]
    %v293 = vld [vmem:[%s1 + $0x1dc] sm:$0xf]
    %v294 = vld [vmem:[%s1 + $0x1e0] sm:$0xf]
    %v295 = vld [vmem:[%s1 + $0x1e4] sm:$0xf]
    %v296 = vld [vmem:[%s1 + $0x1e8] sm:$0xf]
    %v297 = vld [vmem:[%s1 + $0x1ec] sm:$0xf]
    %v298 = vld [vmem:[%s1 + $0x1f0] sm:$0xf]
    %v299 = vld [vmem:[%s1 + $0x1f4] sm:$0xf]
    %v300 = vld [vmem:[%s1 + $0x1f8] sm:$0xf]
    %v301 = vld [vmem:[%s1 + $0x1fc] sm:$0xf]
    %v302 = vld [vmem:[%s1 + $0x200] sm:$0xf]
    %v303 = vld [vmem:[%s1 + $0x204] sm:$0xf]
    %v304 = vld [vmem:[%s1 + $0x208] sm:$0xf]
    %v305 = vld [vmem:[%s1 + $0x20c] sm:$0xf]
    %v306 = vld [vmem:[%s1 + $0x210] sm:$0xf]
    %v307 = vld [vmem:[%s1 + $0x214] sm:$0xf]
    %v308 = vld [vmem:[%s1 + $0x218] sm:$0xf]
    %v309 = vld [vmem:[%s1 + $0x21c] sm:$0xf]
    %v310 = vld [vmem:[%s1 + $0x220] sm:$0xf]
    %v311 = vld [vmem:[%s1 + $0x224] sm:$0xf]
    %v312 = vld [vmem:[%s1 + $0x228] sm:$0xf]
    %v313 = vld [vmem:[%s1 + $0x22c] sm:$0xf]
    %v314 = vld [vmem:[%s1 + $0x230] sm:$0xf]
    %v315 = vld [vmem:[%s1 + $0x234] sm:$0xf]
    %v316 = vld [vmem:[%s1 + $0x238] sm:$0xf]
    %v317 = vld [vmem:[%s1 + $0x23c] sm:$0xf]
    %v318 = vld [vmem:[%s1 + $0x240] sm:$0xf]
    %v319 = vld [vmem:[%s1 + $0x244] sm:$0xf]
    %v320 = vld [vmem:[%s1 + $0x248] sm:$0xf]
    %v321 = vld [vmem:[%s1 + $0x24c] sm:$0xf]
    %v322 = vld [vmem:[%s1 + $0x250] sm:$0xf]
    %v323 = vld [vmem:[%s1 + $0x254] sm:$0xf]
    %v324 = vld [vmem:[%s1 + $0x258] sm:$0xf]
    %v325 = vld [vmem:[%s1 + $0x25c] sm:$0xf]
    %v326 = vld [vmem:[%s1 + $0x260] sm:$0xf]
    %v327 = vld [vmem:[%s1 + $0x264] sm:$0xf]
    %v328 = vld [vmem:[%s1 + $0x268] sm:$0xf]
    %v329 = vld [vmem:[%s1 + $0x26c] sm:$0xf]
    %v330 = vld [vmem:[%s1 + $0x270] sm:$0xf]
    %v331 = vld [vmem:[%s1 + $0x274] sm:$0xf]
    %v332 = vld [vmem:[%s1 + $0x278] sm:$0xf]
    %v333 = vld [vmem:[%s1 + $0x27c] sm:$0xf]
    %v334 = vld [vmem:[%s1 + $0x280] sm:$0xf]
    %v335 = vld [vmem:[%s1 + $0x284] sm:$0xf]
    %v336 = vld [vmem:[%s1 + $0x288] sm:$0xf]
    %v337 = vld [vmem:[%s1 + $0x28c] sm:$0xf]
    %v338 = vld [vmem:[%s1 + $0x290] sm:$0xf]
    %v339 = vld [vmem:[%s1 + $0x294] sm:$0xf]
    %v340 = vld [vmem:[%s1 + $0x298] sm:$0xf]
    %v341 = vld [vmem:[%s1 + $0x29c] sm:$0xf]
    %v342 = vld [vmem:[%s1 + $0x2a0] sm:$0xf]
    %v343 = vld [vmem:[%s1 + $0x2a4] sm:$0xf]
    %v344 = vld [vmem:[%s1 + $0x2a8] sm:$0xf]
    %v345 = vld [vmem:[%s1 + $0x2ac] sm:$0xf]
    %v346 = vld [vmem:[%s1 + $0x2b0] sm:$0xf]
    %v347 = vld [vmem:[%s1 + $0x2b4] sm:$0xf]
    %v348 = vld [vmem:[%s1 + $0x2b8] sm:$0xf]
    %v349 = vld [vmem:[%s1 + $0x2bc] sm:$0xf]
    %v350 = vld [vmem:[%s1 + $0x2c0] sm:$0xf]
    %v351 = vld [vmem:[%s1 + $0x2c4] sm:$0xf]
    %v352 = vld [vmem:[%s1 + $0x2c8] sm:$0xf]
    %v353 = vld [vmem:[%s1 + $0x2cc] sm:$0xf]
    %v354 = vld [vmem:[%s1 + $0x2d0] sm:$0xf]
    %v355 = vld [vmem:[%s1 + $0x2d4] sm:$0xf]
    %v356 = vld [vmem:[%s1 + $0x2d8] sm:$0xf]
    %v357 = vld [vmem:[%s1 + $0x2dc] sm:$0xf]
    %v358 = vld [vmem:[%s1 + $0x2e0] sm:$0xf]
    %v359 = vld [vmem:[%s1 + $0x2e4] sm:$0xf]
    %v360 = vld [vmem:[%s1 + $0x2e8] sm:$0xf]
    %v361 = vld [vmem:[%s1 + $0x2ec] sm:$0xf]
    %v362 = vld [vmem:[%s1 + $0x2f0] sm:$0xf]
    %v363 = vld [vmem:[%s1 + $0x2f4] sm:$0xf]
    %v364 = vld [vmem:[%s1 + $0x2f8] sm:$0xf]
    %v365 = vld [vmem:[%s1 + $0x2fc] sm:$0xf]
    %v366 = vld [vmem:[%s1 + $0x300] sm:$0xf]
    %v367 = vld [vmem:[%s1 + $0x304] sm:$0xf]
    %v368 = vld [vmem:[%s1 + $0x308] sm:$0xf]
    %v369 = vld [vmem:[%s1 + $0x30c] sm:$0xf]
    %v370 = vld [vmem:[%s1 + $0x310] sm:$0xf]
    %v371 = vld [vmem:[%s1 + $0x314] sm:$0xf]
    %v372 = vld [vmem:[%s1 + $0x318] sm:$0xf]
    %v373 = vld [vmem:[%s1 + $0x31c] sm:$0xf]
    %v374 = vld [vmem:[%s1 + $0x320] sm:$0xf]
    %v375 = vld [vmem:[%s1 + $0x324] sm:$0xf]
    %v376 = vld [vmem:[%s1 + $0x328] sm:$0xf]
    %v377 = vld [vmem:[%s1 + $0x32c] sm:$0xf]
    %v378 = vld [vmem:[%s1 + $0x330] sm:$0xf]
    %v379 = vld [vmem:[%s1 + $0x334] sm:$0xf]
    %v380 = vld [vmem:[%s1 + $0x338] sm:$0xf]
    %v381 = vld [vmem:[%s1 + $0x33c] sm:$0xf]
    %v382 = vld [vmem:[%s1 + $0x340] sm:$0xf]
    %v383 = vld [vmem:[%s1 + $0x344] sm:$0xf]
    %v384 = vld [vmem:[%s1 + $0x348] sm:$0xf]
    %v385 = vld [vmem:[%s1 + $0x34c] sm:$0xf]
    %v386 = vld [vmem:[%s1 + $0x350] sm:$0xf]
    %v387 = vld [vmem:[%s1 + $0x354] sm:$0xf]
    %v388 = vld [vmem:[%s1 + $0x358] sm:$0xf]
    %v389 = vld [vmem:[%s1 + $0x35c] sm:$0xf]
    %v390 = vld [vmem:[%s1 + $0x360] sm:$0xf]
    %v391 = vld [vmem:[%s1 + $0x364] sm:$0xf]
    %v392 = vld [vmem:[%s1 + $0x368] sm:$0xf]
    %v393 = vld [vmem:[%s1 + $0x36c] sm:$0xf]
    %v394 = vld [vmem:[%s1 + $0x370] sm:$0xf]
    %v395 = vld [vmem:[%s1 + $0x374] sm:$0xf]
    %v396 = vld [vmem:[%s1 + $0x378] sm:$0xf]
    %v397 = vld [vmem:[%s1 + $0x37c] sm:$0xf]
    %v398 = vld [vmem:[%s1 + $0x380] sm:$0xf]
    %v399 = vld [vmem:[%s1 + $0x384] sm:$0xf]
    %v400 = vld [vmem:[%s1 + $0x388] sm:$0xf]
    %v401 = vld [vmem:[%s1 + $0x38c] sm:$0xf]
    %v402 = vld [vmem:[%s1 + $0x390] sm:$0xf]
    %v403 = vld [vmem:[%s1 + $0x394] sm:$0xf]
    %v404 = vld [vmem:[%s1 + $0x398] sm:$0xf]
    %v405 = vld [vmem:[%s1 + $0x39c] sm:$0xf]
    %v406 = vld [vmem:[%s1 + $0x3a0] sm:$0xf]
    %v407 = vld [vmem:[%s1 + $0x3a4] sm:$0xf]
    %v408 = vld [vmem:[%s1 + $0x3a8] sm:$0xf]
    %v409 = vld [vmem:[%s1 + $0x3ac] sm:$0xf]
    %v410 = vld [vmem:[%s1 + $0x3b0] sm:$0xf]
    %v411 = vld [vmem:[%s1 + $0x3b4] sm:$0xf]
    %v412 = vld [vmem:[%s1 + $0x3b8] sm:$0xf]
    %v413 = vld [vmem:[%s1 + $0x3bc] sm:$0xf]
    %v414 = vld [vmem:[%s1 + $0x3c0] sm:$0xf]
    %v415 = vld [vmem:[%s1 + $0x3c4] sm:$0xf]
    %v416 = vld [vmem:[%s1 + $0x3c8] sm:$0xf]
    %v417 = vld [vmem:[%s1 + $0x3cc] sm:$0xf]
    %v418 = vld [vmem:[%s1 + $0x3d0] sm:$0xf]
    %v419 = vld [vmem:[%s1 + $0x3d4] sm:$0xf]
    %v420 = vld [vmem:[%s1 + $0x3d8] sm:$0xf]
    %v421 = vld [vmem:[%s1 + $0x3dc] sm:$0xf]
    %v422 = vld [vmem:[%s1 + $0x3e0] sm:$0xf]
    %v423 = vld [vmem:[%s1 + $0x3e4] sm:$0xf]
    %v424 = vld [vmem:[%s1 + $0x3e8] sm:$0xf]
    %v425 = vld [vmem:[%s1 + $0x3ec] sm:$0xf]
    %v426 = vld [vmem:[%s1 + $0x3f0] sm:$0xf]
    %v427 = vld [vmem:[%s1 + $0x3f4] sm:$0xf]
    %v428 = vld [vmem:[%s1 + $0x3f8] sm:$0xf]
    %v429 = vld [vmem:[%s1 + $0x3fc] sm:$0xf]
    %v430 = vld [vmem:[%s1 + $0x400] sm:$0xf]
    %v431 = vld [vmem:[%s1 + $0x404] sm:$0xf]
    %v432 = vld [vmem:[%s1 + $0x408] sm:$0xf]
    %v433 = vld [vmem:[%s1 + $0x40c] sm:$0xf]
    %v434 = vld [vmem:[%s1 + $0x410] sm:$0xf]
    %v435 = vld [vmem:[%s1 + $0x414] sm:$0xf]
    %v436 = vld [vmem:[%s1 + $0x418] sm:$0xf]
    %v437 = vld [vmem:[%s1 + $0x41c] sm:$0xf]
    %v438 = vld [vmem:[%s1 + $0x420] sm:$0xf]
    %v439 = vld [vmem:[%s1 + $0x424] sm:$0xf]
    %v440 = vld [vmem:[%s1 + $0x428] sm:$0xf]
    %v441 = vld [vmem:[%s1 + $0x42c] sm:$0xf]
    %v442 = vld [vmem:[%s1 + $0x430] sm:$0xf]
    %v443 = vld [vmem:[%s1 + $0x434] sm:$0xf]
    %v444 = vld [vmem:[%s1 + $0x438] sm:$0xf]
    %v445 = vld [vmem:[%s1 + $0x43c] sm:$0xf]
    %v446 = vld [vmem:[%s1 + $0x440] sm:$0xf]
    %v447 = vld [vmem:[%s1 + $0x444] sm:$0xf]
    %v448 = vld [vmem:[%s1 + $0x448] sm:$0xf]
    %v449 = vld [vmem:[%s1 + $0x44c] sm:$0xf]
    %v450 = vld [vmem:[%s1 + $0x450] sm:$0xf]
    %v451 = vld [vmem:[%s1 + $0x454] sm:$0xf]
    %v452 = vld [vmem:[%s1 + $0x458] sm:$0xf]
    %v453 = vld [vmem:[%s1 + $0x45c] sm:$0xf]
    %v454 = vld [vmem:[%s1 + $0x460] sm:$0xf]
    %v455 = vld [vmem:[%s1 + $0x464] sm:$0xf]
    %v456 = vld [vmem:[%s1 + $0x468] sm:$0xf]
    %v457 = vld [vmem:[%s1 + $0x46c] sm:$0xf]
    %v458 = vld [vmem:[%s1 + $0x470] sm:$0xf]
    %v459 = vld [vmem:[%s1 + $0x474] sm:$0xf]
    %v460 = vld [vmem:[%s1 + $0x478] sm:$0xf]
    %v461 = vld [vmem:[%s1 + $0x47c] sm:$0xf]
    %v462 = vld [vmem:[%s1 + $0x480] sm:$0xf]
    %v463 = vld [vmem:[%s1 + $0x484] sm:$0xf]
    %v464 = vld [vmem:[%s1 + $0x488] sm:$0xf]
    %v465 = vld [vmem:[%s1 + $0x48c] sm:$0xf]
    %v466 = vld [vmem:[%s1 + $0x490] sm:$0xf]
    %v467 = vld [vmem:[%s1 + $0x494] sm:$0xf]
    %v468 = vld [vmem:[%s1 + $0x498] sm:$0xf]
    %v469 = vld [vmem:[%s1 + $0x49c] sm:$0xf]
    %v470 = vld [vmem:[%s1 + $0x4a0] sm:$0xf]
    %v471 = vld [vmem:[%s1 + $0x4a4] sm:$0xf]
    %v472 = vld [vmem:[%s1 + $0x4a8] sm:$0xf]
    %v473 = vld [vmem:[%s1 + $0x4ac] sm:$0xf]
    %v474 = vld [vmem:[%s1 + $0x4b0] sm:$0xf]
    %v475 = vld [vmem:[%s1 + $0x4b4] sm:$0xf]
    %v476 = vld [vmem:[%s1 + $0x4b8] sm:$0xf]
    %v477 = vld [vmem:[%s1 + $0x4bc] sm:$0xf]
    %v478 = vld [vmem:[%s1 + $0x4c0] sm:$0xf]
    %v479 = vld [vmem:[%s1 + $0x4c4] sm:$0xf]
    %v480 = vld [vmem:[%s1 + $0x4c8] sm:$0xf]
    %v481 = vld [vmem:[%s1 + $0x4cc] sm:$0xf]
    %v482 = vld [vmem:[%s1 + $0x4d0] sm:$0xf]
    %v483 = vld [vmem:[%s1 + $0x4d4] sm:$0xf]
    %v484 = vld [vmem:[%s1 + $0x4d8] sm:$0xf]
    %v485 = vld [vmem:[%s1 + $0x4dc] sm:$0xf]
    %v486 = vld [vmem:[%s1 + $0x4e0] sm:$0xf]
    %v487 = vld [vmem:[%s1 + $0x4e4] sm:$0xf]
    %v488 = vld [vmem:[%s1 + $0x4e8] sm:$0xf]
    %v489 = vld [vmem:[%s1 + $0x4ec] sm:$0xf]
    %v490 = vld [vmem:[%s1 + $0x4f0] sm:$0xf]
    %v491 = vld [vmem:[%s1 + $0x4f4] sm:$0xf]
    %v492 = vld [vmem:[%s1 + $0x4f8] sm:$0xf]
    %v493 = vld [vmem:[%s1 + $0x4fc] sm:$0xf]
    %v494 = vld [vmem:[%s1 + $0x500] sm:$0xf]
    %v495 = vld [vmem:[%s1 + $0x504] sm:$0xf]
    %v496 = vld [vmem:[%s1 + $0x508] sm:$0xf]
    %v497 = vld [vmem:[%s1 + $0x50c] sm:$0xf]
    %v498 = vld [vmem:[%s1 + $0x510] sm:$0xf]
    %v499 = vld [vmem:[%s1 + $0x514] sm:$0xf]
    %v500 = vld [vmem:[%s1 + $0x518] sm:$0xf]
    %v501 = vld [vmem:[%s1 + $0x51c] sm:$0xf]
    %v502 = vld [vmem:[%s1 + $0x520] sm:$0xf]
    %v503 = vld [vmem:[%s1 + $0x524] sm:$0xf]
    %v504 = vld [vmem:[%s1 + $0x528] sm:$0xf]
    %v505 = vld [vmem:[%s1 + $0x52c] sm:$0xf]
    %v506 = vld [vmem:[%s1 + $0x530] sm:$0xf]
    %v507 = vld [vmem:[%s1 + $0x534] sm:$0xf]
    %v508 = vld [vmem:[%s1 + $0x538] sm:$0xf]
    %v509 = vld [vmem:[%s1 + $0x53c] sm:$0xf]
    %v846 = vunpack.c.l.b16 %v174
    %v847 = vunpack.c.l.b16 %v175
    %v848 = vunpack.c.l.b16 %v176
    %v849 = vunpack.c.l.b16 %v177
    %v850 = vunpack.c.l.b16 %v178
    %v851 = vunpack.c.l.b16 %v179
    %v852 = vunpack.c.l.b16 %v180
    %v853 = vunpack.c.l.b16 %v181
    %v854 = vunpack.c.l.b16 %v182
    %v855 = vunpack.c.l.b16 %v183
    %v856 = vunpack.c.l.b16 %v184
    %v857 = vunpack.c.l.b16 %v185
    %v858 = vunpack.c.l.b16 %v186
    %v859 = vunpack.c.l.b16 %v187
    %v860 = vunpack.c.l.b16 %v188
    %v861 = vunpack.c.l.b16 %v189
    %v862 = vunpack.c.l.b16 %v190
    %v863 = vunpack.c.l.b16 %v191
    %v864 = vunpack.c.l.b16 %v192
    %v865 = vunpack.c.l.b16 %v193
    %v866 = vunpack.c.l.b16 %v194
    %v867 = vunpack.c.l.b16 %v195
    %v868 = vunpack.c.l.b16 %v196
    %v869 = vunpack.c.l.b16 %v197
    %v870 = vunpack.c.l.b16 %v198
    %v871 = vunpack.c.l.b16 %v199
    %v872 = vunpack.c.l.b16 %v200
    %v873 = vunpack.c.l.b16 %v201
    %v874 = vunpack.c.l.b16 %v202
    %v875 = vunpack.c.l.b16 %v203
    %v876 = vunpack.c.l.b16 %v204
    %v877 = vunpack.c.l.b16 %v205
    %v878 = vunpack.c.l.b16 %v206
    %v879 = vunpack.c.l.b16 %v207
    %v880 = vunpack.c.l.b16 %v208
    %v881 = vunpack.c.l.b16 %v209
    %v882 = vunpack.c.l.b16 %v210
    %v883 = vunpack.c.l.b16 %v211
    %v884 = vunpack.c.l.b16 %v212
    %v885 = vunpack.c.l.b16 %v213
    %v886 = vunpack.c.l.b16 %v214
    %v887 = vunpack.c.l.b16 %v215
    %v888 = vunpack.c.l.b16 %v216
    %v889 = vunpack.c.l.b16 %v217
    %v890 = vunpack.c.l.b16 %v218
    %v891 = vunpack.c.l.b16 %v219
    %v892 = vunpack.c.l.b16 %v220
    %v893 = vunpack.c.l.b16 %v221
    %v894 = vunpack.c.l.b16 %v222
    %v895 = vunpack.c.l.b16 %v223
    %v896 = vunpack.c.l.b16 %v224
    %v897 = vunpack.c.l.b16 %v225
    %v898 = vunpack.c.l.b16 %v226
    %v899 = vunpack.c.l.b16 %v227
    %v900 = vunpack.c.l.b16 %v228
    %v901 = vunpack.c.l.b16 %v229
    %v902 = vunpack.c.l.b16 %v230
    %v903 = vunpack.c.l.b16 %v231
    %v904 = vunpack.c.l.b16 %v232
    %v905 = vunpack.c.l.b16 %v233
    %v906 = vunpack.c.l.b16 %v234
    %v907 = vunpack.c.l.b16 %v235
    %v908 = vunpack.c.l.b16 %v236
    %v909 = vunpack.c.l.b16 %v237
    %v910 = vunpack.c.l.b16 %v238
    %v911 = vunpack.c.l.b16 %v239
    %v912 = vunpack.c.l.b16 %v240
    %v913 = vunpack.c.l.b16 %v241
    %v914 = vunpack.c.l.b16 %v242
    %v915 = vunpack.c.l.b16 %v243
    %v916 = vunpack.c.l.b16 %v244
    %v917 = vunpack.c.l.b16 %v245
    %v918 = vunpack.c.l.b16 %v246
    %v919 = vunpack.c.l.b16 %v247
    %v920 = vunpack.c.l.b16 %v248
    %v921 = vunpack.c.l.b16 %v249
    %v922 = vunpack.c.l.b16 %v250
    %v923 = vunpack.c.l.b16 %v251
    %v924 = vunpack.c.l.b16 %v252
    %v925 = vunpack.c.l.b16 %v253
    %v926 = vunpack.c.l.b16 %v254
    %v927 = vunpack.c.l.b16 %v255
    %v928 = vunpack.c.l.b16 %v256
    %v929 = vunpack.c.l.b16 %v257
    %v930 = vunpack.c.l.b16 %v258
    %v931 = vunpack.c.l.b16 %v259
    %v932 = vunpack.c.l.b16 %v260
    %v933 = vunpack.c.l.b16 %v261
    %v934 = vunpack.c.l.b16 %v262
    %v935 = vunpack.c.l.b16 %v263
    %v936 = vunpack.c.l.b16 %v264
    %v937 = vunpack.c.l.b16 %v265
    %v938 = vunpack.c.l.b16 %v266
    %v939 = vunpack.c.l.b16 %v267
    %v940 = vunpack.c.l.b16 %v268
    %v941 = vunpack.c.l.b16 %v269
    %v942 = vunpack.c.l.b16 %v270
    %v943 = vunpack.c.l.b16 %v271
    %v944 = vunpack.c.l.b16 %v272
    %v945 = vunpack.c.l.b16 %v273
    %v946 = vunpack.c.l.b16 %v274
    %v947 = vunpack.c.l.b16 %v275
    %v948 = vunpack.c.l.b16 %v276
    %v949 = vunpack.c.l.b16 %v277
    %v950 = vunpack.c.l.b16 %v278
    %v951 = vunpack.c.l.b16 %v279
    %v952 = vunpack.c.l.b16 %v280
    %v953 = vunpack.c.l.b16 %v281
    %v954 = vunpack.c.l.b16 %v282
    %v955 = vunpack.c.l.b16 %v283
    %v956 = vunpack.c.l.b16 %v284
    %v957 = vunpack.c.l.b16 %v285
    %v958 = vunpack.c.l.b16 %v286
    %v959 = vunpack.c.l.b16 %v287
    %v960 = vunpack.c.l.b16 %v288
    %v961 = vunpack.c.l.b16 %v289
    %v962 = vunpack.c.l.b16 %v290
    %v963 = vunpack.c.l.b16 %v291
    %v964 = vunpack.c.l.b16 %v292
    %v965 = vunpack.c.l.b16 %v293
    %v966 = vunpack.c.l.b16 %v294
    %v967 = vunpack.c.l.b16 %v295
    %v968 = vunpack.c.l.b16 %v296
    %v969 = vunpack.c.l.b16 %v297
    %v970 = vunpack.c.l.b16 %v298
    %v971 = vunpack.c.l.b16 %v299
    %v972 = vunpack.c.l.b16 %v300
    %v973 = vunpack.c.l.b16 %v301
    %v974 = vunpack.c.l.b16 %v302
    %v975 = vunpack.c.l.b16 %v303
    %v976 = vunpack.c.l.b16 %v304
    %v977 = vunpack.c.l.b16 %v305
    %v978 = vunpack.c.l.b16 %v306
    %v979 = vunpack.c.l.b16 %v307
    %v980 = vunpack.c.l.b16 %v308
    %v981 = vunpack.c.l.b16 %v309
    %v982 = vunpack.c.l.b16 %v310
    %v983 = vunpack.c.l.b16 %v311
    %v984 = vunpack.c.l.b16 %v312
    %v985 = vunpack.c.l.b16 %v313
    %v986 = vunpack.c.l.b16 %v314
    %v987 = vunpack.c.l.b16 %v315
    %v988 = vunpack.c.l.b16 %v316
    %v989 = vunpack.c.l.b16 %v317
    %v990 = vunpack.c.l.b16 %v318
    %v991 = vunpack.c.l.b16 %v319
    %v992 = vunpack.c.l.b16 %v320
    %v993 = vunpack.c.l.b16 %v321
    %v994 = vunpack.c.l.b16 %v322
    %v995 = vunpack.c.l.b16 %v323
    %v996 = vunpack.c.l.b16 %v324
    %v997 = vunpack.c.l.b16 %v325
    %v998 = vunpack.c.l.b16 %v326
    %v999 = vunpack.c.l.b16 %v327
    %v1000 = vunpack.c.l.b16 %v328
    %v1001 = vunpack.c.l.b16 %v329
    %v1002 = vunpack.c.l.b16 %v330
    %v1003 = vunpack.c.l.b16 %v331
    %v1004 = vunpack.c.l.b16 %v332
    %v1005 = vunpack.c.l.b16 %v333
    %v1006 = vunpack.c.l.b16 %v334
    %v1007 = vunpack.c.l.b16 %v335
    %v1008 = vunpack.c.l.b16 %v336
    %v1009 = vunpack.c.l.b16 %v337
    %v1010 = vunpack.c.l.b16 %v338
    %v1011 = vunpack.c.l.b16 %v339
    %v1012 = vunpack.c.l.b16 %v340
    %v1013 = vunpack.c.l.b16 %v341
    %v1014 = vunpack.c.l.b16 %v342
    %v1015 = vunpack.c.l.b16 %v343
    %v1016 = vunpack.c.l.b16 %v344
    %v1017 = vunpack.c.l.b16 %v345
    %v1018 = vunpack.c.l.b16 %v346
    %v1019 = vunpack.c.l.b16 %v347
    %v1020 = vunpack.c.l.b16 %v348
    %v1021 = vunpack.c.l.b16 %v349
    %v1022 = vunpack.c.l.b16 %v350
    %v1023 = vunpack.c.l.b16 %v351
    %v1024 = vunpack.c.l.b16 %v352
    %v1025 = vunpack.c.l.b16 %v353
    %v1026 = vunpack.c.l.b16 %v354
    %v1027 = vunpack.c.l.b16 %v355
    %v1028 = vunpack.c.l.b16 %v356
    %v1029 = vunpack.c.l.b16 %v357
    %v1030 = vunpack.c.l.b16 %v358
    %v1031 = vunpack.c.l.b16 %v359
    %v1032 = vunpack.c.l.b16 %v360
    %v1033 = vunpack.c.l.b16 %v361
    %v1034 = vunpack.c.l.b16 %v362
    %v1035 = vunpack.c.l.b16 %v363
    %v1036 = vunpack.c.l.b16 %v364
    %v1037 = vunpack.c.l.b16 %v365
    %v1038 = vunpack.c.l.b16 %v366
    %v1039 = vunpack.c.l.b16 %v367
    %v1040 = vunpack.c.l.b16 %v368
    %v1041 = vunpack.c.l.b16 %v369
    %v1042 = vunpack.c.l.b16 %v370
    %v1043 = vunpack.c.l.b16 %v371
    %v1044 = vunpack.c.l.b16 %v372
    %v1045 = vunpack.c.l.b16 %v373
    %v1046 = vunpack.c.l.b16 %v374
    %v1047 = vunpack.c.l.b16 %v375
    %v1048 = vunpack.c.l.b16 %v376
    %v1049 = vunpack.c.l.b16 %v377
    %v1050 = vunpack.c.l.b16 %v378
    %v1051 = vunpack.c.l.b16 %v379
    %v1052 = vunpack.c.l.b16 %v380
    %v1053 = vunpack.c.l.b16 %v381
    %v1054 = vunpack.c.l.b16 %v382
    %v1055 = vunpack.c.l.b16 %v383
    %v1056 = vunpack.c.l.b16 %v384
    %v1057 = vunpack.c.l.b16 %v385
    %v1058 = vunpack.c.l.b16 %v386
    %v1059 = vunpack.c.l.b16 %v387
    %v1060 = vunpack.c.l.b16 %v388
    %v1061 = vunpack.c.l.b16 %v389
    %v1062 = vunpack.c.l.b16 %v390
    %v1063 = vunpack.c.l.b16 %v391
    %v1064 = vunpack.c.l.b16 %v392
    %v1065 = vunpack.c.l.b16 %v393
    %v1066 = vunpack.c.l.b16 %v394
    %v1067 = vunpack.c.l.b16 %v395
    %v1068 = vunpack.c.l.b16 %v396
    %v1069 = vunpack.c.l.b16 %v397
    %v1070 = vunpack.c.l.b16 %v398
    %v1071 = vunpack.c.l.b16 %v399
    %v1072 = vunpack.c.l.b16 %v400
    %v1073 = vunpack.c.l.b16 %v401
    %v1074 = vunpack.c.l.b16 %v402
    %v1075 = vunpack.c.l.b16 %v403
    %v1076 = vunpack.c.l.b16 %v404
    %v1077 = vunpack.c.l.b16 %v405
    %v1078 = vunpack.c.l.b16 %v406
    %v1079 = vunpack.c.l.b16 %v407
    %v1080 = vunpack.c.l.b16 %v408
    %v1081 = vunpack.c.l.b16 %v409
    %v1082 = vunpack.c.l.b16 %v410
    %v1083 = vunpack.c.l.b16 %v411
    %v1084 = vunpack.c.l.b16 %v412
    %v1085 = vunpack.c.l.b16 %v413
    %v1086 = vunpack.c.l.b16 %v414
    %v1087 = vunpack.c.l.b16 %v415
    %v1088 = vunpack.c.l.b16 %v416
    %v1089 = vunpack.c.l.b16 %v417
    %v1090 = vunpack.c.l.b16 %v418
    %v1091 = vunpack.c.l.b16 %v419
    %v1092 = vunpack.c.l.b16 %v420
    %v1093 = vunpack.c.l.b16 %v421
    %v1094 = vunpack.c.l.b16 %v422
    %v1095 = vunpack.c.l.b16 %v423
    %v1096 = vunpack.c.l.b16 %v424
    %v1097 = vunpack.c.l.b16 %v425
    %v1098 = vunpack.c.l.b16 %v426
    %v1099 = vunpack.c.l.b16 %v427
    %v1100 = vunpack.c.l.b16 %v428
    %v1101 = vunpack.c.l.b16 %v429
    %v1102 = vunpack.c.l.b16 %v430
    %v1103 = vunpack.c.l.b16 %v431
    %v1104 = vunpack.c.l.b16 %v432
    %v1105 = vunpack.c.l.b16 %v433
    %v1106 = vunpack.c.l.b16 %v434
    %v1107 = vunpack.c.l.b16 %v435
    %v1108 = vunpack.c.l.b16 %v436
    %v1109 = vunpack.c.l.b16 %v437
    %v1110 = vunpack.c.l.b16 %v438
    %v1111 = vunpack.c.l.b16 %v439
    %v1112 = vunpack.c.l.b16 %v440
    %v1113 = vunpack.c.l.b16 %v441
    %v1114 = vunpack.c.l.b16 %v442
    %v1115 = vunpack.c.l.b16 %v443
    %v1116 = vunpack.c.l.b16 %v444
    %v1117 = vunpack.c.l.b16 %v445
    %v1118 = vunpack.c.l.b16 %v446
    %v1119 = vunpack.c.l.b16 %v447
    %v1120 = vunpack.c.l.b16 %v448
    %v1121 = vunpack.c.l.b16 %v449
    %v1122 = vunpack.c.l.b16 %v450
    %v1123 = vunpack.c.l.b16 %v451
    %v1124 = vunpack.c.l.b16 %v452
    %v1125 = vunpack.c.l.b16 %v453
    %v1126 = vunpack.c.l.b16 %v454
    %v1127 = vunpack.c.l.b16 %v455
    %v1128 = vunpack.c.l.b16 %v456
    %v1129 = vunpack.c.l.b16 %v457
    %v1130 = vunpack.c.l.b16 %v458
    %v1131 = vunpack.c.l.b16 %v459
    %v1132 = vunpack.c.l.b16 %v460
    %v1133 = vunpack.c.l.b16 %v461
    %v1134 = vunpack.c.l.b16 %v462
    %v1135 = vunpack.c.l.b16 %v463
    %v1136 = vunpack.c.l.b16 %v464
    %v1137 = vunpack.c.l.b16 %v465
    %v1138 = vunpack.c.l.b16 %v466
    %v1139 = vunpack.c.l.b16 %v467
    %v1140 = vunpack.c.l.b16 %v468
    %v1141 = vunpack.c.l.b16 %v469
    %v1142 = vunpack.c.l.b16 %v470
    %v1143 = vunpack.c.l.b16 %v471
    %v1144 = vunpack.c.l.b16 %v472
    %v1145 = vunpack.c.l.b16 %v473
    %v1146 = vunpack.c.l.b16 %v474
    %v1147 = vunpack.c.l.b16 %v475
    %v1148 = vunpack.c.l.b16 %v476
    %v1149 = vunpack.c.l.b16 %v477
    %v1150 = vunpack.c.l.b16 %v478
    %v1151 = vunpack.c.l.b16 %v479
    %v1152 = vunpack.c.l.b16 %v480
    %v1153 = vunpack.c.l.b16 %v481
    %v1154 = vunpack.c.l.b16 %v482
    %v1155 = vunpack.c.l.b16 %v483
    %v1156 = vunpack.c.l.b16 %v484
    %v1157 = vunpack.c.l.b16 %v485
    %v1158 = vunpack.c.l.b16 %v486
    %v1159 = vunpack.c.l.b16 %v487
    %v1160 = vunpack.c.l.b16 %v488
    %v1161 = vunpack.c.l.b16 %v489
    %v1162 = vunpack.c.l.b16 %v490
    %v1163 = vunpack.c.l.b16 %v491
    %v1164 = vunpack.c.l.b16 %v492
    %v1165 = vunpack.c.l.b16 %v493
    %v1166 = vunpack.c.l.b16 %v494
    %v1167 = vunpack.c.l.b16 %v495
    %v1168 = vunpack.c.l.b16 %v496
    %v1169 = vunpack.c.l.b16 %v497
    %v1170 = vunpack.c.l.b16 %v498
    %v1171 = vunpack.c.l.b16 %v499
    %v1172 = vunpack.c.l.b16 %v500
    %v1173 = vunpack.c.l.b16 %v501
    %v1174 = vunpack.c.l.b16 %v502
    %v1175 = vunpack.c.l.b16 %v503
    %v1176 = vunpack.c.l.b16 %v504
    %v1177 = vunpack.c.l.b16 %v505
    %v1178 = vunpack.c.l.b16 %v506
    %v1179 = vunpack.c.l.b16 %v507
    %v1180 = vunpack.c.l.b16 %v508
    %v1181 = vunpack.c.l.b16 %v509
    %v1182 = vpack.c.b16 %v847, %v846
    %v1183 = vpack.c.b16 %v849, %v848
    %v1184 = vpack.c.b16 %v851, %v850
    %v1185 = vpack.c.b16 %v853, %v852
    %v1186 = vpack.c.b16 %v855, %v854
    %v1187 = vpack.c.b16 %v857, %v856
    %v1188 = vpack.c.b16 %v859, %v858
    %v1189 = vpack.c.b16 %v861, %v860
    %v1190 = vpack.c.b16 %v863, %v862
    %v1191 = vpack.c.b16 %v865, %v864
    %v1192 = vpack.c.b16 %v867, %v866
    %v1193 = vpack.c.b16 %v869, %v868
    %v1194 = vpack.c.b16 %v871, %v870
    %v1195 = vpack.c.b16 %v873, %v872
    %v1196 = vpack.c.b16 %v875, %v874
    %v1197 = vpack.c.b16 %v877, %v876
    %v1198 = vpack.c.b16 %v879, %v878
    %v1199 = vpack.c.b16 %v881, %v880
    %v1200 = vpack.c.b16 %v883, %v882
    %v1201 = vpack.c.b16 %v885, %v884
    %v1202 = vpack.c.b16 %v887, %v886
    %v1203 = vpack.c.b16 %v889, %v888
    %v1204 = vpack.c.b16 %v891, %v890
    %v1205 = vpack.c.b16 %v893, %v892
    %v1206 = vpack.c.b16 %v895, %v894
    %v1207 = vpack.c.b16 %v897, %v896
    %v1208 = vpack.c.b16 %v899, %v898
    %v1209 = vpack.c.b16 %v901, %v900
    %v1210 = vpack.c.b16 %v903, %v902
    %v1211 = vpack.c.b16 %v905, %v904
    %v1212 = vpack.c.b16 %v907, %v906
    %v1213 = vpack.c.b16 %v909, %v908
    %v1214 = vpack.c.b16 %v911, %v910
    %v1215 = vpack.c.b16 %v913, %v912
    %v1216 = vpack.c.b16 %v915, %v914
    %v1217 = vpack.c.b16 %v917, %v916
    %v1218 = vpack.c.b16 %v919, %v918
    %v1219 = vpack.c.b16 %v921, %v920
    %v1220 = vpack.c.b16 %v923, %v922
    %v1221 = vpack.c.b16 %v925, %v924
    %v1222 = vpack.c.b16 %v927, %v926
    %v1223 = vpack.c.b16 %v929, %v928
    %v1224 = vpack.c.b16 %v931, %v930
    %v1225 = vpack.c.b16 %v933, %v932
    %v1226 = vpack.c.b16 %v935, %v934
    %v1227 = vpack.c.b16 %v937, %v936
    %v1228 = vpack.c.b16 %v939, %v938
    %v1229 = vpack.c.b16 %v941, %v940
    %v1230 = vpack.c.b16 %v943, %v942
    %v1231 = vpack.c.b16 %v945, %v944
    %v1232 = vpack.c.b16 %v947, %v946
    %v1233 = vpack.c.b16 %v949, %v948
    %v1234 = vpack.c.b16 %v951, %v950
    %v1235 = vpack.c.b16 %v953, %v952
    %v1236 = vpack.c.b16 %v955, %v954
    %v1237 = vpack.c.b16 %v957, %v956
    %v1238 = vpack.c.b16 %v959, %v958
    %v1239 = vpack.c.b16 %v961, %v960
    %v1240 = vpack.c.b16 %v963, %v962
    %v1241 = vpack.c.b16 %v965, %v964
    %v1242 = vpack.c.b16 %v967, %v966
    %v1243 = vpack.c.b16 %v969, %v968
    %v1244 = vpack.c.b16 %v971, %v970
    %v1245 = vpack.c.b16 %v973, %v972
    %v1246 = vpack.c.b16 %v975, %v974
    %v1247 = vpack.c.b16 %v977, %v976
    %v1248 = vpack.c.b16 %v979, %v978
    %v1249 = vpack.c.b16 %v981, %v980
    %v1250 = vpack.c.b16 %v983, %v982
    %v1251 = vpack.c.b16 %v985, %v984
    %v1252 = vpack.c.b16 %v987, %v986
    %v1253 = vpack.c.b16 %v989, %v988
    %v1254 = vpack.c.b16 %v991, %v990
    %v1255 = vpack.c.b16 %v993, %v992
    %v1256 = vpack.c.b16 %v995, %v994
    %v1257 = vpack.c.b16 %v997, %v996
    %v1258 = vpack.c.b16 %v999, %v998
    %v1259 = vpack.c.b16 %v1001, %v1000
    %v1260 = vpack.c.b16 %v1003, %v1002
    %v1261 = vpack.c.b16 %v1005, %v1004
    %v1262 = vpack.c.b16 %v1007, %v1006
    %v1263 = vpack.c.b16 %v1009, %v1008
    %v1264 = vpack.c.b16 %v1011, %v1010
    %v1265 = vpack.c.b16 %v1013, %v1012
    %v1266 = vpack.c.b16 %v1015, %v1014
    %v1267 = vpack.c.b16 %v1017, %v1016
    %v1268 = vpack.c.b16 %v1019, %v1018
    %v1269 = vpack.c.b16 %v1021, %v1020
    %v1270 = vpack.c.b16 %v1023, %v1022
    %v1271 = vpack.c.b16 %v1025, %v1024
    %v1272 = vpack.c.b16 %v1027, %v1026
    %v1273 = vpack.c.b16 %v1029, %v1028
    %v1274 = vpack.c.b16 %v1031, %v1030
    %v1275 = vpack.c.b16 %v1033, %v1032
    %v1276 = vpack.c.b16 %v1035, %v1034
    %v1277 = vpack.c.b16 %v1037, %v1036
    %v1278 = vpack.c.b16 %v1039, %v1038
    %v1279 = vpack.c.b16 %v1041, %v1040
    %v1280 = vpack.c.b16 %v1043, %v1042
    %v1281 = vpack.c.b16 %v1045, %v1044
    %v1282 = vpack.c.b16 %v1047, %v1046
    %v1283 = vpack.c.b16 %v1049, %v1048
    %v1284 = vpack.c.b16 %v1051, %v1050
    %v1285 = vpack.c.b16 %v1053, %v1052
    %v1286 = vpack.c.b16 %v1055, %v1054
    %v1287 = vpack.c.b16 %v1057, %v1056
    %v1288 = vpack.c.b16 %v1059, %v1058
    %v1289 = vpack.c.b16 %v1061, %v1060
    %v1290 = vpack.c.b16 %v1063, %v1062
    %v1291 = vpack.c.b16 %v1065, %v1064
    %v1292 = vpack.c.b16 %v1067, %v1066
    %v1293 = vpack.c.b16 %v1069, %v1068
    %v1294 = vpack.c.b16 %v1071, %v1070
    %v1295 = vpack.c.b16 %v1073, %v1072
    %v1296 = vpack.c.b16 %v1075, %v1074
    %v1297 = vpack.c.b16 %v1077, %v1076
    %v1298 = vpack.c.b16 %v1079, %v1078
    %v1299 = vpack.c.b16 %v1081, %v1080
    %v1300 = vpack.c.b16 %v1083, %v1082
    %v1301 = vpack.c.b16 %v1085, %v1084
    %v1302 = vpack.c.b16 %v1087, %v1086
    %v1303 = vpack.c.b16 %v1089, %v1088
    %v1304 = vpack.c.b16 %v1091, %v1090
    %v1305 = vpack.c.b16 %v1093, %v1092
    %v1306 = vpack.c.b16 %v1095, %v1094
    %v1307 = vpack.c.b16 %v1097, %v1096
    %v1308 = vpack.c.b16 %v1099, %v1098
    %v1309 = vpack.c.b16 %v1101, %v1100
    %v1310 = vpack.c.b16 %v1103, %v1102
    %v1311 = vpack.c.b16 %v1105, %v1104
    %v1312 = vpack.c.b16 %v1107, %v1106
    %v1313 = vpack.c.b16 %v1109, %v1108
    %v1314 = vpack.c.b16 %v1111, %v1110
    %v1315 = vpack.c.b16 %v1113, %v1112
    %v1316 = vpack.c.b16 %v1115, %v1114
    %v1317 = vpack.c.b16 %v1117, %v1116
    %v1318 = vpack.c.b16 %v1119, %v1118
    %v1319 = vpack.c.b16 %v1121, %v1120
    %v1320 = vpack.c.b16 %v1123, %v1122
    %v1321 = vpack.c.b16 %v1125, %v1124
    %v1322 = vpack.c.b16 %v1127, %v1126
    %v1323 = vpack.c.b16 %v1129, %v1128
    %v1324 = vpack.c.b16 %v1131, %v1130
    %v1325 = vpack.c.b16 %v1133, %v1132
    %v1326 = vpack.c.b16 %v1135, %v1134
    %v1327 = vpack.c.b16 %v1137, %v1136
    %v1328 = vpack.c.b16 %v1139, %v1138
    %v1329 = vpack.c.b16 %v1141, %v1140
    %v1330 = vpack.c.b16 %v1143, %v1142
    %v1331 = vpack.c.b16 %v1145, %v1144
    %v1332 = vpack.c.b16 %v1147, %v1146
    %v1333 = vpack.c.b16 %v1149, %v1148
    %v1334 = vpack.c.b16 %v1151, %v1150
    %v1335 = vpack.c.b16 %v1153, %v1152
    %v1336 = vpack.c.b16 %v1155, %v1154
    %v1337 = vpack.c.b16 %v1157, %v1156
    %v1338 = vpack.c.b16 %v1159, %v1158
    %v1339 = vpack.c.b16 %v1161, %v1160
    %v1340 = vpack.c.b16 %v1163, %v1162
    %v1341 = vpack.c.b16 %v1165, %v1164
    %v1342 = vpack.c.b16 %v1167, %v1166
    %v1343 = vpack.c.b16 %v1169, %v1168
    %v1344 = vpack.c.b16 %v1171, %v1170
    %v1345 = vpack.c.b16 %v1173, %v1172
    %v1346 = vpack.c.b16 %v1175, %v1174
    %v1347 = vpack.c.b16 %v1177, %v1176
    %v1348 = vpack.c.b16 %v1179, %v1178
    %v1349 = vpack.c.b16 %v1181, %v1180
    %1518 = vmatprep.subr.bf16.mxu0 0
    %1519 = vmatpush1.bf16.msra.mxu0 %v1189
    %1520 = vmatprep.subr.bf16.mxu0 0
    %1521 = vmatpush1.bf16.msra.mxu0 %v1188
    %1522 = vmatprep.subr.bf16.mxu0 0
    %1523 = vmatpush1.bf16.msra.mxu0 %v1187
    %1524 = vmatprep.subr.bf16.mxu0 0
    %1525 = vmatpush1.bf16.msra.mxu0 %v1186
    %1526 = vmatprep.subr.bf16.mxu0 0
    %1527 = vmatpush1.bf16.msra.mxu0 %v1185
    %1528 = vmatprep.subr.bf16.mxu0 0
    %1529 = vmatpush1.bf16.msra.mxu0 %v1184
    %1530 = vmatprep.subr.bf16.mxu0 0
    %1531 = vmatpush1.bf16.msra.mxu0 %v1183
    %1532 = vmatprep.subr.bf16.mxu0 0
    %1533 = vmatpush1.bf16.msra.mxu0 %v1182
    %1534 = vmatprep.subr.bf16.mxu0 0
    %1535 = vmatpush2.bf16.msra.mxu0 %v1197
    %1536 = vmatprep.subr.bf16.mxu0 0
    %1537 = vmatpush2.bf16.msra.mxu0 %v1196
    %1538 = vmatprep.subr.bf16.mxu0 0
    %1539 = vmatpush2.bf16.msra.mxu0 %v1195
    %1540 = vmatprep.subr.bf16.mxu0 0
    %1541 = vmatpush2.bf16.msra.mxu0 %v1194
    %1542 = vmatprep.subr.bf16.mxu0 0
    %1543 = vmatpush2.bf16.msra.mxu0 %v1193
    %1544 = vmatprep.subr.bf16.mxu0 0
    %1545 = vmatpush2.bf16.msra.mxu0 %v1192
    %1546 = vmatprep.subr.bf16.mxu0 0
    %1547 = vmatpush2.bf16.msra.mxu0 %v1191
    %1548 = vmatprep.subr.bf16.mxu0 0
    %1549 = vmatpush2.bf16.msra.mxu0 %v1190
    %1550 = vmatprep.mubr.bf16.mxu0 %v154
    %1551 = vmatmul.mubr.bf16.gmra.mxu0 %v153
    %v1552 = vpop.f32.mrf.mxu0
    %v1553 = vadd.f32 0.0, %v1552
    %v1554 = vpop.f32.mrf.mxu0
    %v1555 = vpop.f32.mrf.mxu0
    %v1556 = vpop.f32.mrf.mxu0
    %1557 = vdwg.mxu0
    %1558 = vmatprep.subr.bf16.mxu0 0
    %1559 = vmatpush1.bf16.msra.mxu0 %v1205
    %1560 = vmatprep.subr.bf16.mxu0 0
    %1561 = vmatpush1.bf16.msra.mxu0 %v1204
    %1562 = vmatprep.subr.bf16.mxu0 0
    %1563 = vmatpush1.bf16.msra.mxu0 %v1203
    %1564 = vmatprep.subr.bf16.mxu0 0
    %1565 = vmatpush1.bf16.msra.mxu0 %v1202
    %1566 = vmatprep.subr.bf16.mxu0 0
    %1567 = vmatpush1.bf16.msra.mxu0 %v1201
    %1568 = vmatprep.subr.bf16.mxu0 0
    %1569 = vmatpush1.bf16.msra.mxu0 %v1200
    %1570 = vmatprep.subr.bf16.mxu0 0
    %1571 = vmatpush1.bf16.msra.mxu0 %v1199
    %1572 = vmatprep.subr.bf16.mxu0 0
    %1573 = vmatpush1.bf16.msra.mxu0 %v1198
    %1574 = vmatprep.subr.bf16.mxu0 0
    %1575 = vmatpush2.bf16.msra.mxu0 %v1213
    %1576 = vmatprep.subr.bf16.mxu0 0
    %1577 = vmatpush2.bf16.msra.mxu0 %v1212
    %1578 = vmatprep.subr.bf16.mxu0 0
    %1579 = vmatpush2.bf16.msra.mxu0 %v1211
    %1580 = vmatprep.subr.bf16.mxu0 0
    %1581 = vmatpush2.bf16.msra.mxu0 %v1210
    %1582 = vmatprep.subr.bf16.mxu0 0
    %1583 = vmatpush2.bf16.msra.mxu0 %v1209
    %1584 = vmatprep.subr.bf16.mxu0 0
    %1585 = vmatpush2.bf16.msra.mxu0 %v1208
    %1586 = vmatprep.subr.bf16.mxu0 0
    %1587 = vmatpush2.bf16.msra.mxu0 %v1207
    %1588 = vmatprep.subr.bf16.mxu0 0
    %1589 = vmatpush2.bf16.msra.mxu0 %v1206
    %1590 = vmatprep.mubr.bf16.mxu0 %v156
    %1591 = vmatmul.mubr.bf16.gmra.mxu0 %v155
    %v1592 = vpop.f32.mrf.mxu0
    %v1593 = vadd.f32 %v1553, %v1592
    %v1594 = vpop.f32.mrf.mxu0
    %v1595 = vpop.f32.mrf.mxu0
    %v1596 = vpop.f32.mrf.mxu0
    %1597 = vdwg.mxu0
    %1598 = vmatprep.subr.bf16.mxu0 0
    %1599 = vmatpush1.bf16.msra.mxu0 %v1221
    %1600 = vmatprep.subr.bf16.mxu0 0
    %1601 = vmatpush1.bf16.msra.mxu0 %v1220
    %1602 = vmatprep.subr.bf16.mxu0 0
    %1603 = vmatpush1.bf16.msra.mxu0 %v1219
    %1604 = vmatprep.subr.bf16.mxu0 0
    %1605 = vmatpush1.bf16.msra.mxu0 %v1218
    %1606 = vmatprep.subr.bf16.mxu0 0
    %1607 = vmatpush1.bf16.msra.mxu0 %v1217
    %1608 = vmatprep.subr.bf16.mxu0 0
    %1609 = vmatpush1.bf16.msra.mxu0 %v1216
    %1610 = vmatprep.subr.bf16.mxu0 0
    %1611 = vmatpush1.bf16.msra.mxu0 %v1215
    %1612 = vmatprep.subr.bf16.mxu0 0
    %1613 = vmatpush1.bf16.msra.mxu0 %v1214
    %1614 = vmatprep.subr.bf16.mxu0 0
    %1615 = vmatpush2.bf16.msra.mxu0 %v1229
    %1616 = vmatprep.subr.bf16.mxu0 0
    %1617 = vmatpush2.bf16.msra.mxu0 %v1228
    %1618 = vmatprep.subr.bf16.mxu0 0
    %1619 = vmatpush2.bf16.msra.mxu0 %v1227
    %1620 = vmatprep.subr.bf16.mxu0 0
    %1621 = vmatpush2.bf16.msra.mxu0 %v1226
    %1622 = vmatprep.subr.bf16.mxu0 0
    %1623 = vmatpush2.bf16.msra.mxu0 %v1225
    %1624 = vmatprep.subr.bf16.mxu0 0
    %1625 = vmatpush2.bf16.msra.mxu0 %v1224
    %1626 = vmatprep.subr.bf16.mxu0 0
    %1627 = vmatpush2.bf16.msra.mxu0 %v1223
    %1628 = vmatprep.subr.bf16.mxu0 0
    %1629 = vmatpush2.bf16.msra.mxu0 %v1222
    %1630 = vmatprep.mubr.bf16.mxu0 %v158
    %1631 = vmatmul.mubr.bf16.gmra.mxu0 %v157
    %v1632 = vpop.f32.mrf.mxu0
    %v1633 = vadd.f32 %v1593, %v1632
    %v1634 = vpop.f32.mrf.mxu0
    %v1635 = vpop.f32.mrf.mxu0
    %v1636 = vpop.f32.mrf.mxu0
    %1637 = vdwg.mxu0
    %1638 = vmatprep.subr.bf16.mxu0 0
    %1639 = vmatpush1.bf16.msra.mxu0 %v1237
    %1640 = vmatprep.subr.bf16.mxu0 0
    %1641 = vmatpush1.bf16.msra.mxu0 %v1236
    %1642 = vmatprep.subr.bf16.mxu0 0
    %1643 = vmatpush1.bf16.msra.mxu0 %v1235
    %1644 = vmatprep.subr.bf16.mxu0 0
    %1645 = vmatpush1.bf16.msra.mxu0 %v1234
    %1646 = vmatprep.subr.bf16.mxu0 0
    %1647 = vmatpush1.bf16.msra.mxu0 %v1233
    %1648 = vmatprep.subr.bf16.mxu0 0
    %1649 = vmatpush1.bf16.msra.mxu0 %v1232
    %1650 = vmatprep.subr.bf16.mxu0 0
    %1651 = vmatpush1.bf16.msra.mxu0 %v1231
    %1652 = vmatprep.subr.bf16.mxu0 0
    %1653 = vmatpush1.bf16.msra.mxu0 %v1230
    %1654 = vmatprep.subr.bf16.mxu0 0
    %1655 = vmatpush2.bf16.msra.mxu0 %v1245
    %1656 = vmatprep.subr.bf16.mxu0 0
    %1657 = vmatpush2.bf16.msra.mxu0 %v1244
    %1658 = vmatprep.subr.bf16.mxu0 0
    %1659 = vmatpush2.bf16.msra.mxu0 %v1243
    %1660 = vmatprep.subr.bf16.mxu0 0
    %1661 = vmatpush2.bf16.msra.mxu0 %v1242
    %1662 = vmatprep.subr.bf16.mxu0 0
    %1663 = vmatpush2.bf16.msra.mxu0 %v1241
    %1664 = vmatprep.subr.bf16.mxu0 0
    %1665 = vmatpush2.bf16.msra.mxu0 %v1240
    %1666 = vmatprep.subr.bf16.mxu0 0
    %1667 = vmatpush2.bf16.msra.mxu0 %v1239
    %1668 = vmatprep.subr.bf16.mxu0 0
    %1669 = vmatpush2.bf16.msra.mxu0 %v1238
    %1670 = vmatprep.mubr.bf16.mxu0 %v160
    %1671 = vmatmul.mubr.bf16.gmra.mxu0 %v159
    %v1672 = vpop.f32.mrf.mxu0
    %v1673 = vadd.f32 %v1633, %v1672
    %v1674 = vpop.f32.mrf.mxu0
    %v1675 = vpop.f32.mrf.mxu0
    %v1676 = vpop.f32.mrf.mxu0
    %1677 = vdwg.mxu0
    %1678 = vmatprep.subr.bf16.mxu0 0
    %1679 = vmatpush1.bf16.msra.mxu0 %v1253
    %1680 = vmatprep.subr.bf16.mxu0 0
    %1681 = vmatpush1.bf16.msra.mxu0 %v1252
    %1682 = vmatprep.subr.bf16.mxu0 0
    %1683 = vmatpush1.bf16.msra.mxu0 %v1251
    %1684 = vmatprep.subr.bf16.mxu0 0
    %1685 = vmatpush1.bf16.msra.mxu0 %v1250
    %1686 = vmatprep.subr.bf16.mxu0 0
    %1687 = vmatpush1.bf16.msra.mxu0 %v1249
    %1688 = vmatprep.subr.bf16.mxu0 0
    %1689 = vmatpush1.bf16.msra.mxu0 %v1248
    %1690 = vmatprep.subr.bf16.mxu0 0
    %1691 = vmatpush1.bf16.msra.mxu0 %v1247
    %1692 = vmatprep.subr.bf16.mxu0 0
    %1693 = vmatpush1.bf16.msra.mxu0 %v1246
    %1694 = vmatprep.subr.bf16.mxu0 0
    %1695 = vmatpush2.bf16.msra.mxu0 %v1261
    %1696 = vmatprep.subr.bf16.mxu0 0
    %1697 = vmatpush2.bf16.msra.mxu0 %v1260
    %1698 = vmatprep.subr.bf16.mxu0 0
    %1699 = vmatpush2.bf16.msra.mxu0 %v1259
    %1700 = vmatprep.subr.bf16.mxu0 0
    %1701 = vmatpush2.bf16.msra.mxu0 %v1258
    %1702 = vmatprep.subr.bf16.mxu0 0
    %1703 = vmatpush2.bf16.msra.mxu0 %v1257
    %1704 = vmatprep.subr.bf16.mxu0 0
    %1705 = vmatpush2.bf16.msra.mxu0 %v1256
    %1706 = vmatprep.subr.bf16.mxu0 0
    %1707 = vmatpush2.bf16.msra.mxu0 %v1255
    %1708 = vmatprep.subr.bf16.mxu0 0
    %1709 = vmatpush2.bf16.msra.mxu0 %v1254
    %1710 = vmatprep.mubr.bf16.mxu0 %v162
    %1711 = vmatmul.mubr.bf16.gmra.mxu0 %v161
    %v1712 = vpop.f32.mrf.mxu0
    %v1713 = vadd.f32 %v1673, %v1712
    %v1714 = vpop.f32.mrf.mxu0
    %v1715 = vpop.f32.mrf.mxu0
    %v1716 = vpop.f32.mrf.mxu0
    %1717 = vdwg.mxu0
    %1718 = vmatprep.subr.bf16.mxu0 0
    %1719 = vmatpush1.bf16.msra.mxu0 %v1269
    %1720 = vmatprep.subr.bf16.mxu0 0
    %1721 = vmatpush1.bf16.msra.mxu0 %v1268
    %1722 = vmatprep.subr.bf16.mxu0 0
    %1723 = vmatpush1.bf16.msra.mxu0 %v1267
    %1724 = vmatprep.subr.bf16.mxu0 0
    %1725 = vmatpush1.bf16.msra.mxu0 %v1266
    %1726 = vmatprep.subr.bf16.mxu0 0
    %1727 = vmatpush1.bf16.msra.mxu0 %v1265
    %1728 = vmatprep.subr.bf16.mxu0 0
    %1729 = vmatpush1.bf16.msra.mxu0 %v1264
    %1730 = vmatprep.subr.bf16.mxu0 0
    %1731 = vmatpush1.bf16.msra.mxu0 %v1263
    %1732 = vmatprep.subr.bf16.mxu0 0
    %1733 = vmatpush1.bf16.msra.mxu0 %v1262
    %1734 = vmatprep.subr.bf16.mxu0 0
    %1735 = vmatpush2.bf16.msra.mxu0 %v1277
    %1736 = vmatprep.subr.bf16.mxu0 0
    %1737 = vmatpush2.bf16.msra.mxu0 %v1276
    %1738 = vmatprep.subr.bf16.mxu0 0
    %1739 = vmatpush2.bf16.msra.mxu0 %v1275
    %1740 = vmatprep.subr.bf16.mxu0 0
    %1741 = vmatpush2.bf16.msra.mxu0 %v1274
    %1742 = vmatprep.subr.bf16.mxu0 0
    %1743 = vmatpush2.bf16.msra.mxu0 %v1273
    %1744 = vmatprep.subr.bf16.mxu0 0
    %1745 = vmatpush2.bf16.msra.mxu0 %v1272
    %1746 = vmatprep.subr.bf16.mxu0 0
    %1747 = vmatpush2.bf16.msra.mxu0 %v1271
    %1748 = vmatprep.subr.bf16.mxu0 0
    %1749 = vmatpush2.bf16.msra.mxu0 %v1270
    %1750 = vmatprep.mubr.bf16.mxu0 %v164
    %1751 = vmatmul.mubr.bf16.gmra.mxu0 %v163
    %v1752 = vpop.f32.mrf.mxu0
    %v1753 = vadd.f32 %v1713, %v1752
    %v1754 = vpop.f32.mrf.mxu0
    %v1755 = vpop.f32.mrf.mxu0
    %v1756 = vpop.f32.mrf.mxu0
    %1757 = vdwg.mxu0
    %1758 = vmatprep.subr.bf16.mxu0 0
    %1759 = vmatpush1.bf16.msra.mxu0 %v1285
    %1760 = vmatprep.subr.bf16.mxu0 0
    %1761 = vmatpush1.bf16.msra.mxu0 %v1284
    %1762 = vmatprep.subr.bf16.mxu0 0
    %1763 = vmatpush1.bf16.msra.mxu0 %v1283
    %1764 = vmatprep.subr.bf16.mxu0 0
    %1765 = vmatpush1.bf16.msra.mxu0 %v1282
    %1766 = vmatprep.subr.bf16.mxu0 0
    %1767 = vmatpush1.bf16.msra.mxu0 %v1281
    %1768 = vmatprep.subr.bf16.mxu0 0
    %1769 = vmatpush1.bf16.msra.mxu0 %v1280
    %1770 = vmatprep.subr.bf16.mxu0 0
    %1771 = vmatpush1.bf16.msra.mxu0 %v1279
    %1772 = vmatprep.subr.bf16.mxu0 0
    %1773 = vmatpush1.bf16.msra.mxu0 %v1278
    %1774 = vmatprep.subr.bf16.mxu0 0
    %1775 = vmatpush2.bf16.msra.mxu0 %v1293
    %1776 = vmatprep.subr.bf16.mxu0 0
    %1777 = vmatpush2.bf16.msra.mxu0 %v1292
    %1778 = vmatprep.subr.bf16.mxu0 0
    %1779 = vmatpush2.bf16.msra.mxu0 %v1291
    %1780 = vmatprep.subr.bf16.mxu0 0
    %1781 = vmatpush2.bf16.msra.mxu0 %v1290
    %1782 = vmatprep.subr.bf16.mxu0 0
    %1783 = vmatpush2.bf16.msra.mxu0 %v1289
    %1784 = vmatprep.subr.bf16.mxu0 0
    %1785 = vmatpush2.bf16.msra.mxu0 %v1288
    %1786 = vmatprep.subr.bf16.mxu0 0
    %1787 = vmatpush2.bf16.msra.mxu0 %v1287
    %1788 = vmatprep.subr.bf16.mxu0 0
    %1789 = vmatpush2.bf16.msra.mxu0 %v1286
    %1790 = vmatprep.mubr.bf16.mxu0 %v166
    %1791 = vmatmul.mubr.bf16.gmra.mxu0 %v165
    %v1792 = vpop.f32.mrf.mxu0
    %v1793 = vadd.f32 %v1753, %v1792
    %v1794 = vpop.f32.mrf.mxu0
    %v1795 = vpop.f32.mrf.mxu0
    %v1796 = vpop.f32.mrf.mxu0
    %1797 = vdwg.mxu0
    %1798 = vmatprep.subr.bf16.mxu0 0
    %1799 = vmatpush1.bf16.msra.mxu0 %v1301
    %1800 = vmatprep.subr.bf16.mxu0 0
    %1801 = vmatpush1.bf16.msra.mxu0 %v1300
    %1802 = vmatprep.subr.bf16.mxu0 0
    %1803 = vmatpush1.bf16.msra.mxu0 %v1299
    %1804 = vmatprep.subr.bf16.mxu0 0
    %1805 = vmatpush1.bf16.msra.mxu0 %v1298
    %1806 = vmatprep.subr.bf16.mxu0 0
    %1807 = vmatpush1.bf16.msra.mxu0 %v1297
    %1808 = vmatprep.subr.bf16.mxu0 0
    %1809 = vmatpush1.bf16.msra.mxu0 %v1296
    %1810 = vmatprep.subr.bf16.mxu0 0
    %1811 = vmatpush1.bf16.msra.mxu0 %v1295
    %1812 = vmatprep.subr.bf16.mxu0 0
    %1813 = vmatpush1.bf16.msra.mxu0 %v1294
    %1814 = vmatprep.subr.bf16.mxu0 0
    %1815 = vmatpush2.bf16.msra.mxu0 %v1309
    %1816 = vmatprep.subr.bf16.mxu0 0
    %1817 = vmatpush2.bf16.msra.mxu0 %v1308
    %1818 = vmatprep.subr.bf16.mxu0 0
    %1819 = vmatpush2.bf16.msra.mxu0 %v1307
    %1820 = vmatprep.subr.bf16.mxu0 0
    %1821 = vmatpush2.bf16.msra.mxu0 %v1306
    %1822 = vmatprep.subr.bf16.mxu0 0
    %1823 = vmatpush2.bf16.msra.mxu0 %v1305
    %1824 = vmatprep.subr.bf16.mxu0 0
    %1825 = vmatpush2.bf16.msra.mxu0 %v1304
    %1826 = vmatprep.subr.bf16.mxu0 0
    %1827 = vmatpush2.bf16.msra.mxu0 %v1303
    %1828 = vmatprep.subr.bf16.mxu0 0
    %1829 = vmatpush2.bf16.msra.mxu0 %v1302
    %1830 = vmatprep.mubr.bf16.mxu0 %v168
    %1831 = vmatmul.mubr.bf16.gmra.mxu0 %v167
    %v1832 = vpop.f32.mrf.mxu0
    %v1833 = vadd.f32 %v1793, %v1832
    %v1834 = vpop.f32.mrf.mxu0
    %v1835 = vpop.f32.mrf.mxu0
    %v1836 = vpop.f32.mrf.mxu0
    %1837 = vdwg.mxu0
    %1838 = vmatprep.subr.bf16.mxu0 0
    %1839 = vmatpush1.bf16.msra.mxu0 %v1317
    %1840 = vmatprep.subr.bf16.mxu0 0
    %1841 = vmatpush1.bf16.msra.mxu0 %v1316
    %1842 = vmatprep.subr.bf16.mxu0 0
    %1843 = vmatpush1.bf16.msra.mxu0 %v1315
    %1844 = vmatprep.subr.bf16.mxu0 0
    %1845 = vmatpush1.bf16.msra.mxu0 %v1314
    %1846 = vmatprep.subr.bf16.mxu0 0
    %1847 = vmatpush1.bf16.msra.mxu0 %v1313
    %1848 = vmatprep.subr.bf16.mxu0 0
    %1849 = vmatpush1.bf16.msra.mxu0 %v1312
    %1850 = vmatprep.subr.bf16.mxu0 0
    %1851 = vmatpush1.bf16.msra.mxu0 %v1311
    %1852 = vmatprep.subr.bf16.mxu0 0
    %1853 = vmatpush1.bf16.msra.mxu0 %v1310
    %1854 = vmatprep.subr.bf16.mxu0 0
    %1855 = vmatpush2.bf16.msra.mxu0 %v1325
    %1856 = vmatprep.subr.bf16.mxu0 0
    %1857 = vmatpush2.bf16.msra.mxu0 %v1324
    %1858 = vmatprep.subr.bf16.mxu0 0
    %1859 = vmatpush2.bf16.msra.mxu0 %v1323
    %1860 = vmatprep.subr.bf16.mxu0 0
    %1861 = vmatpush2.bf16.msra.mxu0 %v1322
    %1862 = vmatprep.subr.bf16.mxu0 0
    %1863 = vmatpush2.bf16.msra.mxu0 %v1321
    %1864 = vmatprep.subr.bf16.mxu0 0
    %1865 = vmatpush2.bf16.msra.mxu0 %v1320
    %1866 = vmatprep.subr.bf16.mxu0 0
    %1867 = vmatpush2.bf16.msra.mxu0 %v1319
    %1868 = vmatprep.subr.bf16.mxu0 0
    %1869 = vmatpush2.bf16.msra.mxu0 %v1318
    %1870 = vmatprep.mubr.bf16.mxu0 %v170
    %1871 = vmatmul.mubr.bf16.gmra.mxu0 %v169
    %v1872 = vpop.f32.mrf.mxu0
    %v1873 = vadd.f32 %v1833, %v1872
    %v1874 = vpop.f32.mrf.mxu0
    %v1875 = vpop.f32.mrf.mxu0
    %v1876 = vpop.f32.mrf.mxu0
    %1877 = vdwg.mxu0
    %1878 = vmatprep.subr.bf16.mxu0 0
    %1879 = vmatpush1.bf16.msra.mxu0 %v1333
    %1880 = vmatprep.subr.bf16.mxu0 0
    %1881 = vmatpush1.bf16.msra.mxu0 %v1332
    %1882 = vmatprep.subr.bf16.mxu0 0
    %1883 = vmatpush1.bf16.msra.mxu0 %v1331
    %1884 = vmatprep.subr.bf16.mxu0 0
    %1885 = vmatpush1.bf16.msra.mxu0 %v1330
    %1886 = vmatprep.subr.bf16.mxu0 0
    %1887 = vmatpush1.bf16.msra.mxu0 %v1329
    %1888 = vmatprep.subr.bf16.mxu0 0
    %1889 = vmatpush1.bf16.msra.mxu0 %v1328
    %1890 = vmatprep.subr.bf16.mxu0 0
    %1891 = vmatpush1.bf16.msra.mxu0 %v1327
    %1892 = vmatprep.subr.bf16.mxu0 0
    %1893 = vmatpush1.bf16.msra.mxu0 %v1326
    %1894 = vmatprep.subr.bf16.mxu0 0
    %1895 = vmatpush2.bf16.msra.mxu0 %v1341
    %1896 = vmatprep.subr.bf16.mxu0 0
    %1897 = vmatpush2.bf16.msra.mxu0 %v1340
    %1898 = vmatprep.subr.bf16.mxu0 0
    %1899 = vmatpush2.bf16.msra.mxu0 %v1339
    %1900 = vmatprep.subr.bf16.mxu0 0
    %1901 = vmatpush2.bf16.msra.mxu0 %v1338
    %1902 = vmatprep.subr.bf16.mxu0 0
    %1903 = vmatpush2.bf16.msra.mxu0 %v1337
    %1904 = vmatprep.subr.bf16.mxu0 0
    %1905 = vmatpush2.bf16.msra.mxu0 %v1336
    %1906 = vmatprep.subr.bf16.mxu0 0
    %1907 = vmatpush2.bf16.msra.mxu0 %v1335
    %1908 = vmatprep.subr.bf16.mxu0 0
    %1909 = vmatpush2.bf16.msra.mxu0 %v1334
    %1910 = vmatprep.mubr.bf16.mxu0 %v172
    %1911 = vmatmul.mubr.bf16.gmra.mxu0 %v171
    %v1912 = vpop.f32.mrf.mxu0
    %v1913 = vadd.f32 %v1873, %v1912
    %v1914 = vpop.f32.mrf.mxu0
    %v1915 = vpop.f32.mrf.mxu0
    %v1916 = vpop.f32.mrf.mxu0
    %1917 = vdwg.mxu0
    %1918 = vmatprep.subr.bf16.mxu0 0
    %1919 = vmatpush1.bf16.msra.mxu0 %v1349
    %1920 = vmatprep.subr.bf16.mxu0 0
    %1921 = vmatpush1.bf16.msra.mxu0 %v1348
    %1922 = vmatprep.subr.bf16.mxu0 0
    %1923 = vmatpush1.bf16.msra.mxu0 %v1347
    %1924 = vmatprep.subr.bf16.mxu0 0
    %1925 = vmatpush1.bf16.msra.mxu0 %v1346
    %1926 = vmatprep.subr.bf16.mxu0 0
    %1927 = vmatpush1.bf16.msra.mxu0 %v1345
    %1928 = vmatprep.subr.bf16.mxu0 0
    %1929 = vmatpush1.bf16.msra.mxu0 %v1344
    %1930 = vmatprep.subr.bf16.mxu0 0
    %1931 = vmatpush1.bf16.msra.mxu0 %v1343
    %1932 = vmatprep.subr.bf16.mxu0 0
    %1933 = vmatpush1.bf16.msra.mxu0 %v1342
    %1934 = vmatprep.subr.bf16.mxu0 0
    %1935 = vmatpush2.bf16.msra.mxu0 0
    %1936 = vmatprep.subr.bf16.mxu0 0
    %1937 = vmatpush2.bf16.msra.mxu0 0
    %1938 = vmatprep.subr.bf16.mxu0 0
    %1939 = vmatpush2.bf16.msra.mxu0 0
    %1940 = vmatprep.subr.bf16.mxu0 0
    %1941 = vmatpush2.bf16.msra.mxu0 0
    %1942 = vmatprep.subr.bf16.mxu0 0
    %1943 = vmatpush2.bf16.msra.mxu0 0
    %1944 = vmatprep.subr.bf16.mxu0 0
    %1945 = vmatpush2.bf16.msra.mxu0 0
    %1946 = vmatprep.subr.bf16.mxu0 0
    %1947 = vmatpush2.bf16.msra.mxu0 0
    %1948 = vmatprep.subr.bf16.mxu0 0
    %1949 = vmatpush2.bf16.msra.mxu0 0
    %1950 = vmatprep.mubr.bf16.mxu0 0
    %1951 = vmatmul.mubr.bf16.gmra.mxu0 %v173
    %v1952 = vpop.f32.mrf.mxu0
    %v1953 = vadd.f32 %v1913, %v1952
    %v1954 = vpop.f32.mrf.mxu0
    %v1955 = vpop.f32.mrf.mxu0
    %v1956 = vpop.f32.mrf.mxu0
    %1957 = vdwg.mxu0
    %v1958 = vmax.f32 %v1953, 0.0
    %v1959 = vpack.c.bf16 %v1958, %v1958
    %v1960 = vld [vmem:[%s2] sm:$0xf]
    %v1961 = vld [vmem:[%s2 + $0x4] sm:$0x1]
    %v1964 = vunpack.c.l.b16 %v1960
    %v1965 = vunpack.c.l.b16 %v1961
    %v1966 = vpack.c.b16 %v1965, %v1964
    %vm1967 = vcmask 80896
    %v1969 = vsel %vm1967, %v1959, 0
    %vm1971 = vcmask 1044480
    %v1973 = vsel %vm1971, %v1966, 0
    %1975 = vmatprep.subr.bf16.mxu0 0
    %1976 = vmatpush1.bf16.msra.mxu0 0
    %1977 = vmatprep.subr.bf16.mxu0 0
    %1978 = vmatpush1.bf16.msra.mxu0 0
    %1979 = vmatprep.subr.bf16.mxu0 0
    %1980 = vmatpush1.bf16.msra.mxu0 0
    %1981 = vmatprep.subr.bf16.mxu0 0
    %1982 = vmatpush1.bf16.msra.mxu0 0
    %1983 = vmatprep.subr.bf16.mxu0 0
    %1984 = vmatpush1.bf16.msra.mxu0 0
    %1985 = vmatprep.subr.bf16.mxu0 0
    %1986 = vmatpush1.bf16.msra.mxu0 0
    %1987 = vmatprep.subr.bf16.mxu0 0
    %1988 = vmatpush1.bf16.msra.mxu0 0
    %1989 = vmatprep.subr.bf16.mxu0 0
    %1990 = vmatpush1.bf16.msra.mxu0 %v1973
    %1991 = vmatprep.subr.bf16.mxu0 0
    %1992 = vmatpush2.bf16.msra.mxu0 0
    %1993 = vmatprep.subr.bf16.mxu0 0
    %1994 = vmatpush2.bf16.msra.mxu0 0
    %1995 = vmatprep.subr.bf16.mxu0 0
    %1996 = vmatpush2.bf16.msra.mxu0 0
    %1997 = vmatprep.subr.bf16.mxu0 0
    %1998 = vmatpush2.bf16.msra.mxu0 0
    %1999 = vmatprep.subr.bf16.mxu0 0
    %2000 = vmatpush2.bf16.msra.mxu0 0
    %2001 = vmatprep.subr.bf16.mxu0 0
    %2002 = vmatpush2.bf16.msra.mxu0 0
    %2003 = vmatprep.subr.bf16.mxu0 0
    %2004 = vmatpush2.bf16.msra.mxu0 0
    %2005 = vmatprep.subr.bf16.mxu0 0
    %2006 = vmatpush2.bf16.msra.mxu0 0
    %2007 = vmatprep.mubr.bf16.mxu0 0
    %2008 = vmatmul.mubr.bf16.gmra.mxu0 %v1969
    %v2009 = vpop.f32.mrf.mxu0
    %v2010 = vadd.f32 0.0, %v2009
    %v2011 = vpop.f32.mrf.mxu0
    %v2012 = vpop.f32.mrf.mxu0
    %v2013 = vpop.f32.mrf.mxu0
    %2014 = vdwg.mxu0
    %v2015 = vxor.u32 %v2010, 2147483648
    %v2016 = vmul.f32 %v2015, 1.442695
    %v2017 = vpow.pop %v2016
    %v2018 = vadd.f32 %v2017, 1.0
    %v2019 = vrcp.pop %v2018
    %v2020 = vmul.f32 1.0, %v2019
    %v2021 = vpack.c.bf16 %v2020, %v2020
    %v2022 = vld [vmem:[%s3] sm:$0xff]
    %v2023 = vld [vmem:[%s3 + $0x8] sm:$0xff]
    %v2024 = vld [vmem:[%s3 + $0x10] sm:$0xff]
    %v2025 = vld [vmem:[%s3 + $0x18] sm:$0xff]
    %v2026 = vld [vmem:[%s3 + $0x20] sm:$0xff]
    %v2027 = vld [vmem:[%s3 + $0x28] sm:$0xff]
    %v2028 = vld [vmem:[%s3 + $0x30] sm:$0xff]
    %v2029 = vld [vmem:[%s3 + $0x38] sm:$0xff]
    %v2030 = vld [vmem:[%s3 + $0x40] sm:$0xff]
    %v2031 = vld [vmem:[%s3 + $0x48] sm:$0xff]
    %v2032 = vld [vmem:[%s3 + $0x50] sm:$0xf]
    %v2033 = vld [vmem:[%s3 + $0x54] sm:$0xff]
    %v2034 = vld [vmem:[%s3 + $0x5c] sm:$0xff]
    %v2035 = vld [vmem:[%s3 + $0x64] sm:$0xff]
    %v2036 = vld [vmem:[%s3 + $0x6c] sm:$0xff]
    %v2037 = vld [vmem:[%s3 + $0x74] sm:$0xff]
    %v2038 = vld [vmem:[%s3 + $0x7c] sm:$0xff]
    %v2039 = vld [vmem:[%s3 + $0x84] sm:$0xff]
    %v2040 = vld [vmem:[%s3 + $0x8c] sm:$0xff]
    %v2041 = vld [vmem:[%s3 + $0x94] sm:$0xff]
    %v2042 = vld [vmem:[%s3 + $0x9c] sm:$0xff]
    %v2043 = vld [vmem:[%s3 + $0xa4] sm:$0xf]
    %v2044 = vld [vmem:[%s3 + $0xa8] sm:$0xff]
    %v2045 = vld [vmem:[%s3 + $0xb0] sm:$0xff]
    %v2046 = vld [vmem:[%s3 + $0xb8] sm:$0xff]
    %v2047 = vld [vmem:[%s3 + $0xc0] sm:$0xff]
    %v2048 = vld [vmem:[%s3 + $0xc8] sm:$0xff]
    %v2049 = vld [vmem:[%s3 + $0xd0] sm:$0xff]
    %v2050 = vld [vmem:[%s3 + $0xd8] sm:$0xff]
    %v2051 = vld [vmem:[%s3 + $0xe0] sm:$0xff]
    %v2052 = vld [vmem:[%s3 + $0xe8] sm:$0xff]
    %v2053 = vld [vmem:[%s3 + $0xf0] sm:$0xff]
    %v2054 = vld [vmem:[%s3 + $0xf8] sm:$0xf]
    %v2055 = vld [vmem:[%s3 + $0xfc] sm:$0xff]
    %v2056 = vld [vmem:[%s3 + $0x104] sm:$0xff]
    %v2057 = vld [vmem:[%s3 + $0x10c] sm:$0xff]
    %v2058 = vld [vmem:[%s3 + $0x114] sm:$0xff]
    %v2059 = vld [vmem:[%s3 + $0x11c] sm:$0xff]
    %v2060 = vld [vmem:[%s3 + $0x124] sm:$0xff]
    %v2061 = vld [vmem:[%s3 + $0x12c] sm:$0xff]
    %v2062 = vld [vmem:[%s3 + $0x134] sm:$0xff]
    %v2063 = vld [vmem:[%s3 + $0x13c] sm:$0xff]
    %v2064 = vld [vmem:[%s3 + $0x144] sm:$0xff]
    %v2065 = vld [vmem:[%s3 + $0x14c] sm:$0xf]
    %v2066 = vld [vmem:[%s3 + $0x150] sm:$0xff]
    %v2067 = vld [vmem:[%s3 + $0x158] sm:$0xff]
    %v2068 = vld [vmem:[%s3 + $0x160] sm:$0xff]
    %v2069 = vld [vmem:[%s3 + $0x168] sm:$0xff]
    %v2070 = vld [vmem:[%s3 + $0x170] sm:$0xff]
    %v2071 = vld [vmem:[%s3 + $0x178] sm:$0xff]
    %v2072 = vld [vmem:[%s3 + $0x180] sm:$0xff]
    %v2073 = vld [vmem:[%s3 + $0x188] sm:$0xff]
    %v2074 = vld [vmem:[%s3 + $0x190] sm:$0xff]
    %v2075 = vld [vmem:[%s3 + $0x198] sm:$0xff]
    %v2076 = vld [vmem:[%s3 + $0x1a0] sm:$0xf]
    %v2077 = vld [vmem:[%s3 + $0x1a4] sm:$0x11]
    %v2078 = vld [vmem:[%s3 + $0x1ac] sm:$0x11]
    %v2079 = vld [vmem:[%s3 + $0x1b4] sm:$0x11]
    %v2080 = vld [vmem:[%s3 + $0x1bc] sm:$0x11]
    %v2081 = vld [vmem:[%s3 + $0x1c4] sm:$0x11]
    %v2082 = vld [vmem:[%s3 + $0x1cc] sm:$0x11]
    %v2083 = vld [vmem:[%s3 + $0x1d4] sm:$0x11]
    %v2084 = vld [vmem:[%s3 + $0x1dc] sm:$0x11]
    %v2085 = vld [vmem:[%s3 + $0x1e4] sm:$0x11]
    %v2086 = vld [vmem:[%s3 + $0x1ec] sm:$0x11]
    %v2087 = vld [vmem:[%s3 + $0x1f4] sm:$0x1]
    %v2154 = vunpack.c.l.b16 %v2022
    %v2155 = vunpack.c.h.b16 %v2022
    %v2156 = vunpack.c.l.b16 %v2023
    %v2157 = vunpack.c.h.b16 %v2023
    %v2158 = vunpack.c.l.b16 %v2024
    %v2159 = vunpack.c.h.b16 %v2024
    %v2160 = vunpack.c.l.b16 %v2025
    %v2161 = vunpack.c.h.b16 %v2025
    %v2162 = vunpack.c.l.b16 %v2026
    %v2163 = vunpack.c.h.b16 %v2026
    %v2164 = vunpack.c.l.b16 %v2027
    %v2165 = vunpack.c.h.b16 %v2027
    %v2166 = vunpack.c.l.b16 %v2028
    %v2167 = vunpack.c.h.b16 %v2028
    %v2168 = vunpack.c.l.b16 %v2029
    %v2169 = vunpack.c.h.b16 %v2029
    %v2170 = vunpack.c.l.b16 %v2030
    %v2171 = vunpack.c.h.b16 %v2030
    %v2172 = vunpack.c.l.b16 %v2031
    %v2173 = vunpack.c.h.b16 %v2031
    %v2174 = vunpack.c.l.b16 %v2032
    %v2175 = vunpack.c.l.b16 %v2033
    %v2176 = vunpack.c.h.b16 %v2033
    %v2177 = vunpack.c.l.b16 %v2034
    %v2178 = vunpack.c.h.b16 %v2034
    %v2179 = vunpack.c.l.b16 %v2035
    %v2180 = vunpack.c.h.b16 %v2035
    %v2181 = vunpack.c.l.b16 %v2036
    %v2182 = vunpack.c.h.b16 %v2036
    %v2183 = vunpack.c.l.b16 %v2037
    %v2184 = vunpack.c.h.b16 %v2037
    %v2185 = vunpack.c.l.b16 %v2038
    %v2186 = vunpack.c.h.b16 %v2038
    %v2187 = vunpack.c.l.b16 %v2039
    %v2188 = vunpack.c.h.b16 %v2039
    %v2189 = vunpack.c.l.b16 %v2040
    %v2190 = vunpack.c.h.b16 %v2040
    %v2191 = vunpack.c.l.b16 %v2041
    %v2192 = vunpack.c.h.b16 %v2041
    %v2193 = vunpack.c.l.b16 %v2042
    %v2194 = vunpack.c.h.b16 %v2042
    %v2195 = vunpack.c.l.b16 %v2043
    %v2196 = vunpack.c.l.b16 %v2044
    %v2197 = vunpack.c.h.b16 %v2044
    %v2198 = vunpack.c.l.b16 %v2045
    %v2199 = vunpack.c.h.b16 %v2045
    %v2200 = vunpack.c.l.b16 %v2046
    %v2201 = vunpack.c.h.b16 %v2046
    %v2202 = vunpack.c.l.b16 %v2047
    %v2203 = vunpack.c.h.b16 %v2047
    %v2204 = vunpack.c.l.b16 %v2048
    %v2205 = vunpack.c.h.b16 %v2048
    %v2206 = vunpack.c.l.b16 %v2049
    %v2207 = vunpack.c.h.b16 %v2049
    %v2208 = vunpack.c.l.b16 %v2050
    %v2209 = vunpack.c.h.b16 %v2050
    %v2210 = vunpack.c.l.b16 %v2051
    %v2211 = vunpack.c.h.b16 %v2051
    %v2212 = vunpack.c.l.b16 %v2052
    %v2213 = vunpack.c.h.b16 %v2052
    %v2214 = vunpack.c.l.b16 %v2053
    %v2215 = vunpack.c.h.b16 %v2053
    %v2216 = vunpack.c.l.b16 %v2054
    %v2217 = vunpack.c.l.b16 %v2055
    %v2218 = vunpack.c.h.b16 %v2055
    %v2219 = vunpack.c.l.b16 %v2056
    %v2220 = vunpack.c.h.b16 %v2056
    %v2221 = vunpack.c.l.b16 %v2057
    %v2222 = vunpack.c.h.b16 %v2057
    %v2223 = vunpack.c.l.b16 %v2058
    %v2224 = vunpack.c.h.b16 %v2058
    %v2225 = vunpack.c.l.b16 %v2059
    %v2226 = vunpack.c.h.b16 %v2059
    %v2227 = vunpack.c.l.b16 %v2060
    %v2228 = vunpack.c.h.b16 %v2060
    %v2229 = vunpack.c.l.b16 %v2061
    %v2230 = vunpack.c.h.b16 %v2061
    %v2231 = vunpack.c.l.b16 %v2062
    %v2232 = vunpack.c.h.b16 %v2062
    %v2233 = vunpack.c.l.b16 %v2063
    %v2234 = vunpack.c.h.b16 %v2063
    %v2235 = vunpack.c.l.b16 %v2064
    %v2236 = vunpack.c.h.b16 %v2064
    %v2237 = vunpack.c.l.b16 %v2065
    %v2238 = vunpack.c.l.b16 %v2066
    %v2239 = vunpack.c.h.b16 %v2066
    %v2240 = vunpack.c.l.b16 %v2067
    %v2241 = vunpack.c.h.b16 %v2067
    %v2242 = vunpack.c.l.b16 %v2068
    %v2243 = vunpack.c.h.b16 %v2068
    %v2244 = vunpack.c.l.b16 %v2069
    %v2245 = vunpack.c.h.b16 %v2069
    %v2246 = vunpack.c.l.b16 %v2070
    %v2247 = vunpack.c.h.b16 %v2070
    %v2248 = vunpack.c.l.b16 %v2071
    %v2249 = vunpack.c.h.b16 %v2071
    %v2250 = vunpack.c.l.b16 %v2072
    %v2251 = vunpack.c.h.b16 %v2072
    %v2252 = vunpack.c.l.b16 %v2073
    %v2253 = vunpack.c.h.b16 %v2073
    %v2254 = vunpack.c.l.b16 %v2074
    %v2255 = vunpack.c.h.b16 %v2074
    %v2256 = vunpack.c.l.b16 %v2075
    %v2257 = vunpack.c.h.b16 %v2075
    %v2258 = vunpack.c.l.b16 %v2076
    %v2259 = vunpack.c.l.b16 %v2077
    %v2260 = vunpack.c.h.b16 %v2077
    %v2261 = vunpack.c.l.b16 %v2078
    %v2262 = vunpack.c.h.b16 %v2078
    %v2263 = vunpack.c.l.b16 %v2079
    %v2264 = vunpack.c.h.b16 %v2079
    %v2265 = vunpack.c.l.b16 %v2080
    %v2266 = vunpack.c.h.b16 %v2080
    %v2267 = vunpack.c.l.b16 %v2081
    %v2268 = vunpack.c.h.b16 %v2081
    %v2269 = vunpack.c.l.b16 %v2082
    %v2270 = vunpack.c.h.b16 %v2082
    %v2271 = vunpack.c.l.b16 %v2083
    %v2272 = vunpack.c.h.b16 %v2083
    %v2273 = vunpack.c.l.b16 %v2084
    %v2274 = vunpack.c.h.b16 %v2084
    %v2275 = vunpack.c.l.b16 %v2085
    %v2276 = vunpack.c.h.b16 %v2085
    %v2277 = vunpack.c.l.b16 %v2086
    %v2278 = vunpack.c.h.b16 %v2086
    %v2279 = vunpack.c.l.b16 %v2087
    %v2280 = vpack.c.b16 %v2175, %v2154
    %v2281 = vpack.c.b16 %v2176, %v2155
    %v2282 = vpack.c.b16 %v2177, %v2156
    %v2283 = vpack.c.b16 %v2178, %v2157
    %v2284 = vpack.c.b16 %v2179, %v2158
    %v2285 = vpack.c.b16 %v2180, %v2159
    %v2286 = vpack.c.b16 %v2181, %v2160
    %v2287 = vpack.c.b16 %v2182, %v2161
    %v2288 = vpack.c.b16 %v2183, %v2162
    %v2289 = vpack.c.b16 %v2184, %v2163
    %v2290 = vpack.c.b16 %v2185, %v2164
    %v2291 = vpack.c.b16 %v2186, %v2165
    %v2292 = vpack.c.b16 %v2187, %v2166
    %v2293 = vpack.c.b16 %v2188, %v2167
    %v2294 = vpack.c.b16 %v2189, %v2168
    %v2295 = vpack.c.b16 %v2190, %v2169
    %v2296 = vpack.c.b16 %v2191, %v2170
    %v2297 = vpack.c.b16 %v2192, %v2171
    %v2298 = vpack.c.b16 %v2193, %v2172
    %v2299 = vpack.c.b16 %v2194, %v2173
    %v2300 = vpack.c.b16 %v2195, %v2174
    %v2301 = vpack.c.b16 %v2217, %v2196
    %v2302 = vpack.c.b16 %v2218, %v2197
    %v2303 = vpack.c.b16 %v2219, %v2198
    %v2304 = vpack.c.b16 %v2220, %v2199
    %v2305 = vpack.c.b16 %v2221, %v2200
    %v2306 = vpack.c.b16 %v2222, %v2201
    %v2307 = vpack.c.b16 %v2223, %v2202
    %v2308 = vpack.c.b16 %v2224, %v2203
    %v2309 = vpack.c.b16 %v2225, %v2204
    %v2310 = vpack.c.b16 %v2226, %v2205
    %v2311 = vpack.c.b16 %v2227, %v2206
    %v2312 = vpack.c.b16 %v2228, %v2207
    %v2313 = vpack.c.b16 %v2229, %v2208
    %v2314 = vpack.c.b16 %v2230, %v2209
    %v2315 = vpack.c.b16 %v2231, %v2210
    %v2316 = vpack.c.b16 %v2232, %v2211
    %v2317 = vpack.c.b16 %v2233, %v2212
    %v2318 = vpack.c.b16 %v2234, %v2213
    %v2319 = vpack.c.b16 %v2235, %v2214
    %v2320 = vpack.c.b16 %v2236, %v2215
    %v2321 = vpack.c.b16 %v2237, %v2216
    %v2322 = vpack.c.b16 %v2259, %v2238
    %v2323 = vpack.c.b16 %v2260, %v2239
    %v2324 = vpack.c.b16 %v2261, %v2240
    %v2325 = vpack.c.b16 %v2262, %v2241
    %v2326 = vpack.c.b16 %v2263, %v2242
    %v2327 = vpack.c.b16 %v2264, %v2243
    %v2328 = vpack.c.b16 %v2265, %v2244
    %v2329 = vpack.c.b16 %v2266, %v2245
    %v2330 = vpack.c.b16 %v2267, %v2246
    %v2331 = vpack.c.b16 %v2268, %v2247
    %v2332 = vpack.c.b16 %v2269, %v2248
    %v2333 = vpack.c.b16 %v2270, %v2249
    %v2334 = vpack.c.b16 %v2271, %v2250
    %v2335 = vpack.c.b16 %v2272, %v2251
    %v2336 = vpack.c.b16 %v2273, %v2252
    %v2337 = vpack.c.b16 %v2274, %v2253
    %v2338 = vpack.c.b16 %v2275, %v2254
    %v2339 = vpack.c.b16 %v2276, %v2255
    %v2340 = vpack.c.b16 %v2277, %v2256
    %v2341 = vpack.c.b16 %v2278, %v2257
    %v2342 = vpack.c.b16 %v2279, %v2258
    %vm2385 = vcmask 343040
    %v2387 = vsel %vm2385, %v2021, 0
    %v2390 = vsel %vm1971, %v2322, 0
    %v2393 = vsel %vm1971, %v2323, 0
    %v2396 = vsel %vm1971, %v2324, 0
    %v2399 = vsel %vm1971, %v2325, 0
    %v2402 = vsel %vm1971, %v2326, 0
    %v2405 = vsel %vm1971, %v2327, 0
    %v2408 = vsel %vm1971, %v2328, 0
    %v2411 = vsel %vm1971, %v2329, 0
    %v2414 = vsel %vm1971, %v2330, 0
    %v2417 = vsel %vm1971, %v2331, 0
    %v2420 = vsel %vm1971, %v2332, 0
    %v2423 = vsel %vm1971, %v2333, 0
    %v2426 = vsel %vm1971, %v2334, 0
    %v2429 = vsel %vm1971, %v2335, 0
    %v2432 = vsel %vm1971, %v2336, 0
    %v2435 = vsel %vm1971, %v2337, 0
    %v2438 = vsel %vm1971, %v2338, 0
    %v2441 = vsel %vm1971, %v2339, 0
    %v2444 = vsel %vm1971, %v2340, 0
    %v2447 = vsel %vm1971, %v2341, 0
    %v2450 = vsel %vm1971, %v2342, 0
    %2452 = vmatprep.subr.bf16.mxu0 0
    %2453 = vmatpush1.bf16.msra.mxu0 0
    %2454 = vmatprep.subr.bf16.mxu0 0
    %2455 = vmatpush1.bf16.msra.mxu0 0
    %2456 = vmatprep.subr.bf16.mxu0 0
    %2457 = vmatpush1.bf16.msra.mxu0 0
    %2458 = vmatprep.subr.bf16.mxu0 0
    %2459 = vmatpush1.bf16.msra.mxu0 0
    %2460 = vmatprep.subr.bf16.mxu0 0
    %2461 = vmatpush1.bf16.msra.mxu0 0
    %2462 = vmatprep.subr.bf16.mxu0 %v2393
    %2463 = vmatpush1.bf16.msra.mxu0 %v2390
    %2464 = vmatprep.subr.bf16.mxu0 %v2302
    %2465 = vmatpush1.bf16.msra.mxu0 %v2301
    %2466 = vmatprep.subr.bf16.mxu0 %v2281
    %2467 = vmatpush1.bf16.msra.mxu0 %v2280
    %2468 = vmatprep.subr.bf16.mxu0 0
    %2469 = vmatpush2.bf16.msra.mxu0 0
    %2470 = vmatprep.subr.bf16.mxu0 0
    %2471 = vmatpush2.bf16.msra.mxu0 0
    %2472 = vmatprep.subr.bf16.mxu0 0
    %2473 = vmatpush2.bf16.msra.mxu0 0
    %2474 = vmatprep.subr.bf16.mxu0 0
    %2475 = vmatpush2.bf16.msra.mxu0 0
    %2476 = vmatprep.subr.bf16.mxu0 0
    %2477 = vmatpush2.bf16.msra.mxu0 0
    %2478 = vmatprep.subr.bf16.mxu0 0
    %2479 = vmatpush2.bf16.msra.mxu0 0
    %2480 = vmatprep.subr.bf16.mxu0 0
    %2481 = vmatpush2.bf16.msra.mxu0 0
    %2482 = vmatprep.subr.bf16.mxu0 0
    %2483 = vmatpush2.bf16.msra.mxu0 0
    %2484 = vmatprep.mubr.bf16.mxu0 0
    %2485 = vmatmul.mubr.bf16.gmra.mxu0 %v2387
    %v2486 = vpop.f32.mrf.mxu0
    %v2487 = vadd.f32 0.0, %v2486
    %v2488 = vpop.f32.mrf.mxu0
    %v2489 = vadd.f32 0.0, %v2488
    %v2490 = vpop.f32.mrf.mxu0
    %v2491 = vpop.f32.mrf.mxu0
    %2492 = vdwg.mxu0
    %2493 = vmatprep.subr.bf16.mxu0 0
    %2494 = vmatpush1.bf16.msra.mxu0 0
    %2495 = vmatprep.subr.bf16.mxu0 0
    %2496 = vmatpush1.bf16.msra.mxu0 0
    %2497 = vmatprep.subr.bf16.mxu0 0
    %2498 = vmatpush1.bf16.msra.mxu0 0
    %2499 = vmatprep.subr.bf16.mxu0 0
    %2500 = vmatpush1.bf16.msra.mxu0 0
    %2501 = vmatprep.subr.bf16.mxu0 0
    %2502 = vmatpush1.bf16.msra.mxu0 0
    %2503 = vmatprep.subr.bf16.mxu0 %v2399
    %2504 = vmatpush1.bf16.msra.mxu0 %v2396
    %2505 = vmatprep.subr.bf16.mxu0 %v2304
    %2506 = vmatpush1.bf16.msra.mxu0 %v2303
    %2507 = vmatprep.subr.bf16.mxu0 %v2283
    %2508 = vmatpush1.bf16.msra.mxu0 %v2282
    %2509 = vmatprep.subr.bf16.mxu0 0
    %2510 = vmatpush2.bf16.msra.mxu0 0
    %2511 = vmatprep.subr.bf16.mxu0 0
    %2512 = vmatpush2.bf16.msra.mxu0 0
    %2513 = vmatprep.subr.bf16.mxu0 0
    %2514 = vmatpush2.bf16.msra.mxu0 0
    %2515 = vmatprep.subr.bf16.mxu0 0
    %2516 = vmatpush2.bf16.msra.mxu0 0
    %2517 = vmatprep.subr.bf16.mxu0 0
    %2518 = vmatpush2.bf16.msra.mxu0 0
    %2519 = vmatprep.subr.bf16.mxu0 0
    %2520 = vmatpush2.bf16.msra.mxu0 0
    %2521 = vmatprep.subr.bf16.mxu0 0
    %2522 = vmatpush2.bf16.msra.mxu0 0
    %2523 = vmatprep.subr.bf16.mxu0 0
    %2524 = vmatpush2.bf16.msra.mxu0 0
    %2525 = vmatprep.mubr.bf16.mxu0 0
    %2526 = vmatmul.mubr.bf16.gmra.mxu0 %v2387
    %v2527 = vpop.f32.mrf.mxu0
    %v2528 = vadd.f32 0.0, %v2527
    %v2529 = vpop.f32.mrf.mxu0
    %v2530 = vadd.f32 0.0, %v2529
    %v2531 = vpop.f32.mrf.mxu0
    %v2532 = vpop.f32.mrf.mxu0
    %2533 = vdwg.mxu0
    %2534 = vmatprep.subr.bf16.mxu0 0
    %2535 = vmatpush1.bf16.msra.mxu0 0
    %2536 = vmatprep.subr.bf16.mxu0 0
    %2537 = vmatpush1.bf16.msra.mxu0 0
    %2538 = vmatprep.subr.bf16.mxu0 0
    %2539 = vmatpush1.bf16.msra.mxu0 0
    %2540 = vmatprep.subr.bf16.mxu0 0
    %2541 = vmatpush1.bf16.msra.mxu0 0
    %2542 = vmatprep.subr.bf16.mxu0 0
    %2543 = vmatpush1.bf16.msra.mxu0 0
    %2544 = vmatprep.subr.bf16.mxu0 %v2405
    %2545 = vmatpush1.bf16.msra.mxu0 %v2402
    %2546 = vmatprep.subr.bf16.mxu0 %v2306
    %2547 = vmatpush1.bf16.msra.mxu0 %v2305
    %2548 = vmatprep.subr.bf16.mxu0 %v2285
    %2549 = vmatpush1.bf16.msra.mxu0 %v2284
    %2550 = vmatprep.subr.bf16.mxu0 0
    %2551 = vmatpush2.bf16.msra.mxu0 0
    %2552 = vmatprep.subr.bf16.mxu0 0
    %2553 = vmatpush2.bf16.msra.mxu0 0
    %2554 = vmatprep.subr.bf16.mxu0 0
    %2555 = vmatpush2.bf16.msra.mxu0 0
    %2556 = vmatprep.subr.bf16.mxu0 0
    %2557 = vmatpush2.bf16.msra.mxu0 0
    %2558 = vmatprep.subr.bf16.mxu0 0
    %2559 = vmatpush2.bf16.msra.mxu0 0
    %2560 = vmatprep.subr.bf16.mxu0 0
    %2561 = vmatpush2.bf16.msra.mxu0 0
    %2562 = vmatprep.subr.bf16.mxu0 0
    %2563 = vmatpush2.bf16.msra.mxu0 0
    %2564 = vmatprep.subr.bf16.mxu0 0
    %2565 = vmatpush2.bf16.msra.mxu0 0
    %2566 = vmatprep.mubr.bf16.mxu0 0
    %2567 = vmatmul.mubr.bf16.gmra.mxu0 %v2387
    %v2568 = vpop.f32.mrf.mxu0
    %v2569 = vadd.f32 0.0, %v2568
    %v2570 = vpop.f32.mrf.mxu0
    %v2571 = vadd.f32 0.0, %v2570
    %v2572 = vpop.f32.mrf.mxu0
    %v2573 = vpop.f32.mrf.mxu0
    %2574 = vdwg.mxu0
    %2575 = vmatprep.subr.bf16.mxu0 0
    %2576 = vmatpush1.bf16.msra.mxu0 0
    %2577 = vmatprep.subr.bf16.mxu0 0
    %2578 = vmatpush1.bf16.msra.mxu0 0
    %2579 = vmatprep.subr.bf16.mxu0 0
    %2580 = vmatpush1.bf16.msra.mxu0 0
    %2581 = vmatprep.subr.bf16.mxu0 0
    %2582 = vmatpush1.bf16.msra.mxu0 0
    %2583 = vmatprep.subr.bf16.mxu0 0
    %2584 = vmatpush1.bf16.msra.mxu0 0
    %2585 = vmatprep.subr.bf16.mxu0 %v2411
    %2586 = vmatpush1.bf16.msra.mxu0 %v2408
    %2587 = vmatprep.subr.bf16.mxu0 %v2308
    %2588 = vmatpush1.bf16.msra.mxu0 %v2307
    %2589 = vmatprep.subr.bf16.mxu0 %v2287
    %2590 = vmatpush1.bf16.msra.mxu0 %v2286
    %2591 = vmatprep.subr.bf16.mxu0 0
    %2592 = vmatpush2.bf16.msra.mxu0 0
    %2593 = vmatprep.subr.bf16.mxu0 0
    %2594 = vmatpush2.bf16.msra.mxu0 0
    %2595 = vmatprep.subr.bf16.mxu0 0
    %2596 = vmatpush2.bf16.msra.mxu0 0
    %2597 = vmatprep.subr.bf16.mxu0 0
    %2598 = vmatpush2.bf16.msra.mxu0 0
    %2599 = vmatprep.subr.bf16.mxu0 0
    %2600 = vmatpush2.bf16.msra.mxu0 0
    %2601 = vmatprep.subr.bf16.mxu0 0
    %2602 = vmatpush2.bf16.msra.mxu0 0
    %2603 = vmatprep.subr.bf16.mxu0 0
    %2604 = vmatpush2.bf16.msra.mxu0 0
    %2605 = vmatprep.subr.bf16.mxu0 0
    %2606 = vmatpush2.bf16.msra.mxu0 0
    %2607 = vmatprep.mubr.bf16.mxu0 0
    %2608 = vmatmul.mubr.bf16.gmra.mxu0 %v2387
    %v2609 = vpop.f32.mrf.mxu0
    %v2610 = vadd.f32 0.0, %v2609
    %v2611 = vpop.f32.mrf.mxu0
    %v2612 = vadd.f32 0.0, %v2611
    %v2613 = vpop.f32.mrf.mxu0
    %v2614 = vpop.f32.mrf.mxu0
    %2615 = vdwg.mxu0
    %2616 = vmatprep.subr.bf16.mxu0 0
    %2617 = vmatpush1.bf16.msra.mxu0 0
    %2618 = vmatprep.subr.bf16.mxu0 0
    %2619 = vmatpush1.bf16.msra.mxu0 0
    %2620 = vmatprep.subr.bf16.mxu0 0
    %2621 = vmatpush1.bf16.msra.mxu0 0
    %2622 = vmatprep.subr.bf16.mxu0 0
    %2623 = vmatpush1.bf16.msra.mxu0 0
    %2624 = vmatprep.subr.bf16.mxu0 0
    %2625 = vmatpush1.bf16.msra.mxu0 0
    %2626 = vmatprep.subr.bf16.mxu0 %v2417
    %2627 = vmatpush1.bf16.msra.mxu0 %v2414
    %2628 = vmatprep.subr.bf16.mxu0 %v2310
    %2629 = vmatpush1.bf16.msra.mxu0 %v2309
    %2630 = vmatprep.subr.bf16.mxu0 %v2289
    %2631 = vmatpush1.bf16.msra.mxu0 %v2288
    %2632 = vmatprep.subr.bf16.mxu0 0
    %2633 = vmatpush2.bf16.msra.mxu0 0
    %2634 = vmatprep.subr.bf16.mxu0 0
    %2635 = vmatpush2.bf16.msra.mxu0 0
    %2636 = vmatprep.subr.bf16.mxu0 0
    %2637 = vmatpush2.bf16.msra.mxu0 0
    %2638 = vmatprep.subr.bf16.mxu0 0
    %2639 = vmatpush2.bf16.msra.mxu0 0
    %2640 = vmatprep.subr.bf16.mxu0 0
    %2641 = vmatpush2.bf16.msra.mxu0 0
    %2642 = vmatprep.subr.bf16.mxu0 0
    %2643 = vmatpush2.bf16.msra.mxu0 0
    %2644 = vmatprep.subr.bf16.mxu0 0
    %2645 = vmatpush2.bf16.msra.mxu0 0
    %2646 = vmatprep.subr.bf16.mxu0 0
    %2647 = vmatpush2.bf16.msra.mxu0 0
    %2648 = vmatprep.mubr.bf16.mxu0 0
    %2649 = vmatmul.mubr.bf16.gmra.mxu0 %v2387
    %v2650 = vpop.f32.mrf.mxu0
    %v2651 = vadd.f32 0.0, %v2650
    %v2652 = vpop.f32.mrf.mxu0
    %v2653 = vadd.f32 0.0, %v2652
    %v2654 = vpop.f32.mrf.mxu0
    %v2655 = vpop.f32.mrf.mxu0
    %2656 = vdwg.mxu0
    %2657 = vmatprep.subr.bf16.mxu0 0
    %2658 = vmatpush1.bf16.msra.mxu0 0
    %2659 = vmatprep.subr.bf16.mxu0 0
    %2660 = vmatpush1.bf16.msra.mxu0 0
    %2661 = vmatprep.subr.bf16.mxu0 0
    %2662 = vmatpush1.bf16.msra.mxu0 0
    %2663 = vmatprep.subr.bf16.mxu0 0
    %2664 = vmatpush1.bf16.msra.mxu0 0
    %2665 = vmatprep.subr.bf16.mxu0 0
    %2666 = vmatpush1.bf16.msra.mxu0 0
    %2667 = vmatprep.subr.bf16.mxu0 %v2423
    %2668 = vmatpush1.bf16.msra.mxu0 %v2420
    %2669 = vmatprep.subr.bf16.mxu0 %v2312
    %2670 = vmatpush1.bf16.msra.mxu0 %v2311
    %2671 = vmatprep.subr.bf16.mxu0 %v2291
    %2672 = vmatpush1.bf16.msra.mxu0 %v2290
    %2673 = vmatprep.subr.bf16.mxu0 0
    %2674 = vmatpush2.bf16.msra.mxu0 0
    %2675 = vmatprep.subr.bf16.mxu0 0
    %2676 = vmatpush2.bf16.msra.mxu0 0
    %2677 = vmatprep.subr.bf16.mxu0 0
    %2678 = vmatpush2.bf16.msra.mxu0 0
    %2679 = vmatprep.subr.bf16.mxu0 0
    %2680 = vmatpush2.bf16.msra.mxu0 0
    %2681 = vmatprep.subr.bf16.mxu0 0
    %2682 = vmatpush2.bf16.msra.mxu0 0
    %2683 = vmatprep.subr.bf16.mxu0 0
    %2684 = vmatpush2.bf16.msra.mxu0 0
    %2685 = vmatprep.subr.bf16.mxu0 0
    %2686 = vmatpush2.bf16.msra.mxu0 0
    %2687 = vmatprep.subr.bf16.mxu0 0
    %2688 = vmatpush2.bf16.msra.mxu0 0
    %2689 = vmatprep.mubr.bf16.mxu0 0
    %2690 = vmatmul.mubr.bf16.gmra.mxu0 %v2387
    %v2691 = vpop.f32.mrf.mxu0
    %v2692 = vadd.f32 0.0, %v2691
    %v2693 = vpop.f32.mrf.mxu0
    %v2694 = vadd.f32 0.0, %v2693
    %v2695 = vpop.f32.mrf.mxu0
    %v2696 = vpop.f32.mrf.mxu0
    %2697 = vdwg.mxu0
    %2698 = vmatprep.subr.bf16.mxu0 0
    %2699 = vmatpush1.bf16.msra.mxu0 0
    %2700 = vmatprep.subr.bf16.mxu0 0
    %2701 = vmatpush1.bf16.msra.mxu0 0
    %2702 = vmatprep.subr.bf16.mxu0 0
    %2703 = vmatpush1.bf16.msra.mxu0 0
    %2704 = vmatprep.subr.bf16.mxu0 0
    %2705 = vmatpush1.bf16.msra.mxu0 0
    %2706 = vmatprep.subr.bf16.mxu0 0
    %2707 = vmatpush1.bf16.msra.mxu0 0
    %2708 = vmatprep.subr.bf16.mxu0 %v2429
    %2709 = vmatpush1.bf16.msra.mxu0 %v2426
    %2710 = vmatprep.subr.bf16.mxu0 %v2314
    %2711 = vmatpush1.bf16.msra.mxu0 %v2313
    %2712 = vmatprep.subr.bf16.mxu0 %v2293
    %2713 = vmatpush1.bf16.msra.mxu0 %v2292
    %2714 = vmatprep.subr.bf16.mxu0 0
    %2715 = vmatpush2.bf16.msra.mxu0 0
    %2716 = vmatprep.subr.bf16.mxu0 0
    %2717 = vmatpush2.bf16.msra.mxu0 0
    %2718 = vmatprep.subr.bf16.mxu0 0
    %2719 = vmatpush2.bf16.msra.mxu0 0
    %2720 = vmatprep.subr.bf16.mxu0 0
    %2721 = vmatpush2.bf16.msra.mxu0 0
    %2722 = vmatprep.subr.bf16.mxu0 0
    %2723 = vmatpush2.bf16.msra.mxu0 0
    %2724 = vmatprep.subr.bf16.mxu0 0
    %2725 = vmatpush2.bf16.msra.mxu0 0
    %2726 = vmatprep.subr.bf16.mxu0 0
    %2727 = vmatpush2.bf16.msra.mxu0 0
    %2728 = vmatprep.subr.bf16.mxu0 0
    %2729 = vmatpush2.bf16.msra.mxu0 0
    %2730 = vmatprep.mubr.bf16.mxu0 0
    %2731 = vmatmul.mubr.bf16.gmra.mxu0 %v2387
    %v2732 = vpop.f32.mrf.mxu0
    %v2733 = vadd.f32 0.0, %v2732
    %v2734 = vpop.f32.mrf.mxu0
    %v2735 = vadd.f32 0.0, %v2734
    %v2736 = vpop.f32.mrf.mxu0
    %v2737 = vpop.f32.mrf.mxu0
    %2738 = vdwg.mxu0
    %2739 = vmatprep.subr.bf16.mxu0 0
    %2740 = vmatpush1.bf16.msra.mxu0 0
    %2741 = vmatprep.subr.bf16.mxu0 0
    %2742 = vmatpush1.bf16.msra.mxu0 0
    %2743 = vmatprep.subr.bf16.mxu0 0
    %2744 = vmatpush1.bf16.msra.mxu0 0
    %2745 = vmatprep.subr.bf16.mxu0 0
    %2746 = vmatpush1.bf16.msra.mxu0 0
    %2747 = vmatprep.subr.bf16.mxu0 0
    %2748 = vmatpush1.bf16.msra.mxu0 0
    %2749 = vmatprep.subr.bf16.mxu0 %v2435
    %2750 = vmatpush1.bf16.msra.mxu0 %v2432
    %2751 = vmatprep.subr.bf16.mxu0 %v2316
    %2752 = vmatpush1.bf16.msra.mxu0 %v2315
    %2753 = vmatprep.subr.bf16.mxu0 %v2295
    %2754 = vmatpush1.bf16.msra.mxu0 %v2294
    %2755 = vmatprep.subr.bf16.mxu0 0
    %2756 = vmatpush2.bf16.msra.mxu0 0
    %2757 = vmatprep.subr.bf16.mxu0 0
    %2758 = vmatpush2.bf16.msra.mxu0 0
    %2759 = vmatprep.subr.bf16.mxu0 0
    %2760 = vmatpush2.bf16.msra.mxu0 0
    %2761 = vmatprep.subr.bf16.mxu0 0
    %2762 = vmatpush2.bf16.msra.mxu0 0
    %2763 = vmatprep.subr.bf16.mxu0 0
    %2764 = vmatpush2.bf16.msra.mxu0 0
    %2765 = vmatprep.subr.bf16.mxu0 0
    %2766 = vmatpush2.bf16.msra.mxu0 0
    %2767 = vmatprep.subr.bf16.mxu0 0
    %2768 = vmatpush2.bf16.msra.mxu0 0
    %2769 = vmatprep.subr.bf16.mxu0 0
    %2770 = vmatpush2.bf16.msra.mxu0 0
    %2771 = vmatprep.mubr.bf16.mxu0 0
    %2772 = vmatmul.mubr.bf16.gmra.mxu0 %v2387
    %v2773 = vpop.f32.mrf.mxu0
    %v2774 = vadd.f32 0.0, %v2773
    %v2775 = vpop.f32.mrf.mxu0
    %v2776 = vadd.f32 0.0, %v2775
    %v2777 = vpop.f32.mrf.mxu0
    %v2778 = vpop.f32.mrf.mxu0
    %2779 = vdwg.mxu0
    %2780 = vmatprep.subr.bf16.mxu0 0
    %2781 = vmatpush1.bf16.msra.mxu0 0
    %2782 = vmatprep.subr.bf16.mxu0 0
    %2783 = vmatpush1.bf16.msra.mxu0 0
    %2784 = vmatprep.subr.bf16.mxu0 0
    %2785 = vmatpush1.bf16.msra.mxu0 0
    %2786 = vmatprep.subr.bf16.mxu0 0
    %2787 = vmatpush1.bf16.msra.mxu0 0
    %2788 = vmatprep.subr.bf16.mxu0 0
    %2789 = vmatpush1.bf16.msra.mxu0 0
    %2790 = vmatprep.subr.bf16.mxu0 %v2441
    %2791 = vmatpush1.bf16.msra.mxu0 %v2438
    %2792 = vmatprep.subr.bf16.mxu0 %v2318
    %2793 = vmatpush1.bf16.msra.mxu0 %v2317
    %2794 = vmatprep.subr.bf16.mxu0 %v2297
    %2795 = vmatpush1.bf16.msra.mxu0 %v2296
    %2796 = vmatprep.subr.bf16.mxu0 0
    %2797 = vmatpush2.bf16.msra.mxu0 0
    %2798 = vmatprep.subr.bf16.mxu0 0
    %2799 = vmatpush2.bf16.msra.mxu0 0
    %2800 = vmatprep.subr.bf16.mxu0 0
    %2801 = vmatpush2.bf16.msra.mxu0 0
    %2802 = vmatprep.subr.bf16.mxu0 0
    %2803 = vmatpush2.bf16.msra.mxu0 0
    %2804 = vmatprep.subr.bf16.mxu0 0
    %2805 = vmatpush2.bf16.msra.mxu0 0
    %2806 = vmatprep.subr.bf16.mxu0 0
    %2807 = vmatpush2.bf16.msra.mxu0 0
    %2808 = vmatprep.subr.bf16.mxu0 0
    %2809 = vmatpush2.bf16.msra.mxu0 0
    %2810 = vmatprep.subr.bf16.mxu0 0
    %2811 = vmatpush2.bf16.msra.mxu0 0
    %2812 = vmatprep.mubr.bf16.mxu0 0
    %2813 = vmatmul.mubr.bf16.gmra.mxu0 %v2387
    %v2814 = vpop.f32.mrf.mxu0
    %v2815 = vadd.f32 0.0, %v2814
    %v2816 = vpop.f32.mrf.mxu0
    %v2817 = vadd.f32 0.0, %v2816
    %v2818 = vpop.f32.mrf.mxu0
    %v2819 = vpop.f32.mrf.mxu0
    %2820 = vdwg.mxu0
    %2821 = vmatprep.subr.bf16.mxu0 0
    %2822 = vmatpush1.bf16.msra.mxu0 0
    %2823 = vmatprep.subr.bf16.mxu0 0
    %2824 = vmatpush1.bf16.msra.mxu0 0
    %2825 = vmatprep.subr.bf16.mxu0 0
    %2826 = vmatpush1.bf16.msra.mxu0 0
    %2827 = vmatprep.subr.bf16.mxu0 0
    %2828 = vmatpush1.bf16.msra.mxu0 0
    %2829 = vmatprep.subr.bf16.mxu0 0
    %2830 = vmatpush1.bf16.msra.mxu0 0
    %2831 = vmatprep.subr.bf16.mxu0 %v2447
    %2832 = vmatpush1.bf16.msra.mxu0 %v2444
    %2833 = vmatprep.subr.bf16.mxu0 %v2320
    %2834 = vmatpush1.bf16.msra.mxu0 %v2319
    %2835 = vmatprep.subr.bf16.mxu0 %v2299
    %2836 = vmatpush1.bf16.msra.mxu0 %v2298
    %2837 = vmatprep.subr.bf16.mxu0 0
    %2838 = vmatpush2.bf16.msra.mxu0 0
    %2839 = vmatprep.subr.bf16.mxu0 0
    %2840 = vmatpush2.bf16.msra.mxu0 0
    %2841 = vmatprep.subr.bf16.mxu0 0
    %2842 = vmatpush2.bf16.msra.mxu0 0
    %2843 = vmatprep.subr.bf16.mxu0 0
    %2844 = vmatpush2.bf16.msra.mxu0 0
    %2845 = vmatprep.subr.bf16.mxu0 0
    %2846 = vmatpush2.bf16.msra.mxu0 0
    %2847 = vmatprep.subr.bf16.mxu0 0
    %2848 = vmatpush2.bf16.msra.mxu0 0
    %2849 = vmatprep.subr.bf16.mxu0 0
    %2850 = vmatpush2.bf16.msra.mxu0 0
    %2851 = vmatprep.subr.bf16.mxu0 0
    %2852 = vmatpush2.bf16.msra.mxu0 0
    %2853 = vmatprep.mubr.bf16.mxu0 0
    %2854 = vmatmul.mubr.bf16.gmra.mxu0 %v2387
    %v2855 = vpop.f32.mrf.mxu0
    %v2856 = vadd.f32 0.0, %v2855
    %v2857 = vpop.f32.mrf.mxu0
    %v2858 = vadd.f32 0.0, %v2857
    %v2859 = vpop.f32.mrf.mxu0
    %v2860 = vpop.f32.mrf.mxu0
    %2861 = vdwg.mxu0
    %2862 = vmatprep.subr.bf16.mxu0 0
    %2863 = vmatpush1.bf16.msra.mxu0 0
    %2864 = vmatprep.subr.bf16.mxu0 0
    %2865 = vmatpush1.bf16.msra.mxu0 0
    %2866 = vmatprep.subr.bf16.mxu0 0
    %2867 = vmatpush1.bf16.msra.mxu0 0
    %2868 = vmatprep.subr.bf16.mxu0 0
    %2869 = vmatpush1.bf16.msra.mxu0 0
    %2870 = vmatprep.subr.bf16.mxu0 0
    %2871 = vmatpush1.bf16.msra.mxu0 0
    %2872 = vmatprep.subr.bf16.mxu0 0
    %2873 = vmatpush1.bf16.msra.mxu0 %v2450
    %2874 = vmatprep.subr.bf16.mxu0 0
    %2875 = vmatpush1.bf16.msra.mxu0 %v2321
    %2876 = vmatprep.subr.bf16.mxu0 0
    %2877 = vmatpush1.bf16.msra.mxu0 %v2300
    %2878 = vmatprep.subr.bf16.mxu0 0
    %2879 = vmatpush2.bf16.msra.mxu0 0
    %2880 = vmatprep.subr.bf16.mxu0 0
    %2881 = vmatpush2.bf16.msra.mxu0 0
    %2882 = vmatprep.subr.bf16.mxu0 0
    %2883 = vmatpush2.bf16.msra.mxu0 0
    %2884 = vmatprep.subr.bf16.mxu0 0
    %2885 = vmatpush2.bf16.msra.mxu0 0
    %2886 = vmatprep.subr.bf16.mxu0 0
    %2887 = vmatpush2.bf16.msra.mxu0 0
    %2888 = vmatprep.subr.bf16.mxu0 0
    %2889 = vmatpush2.bf16.msra.mxu0 0
    %2890 = vmatprep.subr.bf16.mxu0 0
    %2891 = vmatpush2.bf16.msra.mxu0 0
    %2892 = vmatprep.subr.bf16.mxu0 0
    %2893 = vmatpush2.bf16.msra.mxu0 0
    %2894 = vmatprep.mubr.bf16.mxu0 0
    %2895 = vmatmul.mubr.bf16.gmra.mxu0 %v2387
    %v2896 = vpop.f32.mrf.mxu0
    %v2897 = vadd.f32 0.0, %v2896
    %v2898 = vpop.f32.mrf.mxu0
    %v2899 = vpop.f32.mrf.mxu0
    %v2900 = vpop.f32.mrf.mxu0
    %2901 = vdwg.mxu0
    %v2923 = vcombine.low %v2487, %v2489
    %v2924 = vcombine.low %v2528, %v2530
    %v2926 = vunpack.c.l.s4 1983009808
    %v2927 = vunpack.c.0.s8 %v2926
    %v2928 = vlaneseq
    %v2929 = vshrl.u32 %v2928, 7
    %v2930 = vsub.s32 %v2927, %v2929
    %v2931 = vrot.slane %v2923, %v2930
    %v2933 = vunpack.c.l.s4 1983009808
    %v2934 = vunpack.c.0.s8 %v2933
    %v2935 = vlaneseq
    %v2936 = vshrl.u32 %v2935, 7
    %v2937 = vsub.s32 %v2934, %v2936
    %v2938 = vrot.slane %v2924, %v2937
    %v2939 = vcombine.low %v2931, %v2938
    %v2940 = vcombine.low %v2569, %v2571
    %v2941 = vcombine.low %v2610, %v2612
    %v2943 = vunpack.c.l.s4 1983009808
    %v2944 = vunpack.c.0.s8 %v2943
    %v2945 = vlaneseq
    %v2946 = vshrl.u32 %v2945, 7
    %v2947 = vsub.s32 %v2944, %v2946
    %v2948 = vrot.slane %v2940, %v2947
    %v2950 = vunpack.c.l.s4 1983009808
    %v2951 = vunpack.c.0.s8 %v2950
    %v2952 = vlaneseq
    %v2953 = vshrl.u32 %v2952, 7
    %v2954 = vsub.s32 %v2951, %v2953
    %v2955 = vrot.slane %v2941, %v2954
    %v2956 = vcombine.low %v2948, %v2955
    %v2957 = vcombine.low %v2651, %v2653
    %v2958 = vcombine.low %v2692, %v2694
    %v2960 = vunpack.c.l.s4 1983009808
    %v2961 = vunpack.c.0.s8 %v2960
    %v2962 = vlaneseq
    %v2963 = vshrl.u32 %v2962, 7
    %v2964 = vsub.s32 %v2961, %v2963
    %v2965 = vrot.slane %v2957, %v2964
    %v2967 = vunpack.c.l.s4 1983009808
    %v2968 = vunpack.c.0.s8 %v2967
    %v2969 = vlaneseq
    %v2970 = vshrl.u32 %v2969, 7
    %v2971 = vsub.s32 %v2968, %v2970
    %v2972 = vrot.slane %v2958, %v2971
    %v2973 = vcombine.low %v2965, %v2972
    %v2974 = vcombine.low %v2733, %v2735
    %v2975 = vcombine.low %v2774, %v2776
    %v2977 = vunpack.c.l.s4 1983009808
    %v2978 = vunpack.c.0.s8 %v2977
    %v2979 = vlaneseq
    %v2980 = vshrl.u32 %v2979, 7
    %v2981 = vsub.s32 %v2978, %v2980
    %v2982 = vrot.slane %v2974, %v2981
    %v2984 = vunpack.c.l.s4 1983009808
    %v2985 = vunpack.c.0.s8 %v2984
    %v2986 = vlaneseq
    %v2987 = vshrl.u32 %v2986, 7
    %v2988 = vsub.s32 %v2985, %v2987
    %v2989 = vrot.slane %v2975, %v2988
    %v2990 = vcombine.low %v2982, %v2989
    %v2991 = vcombine.low %v2815, %v2817
    %v2992 = vcombine.low %v2856, %v2858
    %v2994 = vunpack.c.l.s4 1983009808
    %v2995 = vunpack.c.0.s8 %v2994
    %v2996 = vlaneseq
    %v2997 = vshrl.u32 %v2996, 7
    %v2998 = vsub.s32 %v2995, %v2997
    %v2999 = vrot.slane %v2991, %v2998
    %v3001 = vunpack.c.l.s4 1983009808
    %v3002 = vunpack.c.0.s8 %v3001
    %v3003 = vlaneseq
    %v3004 = vshrl.u32 %v3003, 7
    %v3005 = vsub.s32 %v3002, %v3004
    %v3006 = vrot.slane %v2992, %v3005
    %v3007 = vcombine.low %v2999, %v3006
    %v3009 = vunpack.c.l.s4 1983009808
    %v3010 = vunpack.c.0.s8 %v3009
    %v3011 = vlaneseq
    %v3012 = vshrl.u32 %v3011, 7
    %v3013 = vsub.s32 %v3010, %v3012
    %v3014 = vrot.slane %v2897, %v3013
    %v3021 = vmul.f32 %v28, %v2939
    %v3022 = vmul.f32 %v29, %v2956
    %v3023 = vmul.f32 %v30, %v2973
    %v3024 = vmul.f32 %v31, %v2990
    %v3025 = vmul.f32 %v32, %v3007
    %v3026 = vmul.f32 %v33, %v3014
    %v3033 = vcombine.high %v3021, %v3021
    %v3035 = vunpack.c.l.s4 1983009808
    %v3036 = vunpack.c.0.s8 %v3035
    %v3037 = vlaneseq
    %v3038 = vshrl.u32 %v3037, 7
    %v3039 = vsub.s32 %v3036, %v3038
    %v3040 = vrot.slane %v3021, %v3039
    %v3042 = vunpack.c.l.s4 1983009808
    %v3043 = vunpack.c.0.s8 %v3042
    %v3044 = vlaneseq
    %v3045 = vshrl.u32 %v3044, 7
    %v3046 = vsub.s32 %v3043, %v3045
    %v3047 = vrot.slane %v3033, %v3046
    %v3048 = vcombine.high %v3040, %v3040
    %v3049 = vcombine.high %v3047, %v3047
    %v3050 = vcombine.high %v3022, %v3022
    %v3052 = vunpack.c.l.s4 1983009808
    %v3053 = vunpack.c.0.s8 %v3052
    %v3054 = vlaneseq
    %v3055 = vshrl.u32 %v3054, 7
    %v3056 = vsub.s32 %v3053, %v3055
    %v3057 = vrot.slane %v3022, %v3056
    %v3059 = vunpack.c.l.s4 1983009808
    %v3060 = vunpack.c.0.s8 %v3059
    %v3061 = vlaneseq
    %v3062 = vshrl.u32 %v3061, 7
    %v3063 = vsub.s32 %v3060, %v3062
    %v3064 = vrot.slane %v3050, %v3063
    %v3065 = vcombine.high %v3057, %v3057
    %v3066 = vcombine.high %v3064, %v3064
    %v3067 = vcombine.high %v3023, %v3023
    %v3069 = vunpack.c.l.s4 1983009808
    %v3070 = vunpack.c.0.s8 %v3069
    %v3071 = vlaneseq
    %v3072 = vshrl.u32 %v3071, 7
    %v3073 = vsub.s32 %v3070, %v3072
    %v3074 = vrot.slane %v3023, %v3073
    %v3076 = vunpack.c.l.s4 1983009808
    %v3077 = vunpack.c.0.s8 %v3076
    %v3078 = vlaneseq
    %v3079 = vshrl.u32 %v3078, 7
    %v3080 = vsub.s32 %v3077, %v3079
    %v3081 = vrot.slane %v3067, %v3080
    %v3082 = vcombine.high %v3074, %v3074
    %v3083 = vcombine.high %v3081, %v3081
    %v3084 = vcombine.high %v3024, %v3024
    %v3086 = vunpack.c.l.s4 1983009808
    %v3087 = vunpack.c.0.s8 %v3086
    %v3088 = vlaneseq
    %v3089 = vshrl.u32 %v3088, 7
    %v3090 = vsub.s32 %v3087, %v3089
    %v3091 = vrot.slane %v3024, %v3090
    %v3093 = vunpack.c.l.s4 1983009808
    %v3094 = vunpack.c.0.s8 %v3093
    %v3095 = vlaneseq
    %v3096 = vshrl.u32 %v3095, 7
    %v3097 = vsub.s32 %v3094, %v3096
    %v3098 = vrot.slane %v3084, %v3097
    %v3099 = vcombine.high %v3091, %v3091
    %v3100 = vcombine.high %v3098, %v3098
    %v3101 = vcombine.high %v3025, %v3025
    %v3103 = vunpack.c.l.s4 1983009808
    %v3104 = vunpack.c.0.s8 %v3103
    %v3105 = vlaneseq
    %v3106 = vshrl.u32 %v3105, 7
    %v3107 = vsub.s32 %v3104, %v3106
    %v3108 = vrot.slane %v3025, %v3107
    %v3110 = vunpack.c.l.s4 1983009808
    %v3111 = vunpack.c.0.s8 %v3110
    %v3112 = vlaneseq
    %v3113 = vshrl.u32 %v3112, 7
    %v3114 = vsub.s32 %v3111, %v3113
    %v3115 = vrot.slane %v3101, %v3114
    %v3116 = vcombine.high %v3108, %v3108
    %v3117 = vcombine.high %v3115, %v3115
    %v3119 = vunpack.c.l.s4 1983009808
    %v3120 = vunpack.c.0.s8 %v3119
    %v3121 = vlaneseq
    %v3122 = vshrl.u32 %v3121, 7
    %v3123 = vsub.s32 %v3120, %v3122
    %v3124 = vrot.slane %v3026, %v3123
    %v3146 = vpack.c.bf16 %v3040, %v3040
    %v3147 = vpack.c.bf16 %v3048, %v3048
    %v3148 = vpack.c.bf16 %v3047, %v3047
    %v3149 = vpack.c.bf16 %v3049, %v3049
    %v3150 = vpack.c.bf16 %v3057, %v3057
    %v3151 = vpack.c.bf16 %v3065, %v3065
    %v3152 = vpack.c.bf16 %v3064, %v3064
    %v3153 = vpack.c.bf16 %v3066, %v3066
    %v3154 = vpack.c.bf16 %v3074, %v3074
    %v3155 = vpack.c.bf16 %v3082, %v3082
    %v3156 = vpack.c.bf16 %v3081, %v3081
    %v3157 = vpack.c.bf16 %v3083, %v3083
    %v3158 = vpack.c.bf16 %v3091, %v3091
    %v3159 = vpack.c.bf16 %v3099, %v3099
    %v3160 = vpack.c.bf16 %v3098, %v3098
    %v3161 = vpack.c.bf16 %v3100, %v3100
    %v3162 = vpack.c.bf16 %v3108, %v3108
    %v3163 = vpack.c.bf16 %v3116, %v3116
    %v3164 = vpack.c.bf16 %v3115, %v3115
    %v3165 = vpack.c.bf16 %v3117, %v3117
    %v3166 = vpack.c.bf16 %v3124, %v3124
    %v3167 = vld [vmem:[%s4] sm:$0xf]
    %v3168 = vld [vmem:[%s4 + $0x4] sm:$0xf]
    %v3169 = vld [vmem:[%s4 + $0x8] sm:$0xf]
    %v3170 = vld [vmem:[%s4 + $0xc] sm:$0xf]
    %v3171 = vld [vmem:[%s4 + $0x10] sm:$0xf]
    %v3172 = vld [vmem:[%s4 + $0x14] sm:$0xf]
    %v3173 = vld [vmem:[%s4 + $0x18] sm:$0xf]
    %v3174 = vld [vmem:[%s4 + $0x1c] sm:$0xf]
    %v3175 = vld [vmem:[%s4 + $0x20] sm:$0xf]
    %v3176 = vld [vmem:[%s4 + $0x24] sm:$0xf]
    %v3177 = vld [vmem:[%s4 + $0x28] sm:$0xf]
    %v3178 = vld [vmem:[%s4 + $0x2c] sm:$0xf]
    %v3179 = vld [vmem:[%s4 + $0x30] sm:$0xf]
    %v3180 = vld [vmem:[%s4 + $0x34] sm:$0xf]
    %v3181 = vld [vmem:[%s4 + $0x38] sm:$0xf]
    %v3182 = vld [vmem:[%s4 + $0x3c] sm:$0xf]
    %v3183 = vld [vmem:[%s4 + $0x40] sm:$0xf]
    %v3184 = vld [vmem:[%s4 + $0x44] sm:$0xf]
    %v3185 = vld [vmem:[%s4 + $0x48] sm:$0xf]
    %v3186 = vld [vmem:[%s4 + $0x4c] sm:$0xf]
    %v3187 = vld [vmem:[%s4 + $0x50] sm:$0xf]
    %v3188 = vld [vmem:[%s4 + $0x54] sm:$0xf]
    %v3189 = vld [vmem:[%s4 + $0x58] sm:$0xf]
    %v3190 = vld [vmem:[%s4 + $0x5c] sm:$0xf]
    %v3191 = vld [vmem:[%s4 + $0x60] sm:$0xf]
    %v3192 = vld [vmem:[%s4 + $0x64] sm:$0xf]
    %v3193 = vld [vmem:[%s4 + $0x68] sm:$0xf]
    %v3194 = vld [vmem:[%s4 + $0x6c] sm:$0xf]
    %v3195 = vld [vmem:[%s4 + $0x70] sm:$0xf]
    %v3196 = vld [vmem:[%s4 + $0x74] sm:$0xf]
    %v3197 = vld [vmem:[%s4 + $0x78] sm:$0xf]
    %v3198 = vld [vmem:[%s4 + $0x7c] sm:$0xf]
    %v3199 = vld [vmem:[%s4 + $0x80] sm:$0xf]
    %v3200 = vld [vmem:[%s4 + $0x84] sm:$0xf]
    %v3201 = vld [vmem:[%s4 + $0x88] sm:$0xf]
    %v3202 = vld [vmem:[%s4 + $0x8c] sm:$0xf]
    %v3203 = vld [vmem:[%s4 + $0x90] sm:$0xf]
    %v3204 = vld [vmem:[%s4 + $0x94] sm:$0xf]
    %v3205 = vld [vmem:[%s4 + $0x98] sm:$0xf]
    %v3206 = vld [vmem:[%s4 + $0x9c] sm:$0xf]
    %v3207 = vld [vmem:[%s4 + $0xa0] sm:$0xf]
    %v3208 = vld [vmem:[%s4 + $0xa4] sm:$0xf]
    %v3209 = vld [vmem:[%s4 + $0xa8] sm:$0xf]
    %v3210 = vld [vmem:[%s4 + $0xac] sm:$0xf]
    %v3211 = vld [vmem:[%s4 + $0xb0] sm:$0xf]
    %v3212 = vld [vmem:[%s4 + $0xb4] sm:$0xf]
    %v3213 = vld [vmem:[%s4 + $0xb8] sm:$0xf]
    %v3214 = vld [vmem:[%s4 + $0xbc] sm:$0xf]
    %v3215 = vld [vmem:[%s4 + $0xc0] sm:$0xf]
    %v3216 = vld [vmem:[%s4 + $0xc4] sm:$0xf]
    %v3217 = vld [vmem:[%s4 + $0xc8] sm:$0xf]
    %v3218 = vld [vmem:[%s4 + $0xcc] sm:$0xf]
    %v3219 = vld [vmem:[%s4 + $0xd0] sm:$0xf]
    %v3220 = vld [vmem:[%s4 + $0xd4] sm:$0xf]
    %v3221 = vld [vmem:[%s4 + $0xd8] sm:$0xf]
    %v3222 = vld [vmem:[%s4 + $0xdc] sm:$0xf]
    %v3223 = vld [vmem:[%s4 + $0xe0] sm:$0xf]
    %v3224 = vld [vmem:[%s4 + $0xe4] sm:$0xf]
    %v3225 = vld [vmem:[%s4 + $0xe8] sm:$0xf]
    %v3226 = vld [vmem:[%s4 + $0xec] sm:$0xf]
    %v3227 = vld [vmem:[%s4 + $0xf0] sm:$0xf]
    %v3228 = vld [vmem:[%s4 + $0xf4] sm:$0xf]
    %v3229 = vld [vmem:[%s4 + $0xf8] sm:$0xf]
    %v3230 = vld [vmem:[%s4 + $0xfc] sm:$0xf]
    %v3231 = vld [vmem:[%s4 + $0x100] sm:$0xf]
    %v3232 = vld [vmem:[%s4 + $0x104] sm:$0xf]
    %v3233 = vld [vmem:[%s4 + $0x108] sm:$0xf]
    %v3234 = vld [vmem:[%s4 + $0x10c] sm:$0xf]
    %v3235 = vld [vmem:[%s4 + $0x110] sm:$0xf]
    %v3236 = vld [vmem:[%s4 + $0x114] sm:$0xf]
    %v3237 = vld [vmem:[%s4 + $0x118] sm:$0xf]
    %v3238 = vld [vmem:[%s4 + $0x11c] sm:$0xf]
    %v3239 = vld [vmem:[%s4 + $0x120] sm:$0xf]
    %v3240 = vld [vmem:[%s4 + $0x124] sm:$0xf]
    %v3241 = vld [vmem:[%s4 + $0x128] sm:$0xf]
    %v3242 = vld [vmem:[%s4 + $0x12c] sm:$0xf]
    %v3243 = vld [vmem:[%s4 + $0x130] sm:$0xf]
    %v3244 = vld [vmem:[%s4 + $0x134] sm:$0xf]
    %v3245 = vld [vmem:[%s4 + $0x138] sm:$0xf]
    %v3246 = vld [vmem:[%s4 + $0x13c] sm:$0xf]
    %v3247 = vld [vmem:[%s4 + $0x140] sm:$0xf]
    %v3248 = vld [vmem:[%s4 + $0x144] sm:$0xf]
    %v3249 = vld [vmem:[%s4 + $0x148] sm:$0xf]
    %v3250 = vld [vmem:[%s4 + $0x14c] sm:$0xf]
    %v3251 = vld [vmem:[%s4 + $0x150] sm:$0xf]
    %v3252 = vld [vmem:[%s4 + $0x154] sm:$0xf]
    %v3253 = vld [vmem:[%s4 + $0x158] sm:$0xf]
    %v3254 = vld [vmem:[%s4 + $0x15c] sm:$0xf]
    %v3255 = vld [vmem:[%s4 + $0x160] sm:$0xf]
    %v3256 = vld [vmem:[%s4 + $0x164] sm:$0xf]
    %v3257 = vld [vmem:[%s4 + $0x168] sm:$0xf]
    %v3258 = vld [vmem:[%s4 + $0x16c] sm:$0xf]
    %v3259 = vld [vmem:[%s4 + $0x170] sm:$0xf]
    %v3260 = vld [vmem:[%s4 + $0x174] sm:$0xf]
    %v3261 = vld [vmem:[%s4 + $0x178] sm:$0xf]
    %v3262 = vld [vmem:[%s4 + $0x17c] sm:$0xf]
    %v3263 = vld [vmem:[%s4 + $0x180] sm:$0xf]
    %v3264 = vld [vmem:[%s4 + $0x184] sm:$0xf]
    %v3265 = vld [vmem:[%s4 + $0x188] sm:$0xf]
    %v3266 = vld [vmem:[%s4 + $0x18c] sm:$0xf]
    %v3267 = vld [vmem:[%s4 + $0x190] sm:$0xf]
    %v3268 = vld [vmem:[%s4 + $0x194] sm:$0xf]
    %v3269 = vld [vmem:[%s4 + $0x198] sm:$0xf]
    %v3270 = vld [vmem:[%s4 + $0x19c] sm:$0xf]
    %v3271 = vld [vmem:[%s4 + $0x1a0] sm:$0xf]
    %v3272 = vld [vmem:[%s4 + $0x1a4] sm:$0xf]
    %v3273 = vld [vmem:[%s4 + $0x1a8] sm:$0xf]
    %v3274 = vld [vmem:[%s4 + $0x1ac] sm:$0xf]
    %v3275 = vld [vmem:[%s4 + $0x1b0] sm:$0xf]
    %v3276 = vld [vmem:[%s4 + $0x1b4] sm:$0xf]
    %v3277 = vld [vmem:[%s4 + $0x1b8] sm:$0xf]
    %v3278 = vld [vmem:[%s4 + $0x1bc] sm:$0xf]
    %v3279 = vld [vmem:[%s4 + $0x1c0] sm:$0xf]
    %v3280 = vld [vmem:[%s4 + $0x1c4] sm:$0xf]
    %v3281 = vld [vmem:[%s4 + $0x1c8] sm:$0xf]
    %v3282 = vld [vmem:[%s4 + $0x1cc] sm:$0xf]
    %v3283 = vld [vmem:[%s4 + $0x1d0] sm:$0xf]
    %v3284 = vld [vmem:[%s4 + $0x1d4] sm:$0xf]
    %v3285 = vld [vmem:[%s4 + $0x1d8] sm:$0xf]
    %v3286 = vld [vmem:[%s4 + $0x1dc] sm:$0xf]
    %v3287 = vld [vmem:[%s4 + $0x1e0] sm:$0xf]
    %v3288 = vld [vmem:[%s4 + $0x1e4] sm:$0xf]
    %v3289 = vld [vmem:[%s4 + $0x1e8] sm:$0xf]
    %v3290 = vld [vmem:[%s4 + $0x1ec] sm:$0xf]
    %v3291 = vld [vmem:[%s4 + $0x1f0] sm:$0xf]
    %v3292 = vld [vmem:[%s4 + $0x1f4] sm:$0xf]
    %v3293 = vld [vmem:[%s4 + $0x1f8] sm:$0xf]
    %v3294 = vld [vmem:[%s4 + $0x1fc] sm:$0xf]
    %v3295 = vld [vmem:[%s4 + $0x200] sm:$0xf]
    %v3296 = vld [vmem:[%s4 + $0x204] sm:$0xf]
    %v3297 = vld [vmem:[%s4 + $0x208] sm:$0xf]
    %v3298 = vld [vmem:[%s4 + $0x20c] sm:$0xf]
    %v3299 = vld [vmem:[%s4 + $0x210] sm:$0xf]
    %v3300 = vld [vmem:[%s4 + $0x214] sm:$0xf]
    %v3301 = vld [vmem:[%s4 + $0x218] sm:$0xf]
    %v3302 = vld [vmem:[%s4 + $0x21c] sm:$0xf]
    %v3303 = vld [vmem:[%s4 + $0x220] sm:$0xf]
    %v3304 = vld [vmem:[%s4 + $0x224] sm:$0xf]
    %v3305 = vld [vmem:[%s4 + $0x228] sm:$0xf]
    %v3306 = vld [vmem:[%s4 + $0x22c] sm:$0xf]
    %v3307 = vld [vmem:[%s4 + $0x230] sm:$0xf]
    %v3308 = vld [vmem:[%s4 + $0x234] sm:$0xf]
    %v3309 = vld [vmem:[%s4 + $0x238] sm:$0xf]
    %v3310 = vld [vmem:[%s4 + $0x23c] sm:$0xf]
    %v3311 = vld [vmem:[%s4 + $0x240] sm:$0xf]
    %v3312 = vld [vmem:[%s4 + $0x244] sm:$0xf]
    %v3313 = vld [vmem:[%s4 + $0x248] sm:$0xf]
    %v3314 = vld [vmem:[%s4 + $0x24c] sm:$0xf]
    %v3315 = vld [vmem:[%s4 + $0x250] sm:$0xf]
    %v3316 = vld [vmem:[%s4 + $0x254] sm:$0xf]
    %v3317 = vld [vmem:[%s4 + $0x258] sm:$0xf]
    %v3318 = vld [vmem:[%s4 + $0x25c] sm:$0xf]
    %v3319 = vld [vmem:[%s4 + $0x260] sm:$0xf]
    %v3320 = vld [vmem:[%s4 + $0x264] sm:$0xf]
    %v3321 = vld [vmem:[%s4 + $0x268] sm:$0xf]
    %v3322 = vld [vmem:[%s4 + $0x26c] sm:$0xf]
    %v3323 = vld [vmem:[%s4 + $0x270] sm:$0xf]
    %v3324 = vld [vmem:[%s4 + $0x274] sm:$0xf]
    %v3325 = vld [vmem:[%s4 + $0x278] sm:$0xf]
    %v3326 = vld [vmem:[%s4 + $0x27c] sm:$0xf]
    %v3327 = vld [vmem:[%s4 + $0x280] sm:$0xf]
    %v3328 = vld [vmem:[%s4 + $0x284] sm:$0xf]
    %v3329 = vld [vmem:[%s4 + $0x288] sm:$0xf]
    %v3330 = vld [vmem:[%s4 + $0x28c] sm:$0xf]
    %v3331 = vld [vmem:[%s4 + $0x290] sm:$0xf]
    %v3332 = vld [vmem:[%s4 + $0x294] sm:$0xf]
    %v3333 = vld [vmem:[%s4 + $0x298] sm:$0xf]
    %v3334 = vld [vmem:[%s4 + $0x29c] sm:$0xf]
    %v3335 = vld [vmem:[%s4 + $0x2a0] sm:$0xf]
    %v3336 = vld [vmem:[%s4 + $0x2a4] sm:$0xf]
    %v3337 = vld [vmem:[%s4 + $0x2a8] sm:$0xf]
    %v3338 = vld [vmem:[%s4 + $0x2ac] sm:$0xf]
    %v3339 = vld [vmem:[%s4 + $0x2b0] sm:$0xf]
    %v3340 = vld [vmem:[%s4 + $0x2b4] sm:$0xf]
    %v3341 = vld [vmem:[%s4 + $0x2b8] sm:$0xf]
    %v3342 = vld [vmem:[%s4 + $0x2bc] sm:$0xf]
    %v3343 = vld [vmem:[%s4 + $0x2c0] sm:$0xf]
    %v3344 = vld [vmem:[%s4 + $0x2c4] sm:$0xf]
    %v3345 = vld [vmem:[%s4 + $0x2c8] sm:$0xf]
    %v3346 = vld [vmem:[%s4 + $0x2cc] sm:$0xf]
    %v3347 = vld [vmem:[%s4 + $0x2d0] sm:$0xf]
    %v3348 = vld [vmem:[%s4 + $0x2d4] sm:$0xf]
    %v3349 = vld [vmem:[%s4 + $0x2d8] sm:$0xf]
    %v3350 = vld [vmem:[%s4 + $0x2dc] sm:$0xf]
    %v3351 = vld [vmem:[%s4 + $0x2e0] sm:$0xf]
    %v3352 = vld [vmem:[%s4 + $0x2e4] sm:$0xf]
    %v3353 = vld [vmem:[%s4 + $0x2e8] sm:$0xf]
    %v3354 = vld [vmem:[%s4 + $0x2ec] sm:$0xf]
    %v3355 = vld [vmem:[%s4 + $0x2f0] sm:$0xf]
    %v3356 = vld [vmem:[%s4 + $0x2f4] sm:$0xf]
    %v3357 = vld [vmem:[%s4 + $0x2f8] sm:$0xf]
    %v3358 = vld [vmem:[%s4 + $0x2fc] sm:$0xf]
    %v3359 = vld [vmem:[%s4 + $0x300] sm:$0xf]
    %v3360 = vld [vmem:[%s4 + $0x304] sm:$0xf]
    %v3361 = vld [vmem:[%s4 + $0x308] sm:$0xf]
    %v3362 = vld [vmem:[%s4 + $0x30c] sm:$0xf]
    %v3363 = vld [vmem:[%s4 + $0x310] sm:$0xf]
    %v3364 = vld [vmem:[%s4 + $0x314] sm:$0xf]
    %v3365 = vld [vmem:[%s4 + $0x318] sm:$0xf]
    %v3366 = vld [vmem:[%s4 + $0x31c] sm:$0xf]
    %v3367 = vld [vmem:[%s4 + $0x320] sm:$0xf]
    %v3368 = vld [vmem:[%s4 + $0x324] sm:$0xf]
    %v3369 = vld [vmem:[%s4 + $0x328] sm:$0xf]
    %v3370 = vld [vmem:[%s4 + $0x32c] sm:$0xf]
    %v3371 = vld [vmem:[%s4 + $0x330] sm:$0xf]
    %v3372 = vld [vmem:[%s4 + $0x334] sm:$0xf]
    %v3373 = vld [vmem:[%s4 + $0x338] sm:$0xf]
    %v3374 = vld [vmem:[%s4 + $0x33c] sm:$0xf]
    %v3375 = vld [vmem:[%s4 + $0x340] sm:$0xf]
    %v3376 = vld [vmem:[%s4 + $0x344] sm:$0xf]
    %v3377 = vld [vmem:[%s4 + $0x348] sm:$0xf]
    %v3378 = vld [vmem:[%s4 + $0x34c] sm:$0xf]
    %v3379 = vld [vmem:[%s4 + $0x350] sm:$0xf]
    %v3380 = vld [vmem:[%s4 + $0x354] sm:$0xf]
    %v3381 = vld [vmem:[%s4 + $0x358] sm:$0xf]
    %v3382 = vld [vmem:[%s4 + $0x35c] sm:$0xf]
    %v3383 = vld [vmem:[%s4 + $0x360] sm:$0xf]
    %v3384 = vld [vmem:[%s4 + $0x364] sm:$0xf]
    %v3385 = vld [vmem:[%s4 + $0x368] sm:$0xf]
    %v3386 = vld [vmem:[%s4 + $0x36c] sm:$0xf]
    %v3387 = vld [vmem:[%s4 + $0x370] sm:$0xf]
    %v3388 = vld [vmem:[%s4 + $0x374] sm:$0xf]
    %v3389 = vld [vmem:[%s4 + $0x378] sm:$0xf]
    %v3390 = vld [vmem:[%s4 + $0x37c] sm:$0xf]
    %v3391 = vld [vmem:[%s4 + $0x380] sm:$0xf]
    %v3392 = vld [vmem:[%s4 + $0x384] sm:$0xf]
    %v3393 = vld [vmem:[%s4 + $0x388] sm:$0xf]
    %v3394 = vld [vmem:[%s4 + $0x38c] sm:$0xf]
    %v3395 = vld [vmem:[%s4 + $0x390] sm:$0xf]
    %v3396 = vld [vmem:[%s4 + $0x394] sm:$0xf]
    %v3397 = vld [vmem:[%s4 + $0x398] sm:$0xf]
    %v3398 = vld [vmem:[%s4 + $0x39c] sm:$0xf]
    %v3399 = vld [vmem:[%s4 + $0x3a0] sm:$0xf]
    %v3400 = vld [vmem:[%s4 + $0x3a4] sm:$0xf]
    %v3401 = vld [vmem:[%s4 + $0x3a8] sm:$0xf]
    %v3402 = vld [vmem:[%s4 + $0x3ac] sm:$0xf]
    %v3403 = vld [vmem:[%s4 + $0x3b0] sm:$0xf]
    %v3404 = vld [vmem:[%s4 + $0x3b4] sm:$0xf]
    %v3405 = vld [vmem:[%s4 + $0x3b8] sm:$0xf]
    %v3406 = vld [vmem:[%s4 + $0x3bc] sm:$0xf]
    %v3407 = vld [vmem:[%s4 + $0x3c0] sm:$0xf]
    %v3408 = vld [vmem:[%s4 + $0x3c4] sm:$0xf]
    %v3409 = vld [vmem:[%s4 + $0x3c8] sm:$0xf]
    %v3410 = vld [vmem:[%s4 + $0x3cc] sm:$0xf]
    %v3411 = vld [vmem:[%s4 + $0x3d0] sm:$0xf]
    %v3412 = vld [vmem:[%s4 + $0x3d4] sm:$0xf]
    %v3413 = vld [vmem:[%s4 + $0x3d8] sm:$0xf]
    %v3414 = vld [vmem:[%s4 + $0x3dc] sm:$0xf]
    %v3415 = vld [vmem:[%s4 + $0x3e0] sm:$0xf]
    %v3416 = vld [vmem:[%s4 + $0x3e4] sm:$0xf]
    %v3417 = vld [vmem:[%s4 + $0x3e8] sm:$0xf]
    %v3418 = vld [vmem:[%s4 + $0x3ec] sm:$0xf]
    %v3419 = vld [vmem:[%s4 + $0x3f0] sm:$0xf]
    %v3420 = vld [vmem:[%s4 + $0x3f4] sm:$0xf]
    %v3421 = vld [vmem:[%s4 + $0x3f8] sm:$0xf]
    %v3422 = vld [vmem:[%s4 + $0x3fc] sm:$0xf]
    %v3423 = vld [vmem:[%s4 + $0x400] sm:$0xf]
    %v3424 = vld [vmem:[%s4 + $0x404] sm:$0xf]
    %v3425 = vld [vmem:[%s4 + $0x408] sm:$0xf]
    %v3426 = vld [vmem:[%s4 + $0x40c] sm:$0xf]
    %v3427 = vld [vmem:[%s4 + $0x410] sm:$0xf]
    %v3428 = vld [vmem:[%s4 + $0x414] sm:$0xf]
    %v3429 = vld [vmem:[%s4 + $0x418] sm:$0xf]
    %v3430 = vld [vmem:[%s4 + $0x41c] sm:$0xf]
    %v3431 = vld [vmem:[%s4 + $0x420] sm:$0xf]
    %v3432 = vld [vmem:[%s4 + $0x424] sm:$0xf]
    %v3433 = vld [vmem:[%s4 + $0x428] sm:$0xf]
    %v3434 = vld [vmem:[%s4 + $0x42c] sm:$0xf]
    %v3435 = vld [vmem:[%s4 + $0x430] sm:$0xf]
    %v3436 = vld [vmem:[%s4 + $0x434] sm:$0xf]
    %v3437 = vld [vmem:[%s4 + $0x438] sm:$0xf]
    %v3438 = vld [vmem:[%s4 + $0x43c] sm:$0xf]
    %v3439 = vld [vmem:[%s4 + $0x440] sm:$0xf]
    %v3440 = vld [vmem:[%s4 + $0x444] sm:$0xf]
    %v3441 = vld [vmem:[%s4 + $0x448] sm:$0xf]
    %v3442 = vld [vmem:[%s4 + $0x44c] sm:$0xf]
    %v3443 = vld [vmem:[%s4 + $0x450] sm:$0xf]
    %v3444 = vld [vmem:[%s4 + $0x454] sm:$0xf]
    %v3445 = vld [vmem:[%s4 + $0x458] sm:$0xf]
    %v3446 = vld [vmem:[%s4 + $0x45c] sm:$0xf]
    %v3447 = vld [vmem:[%s4 + $0x460] sm:$0xf]
    %v3448 = vld [vmem:[%s4 + $0x464] sm:$0xf]
    %v3449 = vld [vmem:[%s4 + $0x468] sm:$0xf]
    %v3450 = vld [vmem:[%s4 + $0x46c] sm:$0xf]
    %v3451 = vld [vmem:[%s4 + $0x470] sm:$0xf]
    %v3452 = vld [vmem:[%s4 + $0x474] sm:$0xf]
    %v3453 = vld [vmem:[%s4 + $0x478] sm:$0xf]
    %v3454 = vld [vmem:[%s4 + $0x47c] sm:$0xf]
    %v3455 = vld [vmem:[%s4 + $0x480] sm:$0xf]
    %v3456 = vld [vmem:[%s4 + $0x484] sm:$0xf]
    %v3457 = vld [vmem:[%s4 + $0x488] sm:$0xf]
    %v3458 = vld [vmem:[%s4 + $0x48c] sm:$0xf]
    %v3459 = vld [vmem:[%s4 + $0x490] sm:$0xf]
    %v3460 = vld [vmem:[%s4 + $0x494] sm:$0xf]
    %v3461 = vld [vmem:[%s4 + $0x498] sm:$0xf]
    %v3462 = vld [vmem:[%s4 + $0x49c] sm:$0xf]
    %v3463 = vld [vmem:[%s4 + $0x4a0] sm:$0xf]
    %v3464 = vld [vmem:[%s4 + $0x4a4] sm:$0xf]
    %v3465 = vld [vmem:[%s4 + $0x4a8] sm:$0xf]
    %v3466 = vld [vmem:[%s4 + $0x4ac] sm:$0xf]
    %v3467 = vld [vmem:[%s4 + $0x4b0] sm:$0xf]
    %v3468 = vld [vmem:[%s4 + $0x4b4] sm:$0xf]
    %v3469 = vld [vmem:[%s4 + $0x4b8] sm:$0xf]
    %v3470 = vld [vmem:[%s4 + $0x4bc] sm:$0xf]
    %v3471 = vld [vmem:[%s4 + $0x4c0] sm:$0xf]
    %v3472 = vld [vmem:[%s4 + $0x4c4] sm:$0xf]
    %v3473 = vld [vmem:[%s4 + $0x4c8] sm:$0xf]
    %v3474 = vld [vmem:[%s4 + $0x4cc] sm:$0xf]
    %v3475 = vld [vmem:[%s4 + $0x4d0] sm:$0xf]
    %v3476 = vld [vmem:[%s4 + $0x4d4] sm:$0xf]
    %v3477 = vld [vmem:[%s4 + $0x4d8] sm:$0xf]
    %v3478 = vld [vmem:[%s4 + $0x4dc] sm:$0xf]
    %v3479 = vld [vmem:[%s4 + $0x4e0] sm:$0xf]
    %v3480 = vld [vmem:[%s4 + $0x4e4] sm:$0xf]
    %v3481 = vld [vmem:[%s4 + $0x4e8] sm:$0xf]
    %v3482 = vld [vmem:[%s4 + $0x4ec] sm:$0xf]
    %v3483 = vld [vmem:[%s4 + $0x4f0] sm:$0xf]
    %v3484 = vld [vmem:[%s4 + $0x4f4] sm:$0xf]
    %v3485 = vld [vmem:[%s4 + $0x4f8] sm:$0xf]
    %v3486 = vld [vmem:[%s4 + $0x4fc] sm:$0xf]
    %v3487 = vld [vmem:[%s4 + $0x500] sm:$0xf]
    %v3488 = vld [vmem:[%s4 + $0x504] sm:$0xf]
    %v3489 = vld [vmem:[%s4 + $0x508] sm:$0xf]
    %v3490 = vld [vmem:[%s4 + $0x50c] sm:$0xf]
    %v3491 = vld [vmem:[%s4 + $0x510] sm:$0xf]
    %v3492 = vld [vmem:[%s4 + $0x514] sm:$0xf]
    %v3493 = vld [vmem:[%s4 + $0x518] sm:$0xf]
    %v3494 = vld [vmem:[%s4 + $0x51c] sm:$0xf]
    %v3495 = vld [vmem:[%s4 + $0x520] sm:$0xf]
    %v3496 = vld [vmem:[%s4 + $0x524] sm:$0xf]
    %v3497 = vld [vmem:[%s4 + $0x528] sm:$0xf]
    %v3498 = vld [vmem:[%s4 + $0x52c] sm:$0xf]
    %v3499 = vld [vmem:[%s4 + $0x530] sm:$0xf]
    %v3500 = vld [vmem:[%s4 + $0x534] sm:$0xf]
    %v3501 = vld [vmem:[%s4 + $0x538] sm:$0xf]
    %v3502 = vld [vmem:[%s4 + $0x53c] sm:$0xf]
    %v3839 = vunpack.c.l.b16 %v3167
    %v3840 = vunpack.c.l.b16 %v3168
    %v3841 = vunpack.c.l.b16 %v3169
    %v3842 = vunpack.c.l.b16 %v3170
    %v3843 = vunpack.c.l.b16 %v3171
    %v3844 = vunpack.c.l.b16 %v3172
    %v3845 = vunpack.c.l.b16 %v3173
    %v3846 = vunpack.c.l.b16 %v3174
    %v3847 = vunpack.c.l.b16 %v3175
    %v3848 = vunpack.c.l.b16 %v3176
    %v3849 = vunpack.c.l.b16 %v3177
    %v3850 = vunpack.c.l.b16 %v3178
    %v3851 = vunpack.c.l.b16 %v3179
    %v3852 = vunpack.c.l.b16 %v3180
    %v3853 = vunpack.c.l.b16 %v3181
    %v3854 = vunpack.c.l.b16 %v3182
    %v3855 = vunpack.c.l.b16 %v3183
    %v3856 = vunpack.c.l.b16 %v3184
    %v3857 = vunpack.c.l.b16 %v3185
    %v3858 = vunpack.c.l.b16 %v3186
    %v3859 = vunpack.c.l.b16 %v3187
    %v3860 = vunpack.c.l.b16 %v3188
    %v3861 = vunpack.c.l.b16 %v3189
    %v3862 = vunpack.c.l.b16 %v3190
    %v3863 = vunpack.c.l.b16 %v3191
    %v3864 = vunpack.c.l.b16 %v3192
    %v3865 = vunpack.c.l.b16 %v3193
    %v3866 = vunpack.c.l.b16 %v3194
    %v3867 = vunpack.c.l.b16 %v3195
    %v3868 = vunpack.c.l.b16 %v3196
    %v3869 = vunpack.c.l.b16 %v3197
    %v3870 = vunpack.c.l.b16 %v3198
    %v3871 = vunpack.c.l.b16 %v3199
    %v3872 = vunpack.c.l.b16 %v3200
    %v3873 = vunpack.c.l.b16 %v3201
    %v3874 = vunpack.c.l.b16 %v3202
    %v3875 = vunpack.c.l.b16 %v3203
    %v3876 = vunpack.c.l.b16 %v3204
    %v3877 = vunpack.c.l.b16 %v3205
    %v3878 = vunpack.c.l.b16 %v3206
    %v3879 = vunpack.c.l.b16 %v3207
    %v3880 = vunpack.c.l.b16 %v3208
    %v3881 = vunpack.c.l.b16 %v3209
    %v3882 = vunpack.c.l.b16 %v3210
    %v3883 = vunpack.c.l.b16 %v3211
    %v3884 = vunpack.c.l.b16 %v3212
    %v3885 = vunpack.c.l.b16 %v3213
    %v3886 = vunpack.c.l.b16 %v3214
    %v3887 = vunpack.c.l.b16 %v3215
    %v3888 = vunpack.c.l.b16 %v3216
    %v3889 = vunpack.c.l.b16 %v3217
    %v3890 = vunpack.c.l.b16 %v3218
    %v3891 = vunpack.c.l.b16 %v3219
    %v3892 = vunpack.c.l.b16 %v3220
    %v3893 = vunpack.c.l.b16 %v3221
    %v3894 = vunpack.c.l.b16 %v3222
    %v3895 = vunpack.c.l.b16 %v3223
    %v3896 = vunpack.c.l.b16 %v3224
    %v3897 = vunpack.c.l.b16 %v3225
    %v3898 = vunpack.c.l.b16 %v3226
    %v3899 = vunpack.c.l.b16 %v3227
    %v3900 = vunpack.c.l.b16 %v3228
    %v3901 = vunpack.c.l.b16 %v3229
    %v3902 = vunpack.c.l.b16 %v3230
    %v3903 = vunpack.c.l.b16 %v3231
    %v3904 = vunpack.c.l.b16 %v3232
    %v3905 = vunpack.c.l.b16 %v3233
    %v3906 = vunpack.c.l.b16 %v3234
    %v3907 = vunpack.c.l.b16 %v3235
    %v3908 = vunpack.c.l.b16 %v3236
    %v3909 = vunpack.c.l.b16 %v3237
    %v3910 = vunpack.c.l.b16 %v3238
    %v3911 = vunpack.c.l.b16 %v3239
    %v3912 = vunpack.c.l.b16 %v3240
    %v3913 = vunpack.c.l.b16 %v3241
    %v3914 = vunpack.c.l.b16 %v3242
    %v3915 = vunpack.c.l.b16 %v3243
    %v3916 = vunpack.c.l.b16 %v3244
    %v3917 = vunpack.c.l.b16 %v3245
    %v3918 = vunpack.c.l.b16 %v3246
    %v3919 = vunpack.c.l.b16 %v3247
    %v3920 = vunpack.c.l.b16 %v3248
    %v3921 = vunpack.c.l.b16 %v3249
    %v3922 = vunpack.c.l.b16 %v3250
    %v3923 = vunpack.c.l.b16 %v3251
    %v3924 = vunpack.c.l.b16 %v3252
    %v3925 = vunpack.c.l.b16 %v3253
    %v3926 = vunpack.c.l.b16 %v3254
    %v3927 = vunpack.c.l.b16 %v3255
    %v3928 = vunpack.c.l.b16 %v3256
    %v3929 = vunpack.c.l.b16 %v3257
    %v3930 = vunpack.c.l.b16 %v3258
    %v3931 = vunpack.c.l.b16 %v3259
    %v3932 = vunpack.c.l.b16 %v3260
    %v3933 = vunpack.c.l.b16 %v3261
    %v3934 = vunpack.c.l.b16 %v3262
    %v3935 = vunpack.c.l.b16 %v3263
    %v3936 = vunpack.c.l.b16 %v3264
    %v3937 = vunpack.c.l.b16 %v3265
    %v3938 = vunpack.c.l.b16 %v3266
    %v3939 = vunpack.c.l.b16 %v3267
    %v3940 = vunpack.c.l.b16 %v3268
    %v3941 = vunpack.c.l.b16 %v3269
    %v3942 = vunpack.c.l.b16 %v3270
    %v3943 = vunpack.c.l.b16 %v3271
    %v3944 = vunpack.c.l.b16 %v3272
    %v3945 = vunpack.c.l.b16 %v3273
    %v3946 = vunpack.c.l.b16 %v3274
    %v3947 = vunpack.c.l.b16 %v3275
    %v3948 = vunpack.c.l.b16 %v3276
    %v3949 = vunpack.c.l.b16 %v3277
    %v3950 = vunpack.c.l.b16 %v3278
    %v3951 = vunpack.c.l.b16 %v3279
    %v3952 = vunpack.c.l.b16 %v3280
    %v3953 = vunpack.c.l.b16 %v3281
    %v3954 = vunpack.c.l.b16 %v3282
    %v3955 = vunpack.c.l.b16 %v3283
    %v3956 = vunpack.c.l.b16 %v3284
    %v3957 = vunpack.c.l.b16 %v3285
    %v3958 = vunpack.c.l.b16 %v3286
    %v3959 = vunpack.c.l.b16 %v3287
    %v3960 = vunpack.c.l.b16 %v3288
    %v3961 = vunpack.c.l.b16 %v3289
    %v3962 = vunpack.c.l.b16 %v3290
    %v3963 = vunpack.c.l.b16 %v3291
    %v3964 = vunpack.c.l.b16 %v3292
    %v3965 = vunpack.c.l.b16 %v3293
    %v3966 = vunpack.c.l.b16 %v3294
    %v3967 = vunpack.c.l.b16 %v3295
    %v3968 = vunpack.c.l.b16 %v3296
    %v3969 = vunpack.c.l.b16 %v3297
    %v3970 = vunpack.c.l.b16 %v3298
    %v3971 = vunpack.c.l.b16 %v3299
    %v3972 = vunpack.c.l.b16 %v3300
    %v3973 = vunpack.c.l.b16 %v3301
    %v3974 = vunpack.c.l.b16 %v3302
    %v3975 = vunpack.c.l.b16 %v3303
    %v3976 = vunpack.c.l.b16 %v3304
    %v3977 = vunpack.c.l.b16 %v3305
    %v3978 = vunpack.c.l.b16 %v3306
    %v3979 = vunpack.c.l.b16 %v3307
    %v3980 = vunpack.c.l.b16 %v3308
    %v3981 = vunpack.c.l.b16 %v3309
    %v3982 = vunpack.c.l.b16 %v3310
    %v3983 = vunpack.c.l.b16 %v3311
    %v3984 = vunpack.c.l.b16 %v3312
    %v3985 = vunpack.c.l.b16 %v3313
    %v3986 = vunpack.c.l.b16 %v3314
    %v3987 = vunpack.c.l.b16 %v3315
    %v3988 = vunpack.c.l.b16 %v3316
    %v3989 = vunpack.c.l.b16 %v3317
    %v3990 = vunpack.c.l.b16 %v3318
    %v3991 = vunpack.c.l.b16 %v3319
    %v3992 = vunpack.c.l.b16 %v3320
    %v3993 = vunpack.c.l.b16 %v3321
    %v3994 = vunpack.c.l.b16 %v3322
    %v3995 = vunpack.c.l.b16 %v3323
    %v3996 = vunpack.c.l.b16 %v3324
    %v3997 = vunpack.c.l.b16 %v3325
    %v3998 = vunpack.c.l.b16 %v3326
    %v3999 = vunpack.c.l.b16 %v3327
    %v4000 = vunpack.c.l.b16 %v3328
    %v4001 = vunpack.c.l.b16 %v3329
    %v4002 = vunpack.c.l.b16 %v3330
    %v4003 = vunpack.c.l.b16 %v3331
    %v4004 = vunpack.c.l.b16 %v3332
    %v4005 = vunpack.c.l.b16 %v3333
    %v4006 = vunpack.c.l.b16 %v3334
    %v4007 = vunpack.c.l.b16 %v3335
    %v4008 = vunpack.c.l.b16 %v3336
    %v4009 = vunpack.c.l.b16 %v3337
    %v4010 = vunpack.c.l.b16 %v3338
    %v4011 = vunpack.c.l.b16 %v3339
    %v4012 = vunpack.c.l.b16 %v3340
    %v4013 = vunpack.c.l.b16 %v3341
    %v4014 = vunpack.c.l.b16 %v3342
    %v4015 = vunpack.c.l.b16 %v3343
    %v4016 = vunpack.c.l.b16 %v3344
    %v4017 = vunpack.c.l.b16 %v3345
    %v4018 = vunpack.c.l.b16 %v3346
    %v4019 = vunpack.c.l.b16 %v3347
    %v4020 = vunpack.c.l.b16 %v3348
    %v4021 = vunpack.c.l.b16 %v3349
    %v4022 = vunpack.c.l.b16 %v3350
    %v4023 = vunpack.c.l.b16 %v3351
    %v4024 = vunpack.c.l.b16 %v3352
    %v4025 = vunpack.c.l.b16 %v3353
    %v4026 = vunpack.c.l.b16 %v3354
    %v4027 = vunpack.c.l.b16 %v3355
    %v4028 = vunpack.c.l.b16 %v3356
    %v4029 = vunpack.c.l.b16 %v3357
    %v4030 = vunpack.c.l.b16 %v3358
    %v4031 = vunpack.c.l.b16 %v3359
    %v4032 = vunpack.c.l.b16 %v3360
    %v4033 = vunpack.c.l.b16 %v3361
    %v4034 = vunpack.c.l.b16 %v3362
    %v4035 = vunpack.c.l.b16 %v3363
    %v4036 = vunpack.c.l.b16 %v3364
    %v4037 = vunpack.c.l.b16 %v3365
    %v4038 = vunpack.c.l.b16 %v3366
    %v4039 = vunpack.c.l.b16 %v3367
    %v4040 = vunpack.c.l.b16 %v3368
    %v4041 = vunpack.c.l.b16 %v3369
    %v4042 = vunpack.c.l.b16 %v3370
    %v4043 = vunpack.c.l.b16 %v3371
    %v4044 = vunpack.c.l.b16 %v3372
    %v4045 = vunpack.c.l.b16 %v3373
    %v4046 = vunpack.c.l.b16 %v3374
    %v4047 = vunpack.c.l.b16 %v3375
    %v4048 = vunpack.c.l.b16 %v3376
    %v4049 = vunpack.c.l.b16 %v3377
    %v4050 = vunpack.c.l.b16 %v3378
    %v4051 = vunpack.c.l.b16 %v3379
    %v4052 = vunpack.c.l.b16 %v3380
    %v4053 = vunpack.c.l.b16 %v3381
    %v4054 = vunpack.c.l.b16 %v3382
    %v4055 = vunpack.c.l.b16 %v3383
    %v4056 = vunpack.c.l.b16 %v3384
    %v4057 = vunpack.c.l.b16 %v3385
    %v4058 = vunpack.c.l.b16 %v3386
    %v4059 = vunpack.c.l.b16 %v3387
    %v4060 = vunpack.c.l.b16 %v3388
    %v4061 = vunpack.c.l.b16 %v3389
    %v4062 = vunpack.c.l.b16 %v3390
    %v4063 = vunpack.c.l.b16 %v3391
    %v4064 = vunpack.c.l.b16 %v3392
    %v4065 = vunpack.c.l.b16 %v3393
    %v4066 = vunpack.c.l.b16 %v3394
    %v4067 = vunpack.c.l.b16 %v3395
    %v4068 = vunpack.c.l.b16 %v3396
    %v4069 = vunpack.c.l.b16 %v3397
    %v4070 = vunpack.c.l.b16 %v3398
    %v4071 = vunpack.c.l.b16 %v3399
    %v4072 = vunpack.c.l.b16 %v3400
    %v4073 = vunpack.c.l.b16 %v3401
    %v4074 = vunpack.c.l.b16 %v3402
    %v4075 = vunpack.c.l.b16 %v3403
    %v4076 = vunpack.c.l.b16 %v3404
    %v4077 = vunpack.c.l.b16 %v3405
    %v4078 = vunpack.c.l.b16 %v3406
    %v4079 = vunpack.c.l.b16 %v3407
    %v4080 = vunpack.c.l.b16 %v3408
    %v4081 = vunpack.c.l.b16 %v3409
    %v4082 = vunpack.c.l.b16 %v3410
    %v4083 = vunpack.c.l.b16 %v3411
    %v4084 = vunpack.c.l.b16 %v3412
    %v4085 = vunpack.c.l.b16 %v3413
    %v4086 = vunpack.c.l.b16 %v3414
    %v4087 = vunpack.c.l.b16 %v3415
    %v4088 = vunpack.c.l.b16 %v3416
    %v4089 = vunpack.c.l.b16 %v3417
    %v4090 = vunpack.c.l.b16 %v3418
    %v4091 = vunpack.c.l.b16 %v3419
    %v4092 = vunpack.c.l.b16 %v3420
    %v4093 = vunpack.c.l.b16 %v3421
    %v4094 = vunpack.c.l.b16 %v3422
    %v4095 = vunpack.c.l.b16 %v3423
    %v4096 = vunpack.c.l.b16 %v3424
    %v4097 = vunpack.c.l.b16 %v3425
    %v4098 = vunpack.c.l.b16 %v3426
    %v4099 = vunpack.c.l.b16 %v3427
    %v4100 = vunpack.c.l.b16 %v3428
    %v4101 = vunpack.c.l.b16 %v3429
    %v4102 = vunpack.c.l.b16 %v3430
    %v4103 = vunpack.c.l.b16 %v3431
    %v4104 = vunpack.c.l.b16 %v3432
    %v4105 = vunpack.c.l.b16 %v3433
    %v4106 = vunpack.c.l.b16 %v3434
    %v4107 = vunpack.c.l.b16 %v3435
    %v4108 = vunpack.c.l.b16 %v3436
    %v4109 = vunpack.c.l.b16 %v3437
    %v4110 = vunpack.c.l.b16 %v3438
    %v4111 = vunpack.c.l.b16 %v3439
    %v4112 = vunpack.c.l.b16 %v3440
    %v4113 = vunpack.c.l.b16 %v3441
    %v4114 = vunpack.c.l.b16 %v3442
    %v4115 = vunpack.c.l.b16 %v3443
    %v4116 = vunpack.c.l.b16 %v3444
    %v4117 = vunpack.c.l.b16 %v3445
    %v4118 = vunpack.c.l.b16 %v3446
    %v4119 = vunpack.c.l.b16 %v3447
    %v4120 = vunpack.c.l.b16 %v3448
    %v4121 = vunpack.c.l.b16 %v3449
    %v4122 = vunpack.c.l.b16 %v3450
    %v4123 = vunpack.c.l.b16 %v3451
    %v4124 = vunpack.c.l.b16 %v3452
    %v4125 = vunpack.c.l.b16 %v3453
    %v4126 = vunpack.c.l.b16 %v3454
    %v4127 = vunpack.c.l.b16 %v3455
    %v4128 = vunpack.c.l.b16 %v3456
    %v4129 = vunpack.c.l.b16 %v3457
    %v4130 = vunpack.c.l.b16 %v3458
    %v4131 = vunpack.c.l.b16 %v3459
    %v4132 = vunpack.c.l.b16 %v3460
    %v4133 = vunpack.c.l.b16 %v3461
    %v4134 = vunpack.c.l.b16 %v3462
    %v4135 = vunpack.c.l.b16 %v3463
    %v4136 = vunpack.c.l.b16 %v3464
    %v4137 = vunpack.c.l.b16 %v3465
    %v4138 = vunpack.c.l.b16 %v3466
    %v4139 = vunpack.c.l.b16 %v3467
    %v4140 = vunpack.c.l.b16 %v3468
    %v4141 = vunpack.c.l.b16 %v3469
    %v4142 = vunpack.c.l.b16 %v3470
    %v4143 = vunpack.c.l.b16 %v3471
    %v4144 = vunpack.c.l.b16 %v3472
    %v4145 = vunpack.c.l.b16 %v3473
    %v4146 = vunpack.c.l.b16 %v3474
    %v4147 = vunpack.c.l.b16 %v3475
    %v4148 = vunpack.c.l.b16 %v3476
    %v4149 = vunpack.c.l.b16 %v3477
    %v4150 = vunpack.c.l.b16 %v3478
    %v4151 = vunpack.c.l.b16 %v3479
    %v4152 = vunpack.c.l.b16 %v3480
    %v4153 = vunpack.c.l.b16 %v3481
    %v4154 = vunpack.c.l.b16 %v3482
    %v4155 = vunpack.c.l.b16 %v3483
    %v4156 = vunpack.c.l.b16 %v3484
    %v4157 = vunpack.c.l.b16 %v3485
    %v4158 = vunpack.c.l.b16 %v3486
    %v4159 = vunpack.c.l.b16 %v3487
    %v4160 = vunpack.c.l.b16 %v3488
    %v4161 = vunpack.c.l.b16 %v3489
    %v4162 = vunpack.c.l.b16 %v3490
    %v4163 = vunpack.c.l.b16 %v3491
    %v4164 = vunpack.c.l.b16 %v3492
    %v4165 = vunpack.c.l.b16 %v3493
    %v4166 = vunpack.c.l.b16 %v3494
    %v4167 = vunpack.c.l.b16 %v3495
    %v4168 = vunpack.c.l.b16 %v3496
    %v4169 = vunpack.c.l.b16 %v3497
    %v4170 = vunpack.c.l.b16 %v3498
    %v4171 = vunpack.c.l.b16 %v3499
    %v4172 = vunpack.c.l.b16 %v3500
    %v4173 = vunpack.c.l.b16 %v3501
    %v4174 = vunpack.c.l.b16 %v3502
    %v4175 = vpack.c.b16 %v3840, %v3839
    %v4176 = vpack.c.b16 %v3842, %v3841
    %v4177 = vpack.c.b16 %v3844, %v3843
    %v4178 = vpack.c.b16 %v3846, %v3845
    %v4179 = vpack.c.b16 %v3848, %v3847
    %v4180 = vpack.c.b16 %v3850, %v3849
    %v4181 = vpack.c.b16 %v3852, %v3851
    %v4182 = vpack.c.b16 %v3854, %v3853
    %v4183 = vpack.c.b16 %v3856, %v3855
    %v4184 = vpack.c.b16 %v3858, %v3857
    %v4185 = vpack.c.b16 %v3860, %v3859
    %v4186 = vpack.c.b16 %v3862, %v3861
    %v4187 = vpack.c.b16 %v3864, %v3863
    %v4188 = vpack.c.b16 %v3866, %v3865
    %v4189 = vpack.c.b16 %v3868, %v3867
    %v4190 = vpack.c.b16 %v3870, %v3869
    %v4191 = vpack.c.b16 %v3872, %v3871
    %v4192 = vpack.c.b16 %v3874, %v3873
    %v4193 = vpack.c.b16 %v3876, %v3875
    %v4194 = vpack.c.b16 %v3878, %v3877
    %v4195 = vpack.c.b16 %v3880, %v3879
    %v4196 = vpack.c.b16 %v3882, %v3881
    %v4197 = vpack.c.b16 %v3884, %v3883
    %v4198 = vpack.c.b16 %v3886, %v3885
    %v4199 = vpack.c.b16 %v3888, %v3887
    %v4200 = vpack.c.b16 %v3890, %v3889
    %v4201 = vpack.c.b16 %v3892, %v3891
    %v4202 = vpack.c.b16 %v3894, %v3893
    %v4203 = vpack.c.b16 %v3896, %v3895
    %v4204 = vpack.c.b16 %v3898, %v3897
    %v4205 = vpack.c.b16 %v3900, %v3899
    %v4206 = vpack.c.b16 %v3902, %v3901
    %v4207 = vpack.c.b16 %v3904, %v3903
    %v4208 = vpack.c.b16 %v3906, %v3905
    %v4209 = vpack.c.b16 %v3908, %v3907
    %v4210 = vpack.c.b16 %v3910, %v3909
    %v4211 = vpack.c.b16 %v3912, %v3911
    %v4212 = vpack.c.b16 %v3914, %v3913
    %v4213 = vpack.c.b16 %v3916, %v3915
    %v4214 = vpack.c.b16 %v3918, %v3917
    %v4215 = vpack.c.b16 %v3920, %v3919
    %v4216 = vpack.c.b16 %v3922, %v3921
    %v4217 = vpack.c.b16 %v3924, %v3923
    %v4218 = vpack.c.b16 %v3926, %v3925
    %v4219 = vpack.c.b16 %v3928, %v3927
    %v4220 = vpack.c.b16 %v3930, %v3929
    %v4221 = vpack.c.b16 %v3932, %v3931
    %v4222 = vpack.c.b16 %v3934, %v3933
    %v4223 = vpack.c.b16 %v3936, %v3935
    %v4224 = vpack.c.b16 %v3938, %v3937
    %v4225 = vpack.c.b16 %v3940, %v3939
    %v4226 = vpack.c.b16 %v3942, %v3941
    %v4227 = vpack.c.b16 %v3944, %v3943
    %v4228 = vpack.c.b16 %v3946, %v3945
    %v4229 = vpack.c.b16 %v3948, %v3947
    %v4230 = vpack.c.b16 %v3950, %v3949
    %v4231 = vpack.c.b16 %v3952, %v3951
    %v4232 = vpack.c.b16 %v3954, %v3953
    %v4233 = vpack.c.b16 %v3956, %v3955
    %v4234 = vpack.c.b16 %v3958, %v3957
    %v4235 = vpack.c.b16 %v3960, %v3959
    %v4236 = vpack.c.b16 %v3962, %v3961
    %v4237 = vpack.c.b16 %v3964, %v3963
    %v4238 = vpack.c.b16 %v3966, %v3965
    %v4239 = vpack.c.b16 %v3968, %v3967
    %v4240 = vpack.c.b16 %v3970, %v3969
    %v4241 = vpack.c.b16 %v3972, %v3971
    %v4242 = vpack.c.b16 %v3974, %v3973
    %v4243 = vpack.c.b16 %v3976, %v3975
    %v4244 = vpack.c.b16 %v3978, %v3977
    %v4245 = vpack.c.b16 %v3980, %v3979
    %v4246 = vpack.c.b16 %v3982, %v3981
    %v4247 = vpack.c.b16 %v3984, %v3983
    %v4248 = vpack.c.b16 %v3986, %v3985
    %v4249 = vpack.c.b16 %v3988, %v3987
    %v4250 = vpack.c.b16 %v3990, %v3989
    %v4251 = vpack.c.b16 %v3992, %v3991
    %v4252 = vpack.c.b16 %v3994, %v3993
    %v4253 = vpack.c.b16 %v3996, %v3995
    %v4254 = vpack.c.b16 %v3998, %v3997
    %v4255 = vpack.c.b16 %v4000, %v3999
    %v4256 = vpack.c.b16 %v4002, %v4001
    %v4257 = vpack.c.b16 %v4004, %v4003
    %v4258 = vpack.c.b16 %v4006, %v4005
    %v4259 = vpack.c.b16 %v4008, %v4007
    %v4260 = vpack.c.b16 %v4010, %v4009
    %v4261 = vpack.c.b16 %v4012, %v4011
    %v4262 = vpack.c.b16 %v4014, %v4013
    %v4263 = vpack.c.b16 %v4016, %v4015
    %v4264 = vpack.c.b16 %v4018, %v4017
    %v4265 = vpack.c.b16 %v4020, %v4019
    %v4266 = vpack.c.b16 %v4022, %v4021
    %v4267 = vpack.c.b16 %v4024, %v4023
    %v4268 = vpack.c.b16 %v4026, %v4025
    %v4269 = vpack.c.b16 %v4028, %v4027
    %v4270 = vpack.c.b16 %v4030, %v4029
    %v4271 = vpack.c.b16 %v4032, %v4031
    %v4272 = vpack.c.b16 %v4034, %v4033
    %v4273 = vpack.c.b16 %v4036, %v4035
    %v4274 = vpack.c.b16 %v4038, %v4037
    %v4275 = vpack.c.b16 %v4040, %v4039
    %v4276 = vpack.c.b16 %v4042, %v4041
    %v4277 = vpack.c.b16 %v4044, %v4043
    %v4278 = vpack.c.b16 %v4046, %v4045
    %v4279 = vpack.c.b16 %v4048, %v4047
    %v4280 = vpack.c.b16 %v4050, %v4049
    %v4281 = vpack.c.b16 %v4052, %v4051
    %v4282 = vpack.c.b16 %v4054, %v4053
    %v4283 = vpack.c.b16 %v4056, %v4055
    %v4284 = vpack.c.b16 %v4058, %v4057
    %v4285 = vpack.c.b16 %v4060, %v4059
    %v4286 = vpack.c.b16 %v4062, %v4061
    %v4287 = vpack.c.b16 %v4064, %v4063
    %v4288 = vpack.c.b16 %v4066, %v4065
    %v4289 = vpack.c.b16 %v4068, %v4067
    %v4290 = vpack.c.b16 %v4070, %v4069
    %v4291 = vpack.c.b16 %v4072, %v4071
    %v4292 = vpack.c.b16 %v4074, %v4073
    %v4293 = vpack.c.b16 %v4076, %v4075
    %v4294 = vpack.c.b16 %v4078, %v4077
    %v4295 = vpack.c.b16 %v4080, %v4079
    %v4296 = vpack.c.b16 %v4082, %v4081
    %v4297 = vpack.c.b16 %v4084, %v4083
    %v4298 = vpack.c.b16 %v4086, %v4085
    %v4299 = vpack.c.b16 %v4088, %v4087
    %v4300 = vpack.c.b16 %v4090, %v4089
    %v4301 = vpack.c.b16 %v4092, %v4091
    %v4302 = vpack.c.b16 %v4094, %v4093
    %v4303 = vpack.c.b16 %v4096, %v4095
    %v4304 = vpack.c.b16 %v4098, %v4097
    %v4305 = vpack.c.b16 %v4100, %v4099
    %v4306 = vpack.c.b16 %v4102, %v4101
    %v4307 = vpack.c.b16 %v4104, %v4103
    %v4308 = vpack.c.b16 %v4106, %v4105
    %v4309 = vpack.c.b16 %v4108, %v4107
    %v4310 = vpack.c.b16 %v4110, %v4109
    %v4311 = vpack.c.b16 %v4112, %v4111
    %v4312 = vpack.c.b16 %v4114, %v4113
    %v4313 = vpack.c.b16 %v4116, %v4115
    %v4314 = vpack.c.b16 %v4118, %v4117
    %v4315 = vpack.c.b16 %v4120, %v4119
    %v4316 = vpack.c.b16 %v4122, %v4121
    %v4317 = vpack.c.b16 %v4124, %v4123
    %v4318 = vpack.c.b16 %v4126, %v4125
    %v4319 = vpack.c.b16 %v4128, %v4127
    %v4320 = vpack.c.b16 %v4130, %v4129
    %v4321 = vpack.c.b16 %v4132, %v4131
    %v4322 = vpack.c.b16 %v4134, %v4133
    %v4323 = vpack.c.b16 %v4136, %v4135
    %v4324 = vpack.c.b16 %v4138, %v4137
    %v4325 = vpack.c.b16 %v4140, %v4139
    %v4326 = vpack.c.b16 %v4142, %v4141
    %v4327 = vpack.c.b16 %v4144, %v4143
    %v4328 = vpack.c.b16 %v4146, %v4145
    %v4329 = vpack.c.b16 %v4148, %v4147
    %v4330 = vpack.c.b16 %v4150, %v4149
    %v4331 = vpack.c.b16 %v4152, %v4151
    %v4332 = vpack.c.b16 %v4154, %v4153
    %v4333 = vpack.c.b16 %v4156, %v4155
    %v4334 = vpack.c.b16 %v4158, %v4157
    %v4335 = vpack.c.b16 %v4160, %v4159
    %v4336 = vpack.c.b16 %v4162, %v4161
    %v4337 = vpack.c.b16 %v4164, %v4163
    %v4338 = vpack.c.b16 %v4166, %v4165
    %v4339 = vpack.c.b16 %v4168, %v4167
    %v4340 = vpack.c.b16 %v4170, %v4169
    %v4341 = vpack.c.b16 %v4172, %v4171
    %v4342 = vpack.c.b16 %v4174, %v4173
    %4511 = vmatprep.subr.bf16.mxu0 0
    %4512 = vmatpush1.bf16.msra.mxu0 %v4182
    %4513 = vmatprep.subr.bf16.mxu0 0
    %4514 = vmatpush1.bf16.msra.mxu0 %v4181
    %4515 = vmatprep.subr.bf16.mxu0 0
    %4516 = vmatpush1.bf16.msra.mxu0 %v4180
    %4517 = vmatprep.subr.bf16.mxu0 0
    %4518 = vmatpush1.bf16.msra.mxu0 %v4179
    %4519 = vmatprep.subr.bf16.mxu0 0
    %4520 = vmatpush1.bf16.msra.mxu0 %v4178
    %4521 = vmatprep.subr.bf16.mxu0 0
    %4522 = vmatpush1.bf16.msra.mxu0 %v4177
    %4523 = vmatprep.subr.bf16.mxu0 0
    %4524 = vmatpush1.bf16.msra.mxu0 %v4176
    %4525 = vmatprep.subr.bf16.mxu0 0
    %4526 = vmatpush1.bf16.msra.mxu0 %v4175
    %4527 = vmatprep.subr.bf16.mxu0 0
    %4528 = vmatpush2.bf16.msra.mxu0 %v4190
    %4529 = vmatprep.subr.bf16.mxu0 0
    %4530 = vmatpush2.bf16.msra.mxu0 %v4189
    %4531 = vmatprep.subr.bf16.mxu0 0
    %4532 = vmatpush2.bf16.msra.mxu0 %v4188
    %4533 = vmatprep.subr.bf16.mxu0 0
    %4534 = vmatpush2.bf16.msra.mxu0 %v4187
    %4535 = vmatprep.subr.bf16.mxu0 0
    %4536 = vmatpush2.bf16.msra.mxu0 %v4186
    %4537 = vmatprep.subr.bf16.mxu0 0
    %4538 = vmatpush2.bf16.msra.mxu0 %v4185
    %4539 = vmatprep.subr.bf16.mxu0 0
    %4540 = vmatpush2.bf16.msra.mxu0 %v4184
    %4541 = vmatprep.subr.bf16.mxu0 0
    %4542 = vmatpush2.bf16.msra.mxu0 %v4183
    %4543 = vmatprep.mubr.bf16.mxu0 %v3147
    %4544 = vmatmul.mubr.bf16.gmra.mxu0 %v3146
    %v4545 = vpop.f32.mrf.mxu0
    %v4546 = vadd.f32 0.0, %v4545
    %v4547 = vpop.f32.mrf.mxu0
    %v4548 = vpop.f32.mrf.mxu0
    %v4549 = vpop.f32.mrf.mxu0
    %4550 = vdwg.mxu0
    %4551 = vmatprep.subr.bf16.mxu0 0
    %4552 = vmatpush1.bf16.msra.mxu0 %v4198
    %4553 = vmatprep.subr.bf16.mxu0 0
    %4554 = vmatpush1.bf16.msra.mxu0 %v4197
    %4555 = vmatprep.subr.bf16.mxu0 0
    %4556 = vmatpush1.bf16.msra.mxu0 %v4196
    %4557 = vmatprep.subr.bf16.mxu0 0
    %4558 = vmatpush1.bf16.msra.mxu0 %v4195
    %4559 = vmatprep.subr.bf16.mxu0 0
    %4560 = vmatpush1.bf16.msra.mxu0 %v4194
    %4561 = vmatprep.subr.bf16.mxu0 0
    %4562 = vmatpush1.bf16.msra.mxu0 %v4193
    %4563 = vmatprep.subr.bf16.mxu0 0
    %4564 = vmatpush1.bf16.msra.mxu0 %v4192
    %4565 = vmatprep.subr.bf16.mxu0 0
    %4566 = vmatpush1.bf16.msra.mxu0 %v4191
    %4567 = vmatprep.subr.bf16.mxu0 0
    %4568 = vmatpush2.bf16.msra.mxu0 %v4206
    %4569 = vmatprep.subr.bf16.mxu0 0
    %4570 = vmatpush2.bf16.msra.mxu0 %v4205
    %4571 = vmatprep.subr.bf16.mxu0 0
    %4572 = vmatpush2.bf16.msra.mxu0 %v4204
    %4573 = vmatprep.subr.bf16.mxu0 0
    %4574 = vmatpush2.bf16.msra.mxu0 %v4203
    %4575 = vmatprep.subr.bf16.mxu0 0
    %4576 = vmatpush2.bf16.msra.mxu0 %v4202
    %4577 = vmatprep.subr.bf16.mxu0 0
    %4578 = vmatpush2.bf16.msra.mxu0 %v4201
    %4579 = vmatprep.subr.bf16.mxu0 0
    %4580 = vmatpush2.bf16.msra.mxu0 %v4200
    %4581 = vmatprep.subr.bf16.mxu0 0
    %4582 = vmatpush2.bf16.msra.mxu0 %v4199
    %4583 = vmatprep.mubr.bf16.mxu0 %v3149
    %4584 = vmatmul.mubr.bf16.gmra.mxu0 %v3148
    %v4585 = vpop.f32.mrf.mxu0
    %v4586 = vadd.f32 %v4546, %v4585
    %v4587 = vpop.f32.mrf.mxu0
    %v4588 = vpop.f32.mrf.mxu0
    %v4589 = vpop.f32.mrf.mxu0
    %4590 = vdwg.mxu0
    %4591 = vmatprep.subr.bf16.mxu0 0
    %4592 = vmatpush1.bf16.msra.mxu0 %v4214
    %4593 = vmatprep.subr.bf16.mxu0 0
    %4594 = vmatpush1.bf16.msra.mxu0 %v4213
    %4595 = vmatprep.subr.bf16.mxu0 0
    %4596 = vmatpush1.bf16.msra.mxu0 %v4212
    %4597 = vmatprep.subr.bf16.mxu0 0
    %4598 = vmatpush1.bf16.msra.mxu0 %v4211
    %4599 = vmatprep.subr.bf16.mxu0 0
    %4600 = vmatpush1.bf16.msra.mxu0 %v4210
    %4601 = vmatprep.subr.bf16.mxu0 0
    %4602 = vmatpush1.bf16.msra.mxu0 %v4209
    %4603 = vmatprep.subr.bf16.mxu0 0
    %4604 = vmatpush1.bf16.msra.mxu0 %v4208
    %4605 = vmatprep.subr.bf16.mxu0 0
    %4606 = vmatpush1.bf16.msra.mxu0 %v4207
    %4607 = vmatprep.subr.bf16.mxu0 0
    %4608 = vmatpush2.bf16.msra.mxu0 %v4222
    %4609 = vmatprep.subr.bf16.mxu0 0
    %4610 = vmatpush2.bf16.msra.mxu0 %v4221
    %4611 = vmatprep.subr.bf16.mxu0 0
    %4612 = vmatpush2.bf16.msra.mxu0 %v4220
    %4613 = vmatprep.subr.bf16.mxu0 0
    %4614 = vmatpush2.bf16.msra.mxu0 %v4219
    %4615 = vmatprep.subr.bf16.mxu0 0
    %4616 = vmatpush2.bf16.msra.mxu0 %v4218
    %4617 = vmatprep.subr.bf16.mxu0 0
    %4618 = vmatpush2.bf16.msra.mxu0 %v4217
    %4619 = vmatprep.subr.bf16.mxu0 0
    %4620 = vmatpush2.bf16.msra.mxu0 %v4216
    %4621 = vmatprep.subr.bf16.mxu0 0
    %4622 = vmatpush2.bf16.msra.mxu0 %v4215
    %4623 = vmatprep.mubr.bf16.mxu0 %v3151
    %4624 = vmatmul.mubr.bf16.gmra.mxu0 %v3150
    %v4625 = vpop.f32.mrf.mxu0
    %v4626 = vadd.f32 %v4586, %v4625
    %v4627 = vpop.f32.mrf.mxu0
    %v4628 = vpop.f32.mrf.mxu0
    %v4629 = vpop.f32.mrf.mxu0
    %4630 = vdwg.mxu0
    %4631 = vmatprep.subr.bf16.mxu0 0
    %4632 = vmatpush1.bf16.msra.mxu0 %v4230
    %4633 = vmatprep.subr.bf16.mxu0 0
    %4634 = vmatpush1.bf16.msra.mxu0 %v4229
    %4635 = vmatprep.subr.bf16.mxu0 0
    %4636 = vmatpush1.bf16.msra.mxu0 %v4228
    %4637 = vmatprep.subr.bf16.mxu0 0
    %4638 = vmatpush1.bf16.msra.mxu0 %v4227
    %4639 = vmatprep.subr.bf16.mxu0 0
    %4640 = vmatpush1.bf16.msra.mxu0 %v4226
    %4641 = vmatprep.subr.bf16.mxu0 0
    %4642 = vmatpush1.bf16.msra.mxu0 %v4225
    %4643 = vmatprep.subr.bf16.mxu0 0
    %4644 = vmatpush1.bf16.msra.mxu0 %v4224
    %4645 = vmatprep.subr.bf16.mxu0 0
    %4646 = vmatpush1.bf16.msra.mxu0 %v4223
    %4647 = vmatprep.subr.bf16.mxu0 0
    %4648 = vmatpush2.bf16.msra.mxu0 %v4238
    %4649 = vmatprep.subr.bf16.mxu0 0
    %4650 = vmatpush2.bf16.msra.mxu0 %v4237
    %4651 = vmatprep.subr.bf16.mxu0 0
    %4652 = vmatpush2.bf16.msra.mxu0 %v4236
    %4653 = vmatprep.subr.bf16.mxu0 0
    %4654 = vmatpush2.bf16.msra.mxu0 %v4235
    %4655 = vmatprep.subr.bf16.mxu0 0
    %4656 = vmatpush2.bf16.msra.mxu0 %v4234
    %4657 = vmatprep.subr.bf16.mxu0 0
    %4658 = vmatpush2.bf16.msra.mxu0 %v4233
    %4659 = vmatprep.subr.bf16.mxu0 0
    %4660 = vmatpush2.bf16.msra.mxu0 %v4232
    %4661 = vmatprep.subr.bf16.mxu0 0
    %4662 = vmatpush2.bf16.msra.mxu0 %v4231
    %4663 = vmatprep.mubr.bf16.mxu0 %v3153
    %4664 = vmatmul.mubr.bf16.gmra.mxu0 %v3152
    %v4665 = vpop.f32.mrf.mxu0
    %v4666 = vadd.f32 %v4626, %v4665
    %v4667 = vpop.f32.mrf.mxu0
    %v4668 = vpop.f32.mrf.mxu0
    %v4669 = vpop.f32.mrf.mxu0
    %4670 = vdwg.mxu0
    %4671 = vmatprep.subr.bf16.mxu0 0
    %4672 = vmatpush1.bf16.msra.mxu0 %v4246
    %4673 = vmatprep.subr.bf16.mxu0 0
    %4674 = vmatpush1.bf16.msra.mxu0 %v4245
    %4675 = vmatprep.subr.bf16.mxu0 0
    %4676 = vmatpush1.bf16.msra.mxu0 %v4244
    %4677 = vmatprep.subr.bf16.mxu0 0
    %4678 = vmatpush1.bf16.msra.mxu0 %v4243
    %4679 = vmatprep.subr.bf16.mxu0 0
    %4680 = vmatpush1.bf16.msra.mxu0 %v4242
    %4681 = vmatprep.subr.bf16.mxu0 0
    %4682 = vmatpush1.bf16.msra.mxu0 %v4241
    %4683 = vmatprep.subr.bf16.mxu0 0
    %4684 = vmatpush1.bf16.msra.mxu0 %v4240
    %4685 = vmatprep.subr.bf16.mxu0 0
    %4686 = vmatpush1.bf16.msra.mxu0 %v4239
    %4687 = vmatprep.subr.bf16.mxu0 0
    %4688 = vmatpush2.bf16.msra.mxu0 %v4254
    %4689 = vmatprep.subr.bf16.mxu0 0
    %4690 = vmatpush2.bf16.msra.mxu0 %v4253
    %4691 = vmatprep.subr.bf16.mxu0 0
    %4692 = vmatpush2.bf16.msra.mxu0 %v4252
    %4693 = vmatprep.subr.bf16.mxu0 0
    %4694 = vmatpush2.bf16.msra.mxu0 %v4251
    %4695 = vmatprep.subr.bf16.mxu0 0
    %4696 = vmatpush2.bf16.msra.mxu0 %v4250
    %4697 = vmatprep.subr.bf16.mxu0 0
    %4698 = vmatpush2.bf16.msra.mxu0 %v4249
    %4699 = vmatprep.subr.bf16.mxu0 0
    %4700 = vmatpush2.bf16.msra.mxu0 %v4248
    %4701 = vmatprep.subr.bf16.mxu0 0
    %4702 = vmatpush2.bf16.msra.mxu0 %v4247
    %4703 = vmatprep.mubr.bf16.mxu0 %v3155
    %4704 = vmatmul.mubr.bf16.gmra.mxu0 %v3154
    %v4705 = vpop.f32.mrf.mxu0
    %v4706 = vadd.f32 %v4666, %v4705
    %v4707 = vpop.f32.mrf.mxu0
    %v4708 = vpop.f32.mrf.mxu0
    %v4709 = vpop.f32.mrf.mxu0
    %4710 = vdwg.mxu0
    %4711 = vmatprep.subr.bf16.mxu0 0
    %4712 = vmatpush1.bf16.msra.mxu0 %v4262
    %4713 = vmatprep.subr.bf16.mxu0 0
    %4714 = vmatpush1.bf16.msra.mxu0 %v4261
    %4715 = vmatprep.subr.bf16.mxu0 0
    %4716 = vmatpush1.bf16.msra.mxu0 %v4260
    %4717 = vmatprep.subr.bf16.mxu0 0
    %4718 = vmatpush1.bf16.msra.mxu0 %v4259
    %4719 = vmatprep.subr.bf16.mxu0 0
    %4720 = vmatpush1.bf16.msra.mxu0 %v4258
    %4721 = vmatprep.subr.bf16.mxu0 0
    %4722 = vmatpush1.bf16.msra.mxu0 %v4257
    %4723 = vmatprep.subr.bf16.mxu0 0
    %4724 = vmatpush1.bf16.msra.mxu0 %v4256
    %4725 = vmatprep.subr.bf16.mxu0 0
    %4726 = vmatpush1.bf16.msra.mxu0 %v4255
    %4727 = vmatprep.subr.bf16.mxu0 0
    %4728 = vmatpush2.bf16.msra.mxu0 %v4270
    %4729 = vmatprep.subr.bf16.mxu0 0
    %4730 = vmatpush2.bf16.msra.mxu0 %v4269
    %4731 = vmatprep.subr.bf16.mxu0 0
    %4732 = vmatpush2.bf16.msra.mxu0 %v4268
    %4733 = vmatprep.subr.bf16.mxu0 0
    %4734 = vmatpush2.bf16.msra.mxu0 %v4267
    %4735 = vmatprep.subr.bf16.mxu0 0
    %4736 = vmatpush2.bf16.msra.mxu0 %v4266
    %4737 = vmatprep.subr.bf16.mxu0 0
    %4738 = vmatpush2.bf16.msra.mxu0 %v4265
    %4739 = vmatprep.subr.bf16.mxu0 0
    %4740 = vmatpush2.bf16.msra.mxu0 %v4264
    %4741 = vmatprep.subr.bf16.mxu0 0
    %4742 = vmatpush2.bf16.msra.mxu0 %v4263
    %4743 = vmatprep.mubr.bf16.mxu0 %v3157
    %4744 = vmatmul.mubr.bf16.gmra.mxu0 %v3156
    %v4745 = vpop.f32.mrf.mxu0
    %v4746 = vadd.f32 %v4706, %v4745
    %v4747 = vpop.f32.mrf.mxu0
    %v4748 = vpop.f32.mrf.mxu0
    %v4749 = vpop.f32.mrf.mxu0
    %4750 = vdwg.mxu0
    %4751 = vmatprep.subr.bf16.mxu0 0
    %4752 = vmatpush1.bf16.msra.mxu0 %v4278
    %4753 = vmatprep.subr.bf16.mxu0 0
    %4754 = vmatpush1.bf16.msra.mxu0 %v4277
    %4755 = vmatprep.subr.bf16.mxu0 0
    %4756 = vmatpush1.bf16.msra.mxu0 %v4276
    %4757 = vmatprep.subr.bf16.mxu0 0
    %4758 = vmatpush1.bf16.msra.mxu0 %v4275
    %4759 = vmatprep.subr.bf16.mxu0 0
    %4760 = vmatpush1.bf16.msra.mxu0 %v4274
    %4761 = vmatprep.subr.bf16.mxu0 0
    %4762 = vmatpush1.bf16.msra.mxu0 %v4273
    %4763 = vmatprep.subr.bf16.mxu0 0
    %4764 = vmatpush1.bf16.msra.mxu0 %v4272
    %4765 = vmatprep.subr.bf16.mxu0 0
    %4766 = vmatpush1.bf16.msra.mxu0 %v4271
    %4767 = vmatprep.subr.bf16.mxu0 0
    %4768 = vmatpush2.bf16.msra.mxu0 %v4286
    %4769 = vmatprep.subr.bf16.mxu0 0
    %4770 = vmatpush2.bf16.msra.mxu0 %v4285
    %4771 = vmatprep.subr.bf16.mxu0 0
    %4772 = vmatpush2.bf16.msra.mxu0 %v4284
    %4773 = vmatprep.subr.bf16.mxu0 0
    %4774 = vmatpush2.bf16.msra.mxu0 %v4283
    %4775 = vmatprep.subr.bf16.mxu0 0
    %4776 = vmatpush2.bf16.msra.mxu0 %v4282
    %4777 = vmatprep.subr.bf16.mxu0 0
    %4778 = vmatpush2.bf16.msra.mxu0 %v4281
    %4779 = vmatprep.subr.bf16.mxu0 0
    %4780 = vmatpush2.bf16.msra.mxu0 %v4280
    %4781 = vmatprep.subr.bf16.mxu0 0
    %4782 = vmatpush2.bf16.msra.mxu0 %v4279
    %4783 = vmatprep.mubr.bf16.mxu0 %v3159
    %4784 = vmatmul.mubr.bf16.gmra.mxu0 %v3158
    %v4785 = vpop.f32.mrf.mxu0
    %v4786 = vadd.f32 %v4746, %v4785
    %v4787 = vpop.f32.mrf.mxu0
    %v4788 = vpop.f32.mrf.mxu0
    %v4789 = vpop.f32.mrf.mxu0
    %4790 = vdwg.mxu0
    %4791 = vmatprep.subr.bf16.mxu0 0
    %4792 = vmatpush1.bf16.msra.mxu0 %v4294
    %4793 = vmatprep.subr.bf16.mxu0 0
    %4794 = vmatpush1.bf16.msra.mxu0 %v4293
    %4795 = vmatprep.subr.bf16.mxu0 0
    %4796 = vmatpush1.bf16.msra.mxu0 %v4292
    %4797 = vmatprep.subr.bf16.mxu0 0
    %4798 = vmatpush1.bf16.msra.mxu0 %v4291
    %4799 = vmatprep.subr.bf16.mxu0 0
    %4800 = vmatpush1.bf16.msra.mxu0 %v4290
    %4801 = vmatprep.subr.bf16.mxu0 0
    %4802 = vmatpush1.bf16.msra.mxu0 %v4289
    %4803 = vmatprep.subr.bf16.mxu0 0
    %4804 = vmatpush1.bf16.msra.mxu0 %v4288
    %4805 = vmatprep.subr.bf16.mxu0 0
    %4806 = vmatpush1.bf16.msra.mxu0 %v4287
    %4807 = vmatprep.subr.bf16.mxu0 0
    %4808 = vmatpush2.bf16.msra.mxu0 %v4302
    %4809 = vmatprep.subr.bf16.mxu0 0
    %4810 = vmatpush2.bf16.msra.mxu0 %v4301
    %4811 = vmatprep.subr.bf16.mxu0 0
    %4812 = vmatpush2.bf16.msra.mxu0 %v4300
    %4813 = vmatprep.subr.bf16.mxu0 0
    %4814 = vmatpush2.bf16.msra.mxu0 %v4299
    %4815 = vmatprep.subr.bf16.mxu0 0
    %4816 = vmatpush2.bf16.msra.mxu0 %v4298
    %4817 = vmatprep.subr.bf16.mxu0 0
    %4818 = vmatpush2.bf16.msra.mxu0 %v4297
    %4819 = vmatprep.subr.bf16.mxu0 0
    %4820 = vmatpush2.bf16.msra.mxu0 %v4296
    %4821 = vmatprep.subr.bf16.mxu0 0
    %4822 = vmatpush2.bf16.msra.mxu0 %v4295
    %4823 = vmatprep.mubr.bf16.mxu0 %v3161
    %4824 = vmatmul.mubr.bf16.gmra.mxu0 %v3160
    %v4825 = vpop.f32.mrf.mxu0
    %v4826 = vadd.f32 %v4786, %v4825
    %v4827 = vpop.f32.mrf.mxu0
    %v4828 = vpop.f32.mrf.mxu0
    %v4829 = vpop.f32.mrf.mxu0
    %4830 = vdwg.mxu0
    %4831 = vmatprep.subr.bf16.mxu0 0
    %4832 = vmatpush1.bf16.msra.mxu0 %v4310
    %4833 = vmatprep.subr.bf16.mxu0 0
    %4834 = vmatpush1.bf16.msra.mxu0 %v4309
    %4835 = vmatprep.subr.bf16.mxu0 0
    %4836 = vmatpush1.bf16.msra.mxu0 %v4308
    %4837 = vmatprep.subr.bf16.mxu0 0
    %4838 = vmatpush1.bf16.msra.mxu0 %v4307
    %4839 = vmatprep.subr.bf16.mxu0 0
    %4840 = vmatpush1.bf16.msra.mxu0 %v4306
    %4841 = vmatprep.subr.bf16.mxu0 0
    %4842 = vmatpush1.bf16.msra.mxu0 %v4305
    %4843 = vmatprep.subr.bf16.mxu0 0
    %4844 = vmatpush1.bf16.msra.mxu0 %v4304
    %4845 = vmatprep.subr.bf16.mxu0 0
    %4846 = vmatpush1.bf16.msra.mxu0 %v4303
    %4847 = vmatprep.subr.bf16.mxu0 0
    %4848 = vmatpush2.bf16.msra.mxu0 %v4318
    %4849 = vmatprep.subr.bf16.mxu0 0
    %4850 = vmatpush2.bf16.msra.mxu0 %v4317
    %4851 = vmatprep.subr.bf16.mxu0 0
    %4852 = vmatpush2.bf16.msra.mxu0 %v4316
    %4853 = vmatprep.subr.bf16.mxu0 0
    %4854 = vmatpush2.bf16.msra.mxu0 %v4315
    %4855 = vmatprep.subr.bf16.mxu0 0
    %4856 = vmatpush2.bf16.msra.mxu0 %v4314
    %4857 = vmatprep.subr.bf16.mxu0 0
    %4858 = vmatpush2.bf16.msra.mxu0 %v4313
    %4859 = vmatprep.subr.bf16.mxu0 0
    %4860 = vmatpush2.bf16.msra.mxu0 %v4312
    %4861 = vmatprep.subr.bf16.mxu0 0
    %4862 = vmatpush2.bf16.msra.mxu0 %v4311
    %4863 = vmatprep.mubr.bf16.mxu0 %v3163
    %4864 = vmatmul.mubr.bf16.gmra.mxu0 %v3162
    %v4865 = vpop.f32.mrf.mxu0
    %v4866 = vadd.f32 %v4826, %v4865
    %v4867 = vpop.f32.mrf.mxu0
    %v4868 = vpop.f32.mrf.mxu0
    %v4869 = vpop.f32.mrf.mxu0
    %4870 = vdwg.mxu0
    %4871 = vmatprep.subr.bf16.mxu0 0
    %4872 = vmatpush1.bf16.msra.mxu0 %v4326
    %4873 = vmatprep.subr.bf16.mxu0 0
    %4874 = vmatpush1.bf16.msra.mxu0 %v4325
    %4875 = vmatprep.subr.bf16.mxu0 0
    %4876 = vmatpush1.bf16.msra.mxu0 %v4324
    %4877 = vmatprep.subr.bf16.mxu0 0
    %4878 = vmatpush1.bf16.msra.mxu0 %v4323
    %4879 = vmatprep.subr.bf16.mxu0 0
    %4880 = vmatpush1.bf16.msra.mxu0 %v4322
    %4881 = vmatprep.subr.bf16.mxu0 0
    %4882 = vmatpush1.bf16.msra.mxu0 %v4321
    %4883 = vmatprep.subr.bf16.mxu0 0
    %4884 = vmatpush1.bf16.msra.mxu0 %v4320
    %4885 = vmatprep.subr.bf16.mxu0 0
    %4886 = vmatpush1.bf16.msra.mxu0 %v4319
    %4887 = vmatprep.subr.bf16.mxu0 0
    %4888 = vmatpush2.bf16.msra.mxu0 %v4334
    %4889 = vmatprep.subr.bf16.mxu0 0
    %4890 = vmatpush2.bf16.msra.mxu0 %v4333
    %4891 = vmatprep.subr.bf16.mxu0 0
    %4892 = vmatpush2.bf16.msra.mxu0 %v4332
    %4893 = vmatprep.subr.bf16.mxu0 0
    %4894 = vmatpush2.bf16.msra.mxu0 %v4331
    %4895 = vmatprep.subr.bf16.mxu0 0
    %4896 = vmatpush2.bf16.msra.mxu0 %v4330
    %4897 = vmatprep.subr.bf16.mxu0 0
    %4898 = vmatpush2.bf16.msra.mxu0 %v4329
    %4899 = vmatprep.subr.bf16.mxu0 0
    %4900 = vmatpush2.bf16.msra.mxu0 %v4328
    %4901 = vmatprep.subr.bf16.mxu0 0
    %4902 = vmatpush2.bf16.msra.mxu0 %v4327
    %4903 = vmatprep.mubr.bf16.mxu0 %v3165
    %4904 = vmatmul.mubr.bf16.gmra.mxu0 %v3164
    %v4905 = vpop.f32.mrf.mxu0
    %v4906 = vadd.f32 %v4866, %v4905
    %v4907 = vpop.f32.mrf.mxu0
    %v4908 = vpop.f32.mrf.mxu0
    %v4909 = vpop.f32.mrf.mxu0
    %4910 = vdwg.mxu0
    %4911 = vmatprep.subr.bf16.mxu0 0
    %4912 = vmatpush1.bf16.msra.mxu0 %v4342
    %4913 = vmatprep.subr.bf16.mxu0 0
    %4914 = vmatpush1.bf16.msra.mxu0 %v4341
    %4915 = vmatprep.subr.bf16.mxu0 0
    %4916 = vmatpush1.bf16.msra.mxu0 %v4340
    %4917 = vmatprep.subr.bf16.mxu0 0
    %4918 = vmatpush1.bf16.msra.mxu0 %v4339
    %4919 = vmatprep.subr.bf16.mxu0 0
    %4920 = vmatpush1.bf16.msra.mxu0 %v4338
    %4921 = vmatprep.subr.bf16.mxu0 0
    %4922 = vmatpush1.bf16.msra.mxu0 %v4337
    %4923 = vmatprep.subr.bf16.mxu0 0
    %4924 = vmatpush1.bf16.msra.mxu0 %v4336
    %4925 = vmatprep.subr.bf16.mxu0 0
    %4926 = vmatpush1.bf16.msra.mxu0 %v4335
    %4927 = vmatprep.subr.bf16.mxu0 0
    %4928 = vmatpush2.bf16.msra.mxu0 0
    %4929 = vmatprep.subr.bf16.mxu0 0
    %4930 = vmatpush2.bf16.msra.mxu0 0
    %4931 = vmatprep.subr.bf16.mxu0 0
    %4932 = vmatpush2.bf16.msra.mxu0 0
    %4933 = vmatprep.subr.bf16.mxu0 0
    %4934 = vmatpush2.bf16.msra.mxu0 0
    %4935 = vmatprep.subr.bf16.mxu0 0
    %4936 = vmatpush2.bf16.msra.mxu0 0
    %4937 = vmatprep.subr.bf16.mxu0 0
    %4938 = vmatpush2.bf16.msra.mxu0 0
    %4939 = vmatprep.subr.bf16.mxu0 0
    %4940 = vmatpush2.bf16.msra.mxu0 0
    %4941 = vmatprep.subr.bf16.mxu0 0
    %4942 = vmatpush2.bf16.msra.mxu0 0
    %4943 = vmatprep.mubr.bf16.mxu0 0
    %4944 = vmatmul.mubr.bf16.gmra.mxu0 %v3166
    %v4945 = vpop.f32.mrf.mxu0
    %v4946 = vadd.f32 %v4906, %v4945
    %v4947 = vpop.f32.mrf.mxu0
    %v4948 = vpop.f32.mrf.mxu0
    %v4949 = vpop.f32.mrf.mxu0
    %4950 = vdwg.mxu0
    %v4951 = vmax.f32 %v4946, 0.0
    %v4952 = vpack.c.bf16 %v4951, %v4951
    %v4953 = vld [vmem:[%s5] sm:$0xf]
    %v4954 = vld [vmem:[%s5 + $0x4] sm:$0xf]
    %v4957 = vunpack.c.l.b16 %v4953
    %v4958 = vunpack.c.l.b16 %v4954
    %v4959 = vpack.c.b16 %v4958, %v4957
    %vm4961 = vcmask 130048
    %v4963 = vsel %vm4961, %v4952, 0
    %4965 = vmatprep.subr.bf16.mxu0 0
    %4966 = vmatpush1.bf16.msra.mxu0 0
    %4967 = vmatprep.subr.bf16.mxu0 0
    %4968 = vmatpush1.bf16.msra.mxu0 0
    %4969 = vmatprep.subr.bf16.mxu0 0
    %4970 = vmatpush1.bf16.msra.mxu0 0
    %4971 = vmatprep.subr.bf16.mxu0 0
    %4972 = vmatpush1.bf16.msra.mxu0 0
    %4973 = vmatprep.subr.bf16.mxu0 0
    %4974 = vmatpush1.bf16.msra.mxu0 0
    %4975 = vmatprep.subr.bf16.mxu0 0
    %4976 = vmatpush1.bf16.msra.mxu0 0
    %4977 = vmatprep.subr.bf16.mxu0 0
    %4978 = vmatpush1.bf16.msra.mxu0 0
    %4979 = vmatprep.subr.bf16.mxu0 0
    %4980 = vmatpush1.bf16.msra.mxu0 %v4959
    %4981 = vmatprep.subr.bf16.mxu0 0
    %4982 = vmatpush2.bf16.msra.mxu0 0
    %4983 = vmatprep.subr.bf16.mxu0 0
    %4984 = vmatpush2.bf16.msra.mxu0 0
    %4985 = vmatprep.subr.bf16.mxu0 0
    %4986 = vmatpush2.bf16.msra.mxu0 0
    %4987 = vmatprep.subr.bf16.mxu0 0
    %4988 = vmatpush2.bf16.msra.mxu0 0
    %4989 = vmatprep.subr.bf16.mxu0 0
    %4990 = vmatpush2.bf16.msra.mxu0 0
    %4991 = vmatprep.subr.bf16.mxu0 0
    %4992 = vmatpush2.bf16.msra.mxu0 0
    %4993 = vmatprep.subr.bf16.mxu0 0
    %4994 = vmatpush2.bf16.msra.mxu0 0
    %4995 = vmatprep.subr.bf16.mxu0 0
    %4996 = vmatpush2.bf16.msra.mxu0 0
    %4997 = vmatprep.mubr.bf16.mxu0 0
    %4998 = vmatmul.mubr.bf16.gmra.mxu0 %v4963
    %v4999 = vpop.f32.mrf.mxu0
    %v5000 = vadd.f32 0.0, %v4999
    %v5001 = vpop.f32.mrf.mxu0
    %v5002 = vpop.f32.mrf.mxu0
    %v5003 = vpop.f32.mrf.mxu0
    %5004 = vdwg.mxu0
    %v5005 = vxor.u32 %v5000, 2147483648
    %v5006 = vmul.f32 %v5005, 1.442695
    %v5007 = vpow.pop %v5006
    %v5008 = vadd.f32 %v5007, 1.0
    %v5009 = vrcp.pop %v5008
    %v5010 = vmul.f32 1.0, %v5009
    %v5011 = vpack.c.bf16 %v5010, %v5010
    %v5012 = vld [vmem:[%s6] sm:$0xff]
    %v5013 = vld [vmem:[%s6 + $0x8] sm:$0xff]
    %v5014 = vld [vmem:[%s6 + $0x10] sm:$0xff]
    %v5015 = vld [vmem:[%s6 + $0x18] sm:$0xff]
    %v5016 = vld [vmem:[%s6 + $0x20] sm:$0xff]
    %v5017 = vld [vmem:[%s6 + $0x28] sm:$0xff]
    %v5018 = vld [vmem:[%s6 + $0x30] sm:$0xff]
    %v5019 = vld [vmem:[%s6 + $0x38] sm:$0xff]
    %v5020 = vld [vmem:[%s6 + $0x40] sm:$0xff]
    %v5021 = vld [vmem:[%s6 + $0x48] sm:$0xff]
    %v5022 = vld [vmem:[%s6 + $0x50] sm:$0xf]
    %v5023 = vld [vmem:[%s6 + $0x54] sm:$0xff]
    %v5024 = vld [vmem:[%s6 + $0x5c] sm:$0xff]
    %v5025 = vld [vmem:[%s6 + $0x64] sm:$0xff]
    %v5026 = vld [vmem:[%s6 + $0x6c] sm:$0xff]
    %v5027 = vld [vmem:[%s6 + $0x74] sm:$0xff]
    %v5028 = vld [vmem:[%s6 + $0x7c] sm:$0xff]
    %v5029 = vld [vmem:[%s6 + $0x84] sm:$0xff]
    %v5030 = vld [vmem:[%s6 + $0x8c] sm:$0xff]
    %v5031 = vld [vmem:[%s6 + $0x94] sm:$0xff]
    %v5032 = vld [vmem:[%s6 + $0x9c] sm:$0xff]
    %v5033 = vld [vmem:[%s6 + $0xa4] sm:$0xf]
    %v5034 = vld [vmem:[%s6 + $0xa8] sm:$0xff]
    %v5035 = vld [vmem:[%s6 + $0xb0] sm:$0xff]
    %v5036 = vld [vmem:[%s6 + $0xb8] sm:$0xff]
    %v5037 = vld [vmem:[%s6 + $0xc0] sm:$0xff]
    %v5038 = vld [vmem:[%s6 + $0xc8] sm:$0xff]
    %v5039 = vld [vmem:[%s6 + $0xd0] sm:$0xff]
    %v5040 = vld [vmem:[%s6 + $0xd8] sm:$0xff]
    %v5041 = vld [vmem:[%s6 + $0xe0] sm:$0xff]
    %v5042 = vld [vmem:[%s6 + $0xe8] sm:$0xff]
    %v5043 = vld [vmem:[%s6 + $0xf0] sm:$0xff]
    %v5044 = vld [vmem:[%s6 + $0xf8] sm:$0xf]
    %v5045 = vld [vmem:[%s6 + $0xfc] sm:$0xff]
    %v5046 = vld [vmem:[%s6 + $0x104] sm:$0xff]
    %v5047 = vld [vmem:[%s6 + $0x10c] sm:$0xff]
    %v5048 = vld [vmem:[%s6 + $0x114] sm:$0xff]
    %v5049 = vld [vmem:[%s6 + $0x11c] sm:$0xff]
    %v5050 = vld [vmem:[%s6 + $0x124] sm:$0xff]
    %v5051 = vld [vmem:[%s6 + $0x12c] sm:$0xff]
    %v5052 = vld [vmem:[%s6 + $0x134] sm:$0xff]
    %v5053 = vld [vmem:[%s6 + $0x13c] sm:$0xff]
    %v5054 = vld [vmem:[%s6 + $0x144] sm:$0xff]
    %v5055 = vld [vmem:[%s6 + $0x14c] sm:$0xf]
    %v5056 = vld [vmem:[%s6 + $0x150] sm:$0xff]
    %v5057 = vld [vmem:[%s6 + $0x158] sm:$0xff]
    %v5058 = vld [vmem:[%s6 + $0x160] sm:$0xff]
    %v5059 = vld [vmem:[%s6 + $0x168] sm:$0xff]
    %v5060 = vld [vmem:[%s6 + $0x170] sm:$0xff]
    %v5061 = vld [vmem:[%s6 + $0x178] sm:$0xff]
    %v5062 = vld [vmem:[%s6 + $0x180] sm:$0xff]
    %v5063 = vld [vmem:[%s6 + $0x188] sm:$0xff]
    %v5064 = vld [vmem:[%s6 + $0x190] sm:$0xff]
    %v5065 = vld [vmem:[%s6 + $0x198] sm:$0xff]
    %v5066 = vld [vmem:[%s6 + $0x1a0] sm:$0xf]
    %v5067 = vld [vmem:[%s6 + $0x1a4] sm:$0xff]
    %v5068 = vld [vmem:[%s6 + $0x1ac] sm:$0xff]
    %v5069 = vld [vmem:[%s6 + $0x1b4] sm:$0xff]
    %v5070 = vld [vmem:[%s6 + $0x1bc] sm:$0xff]
    %v5071 = vld [vmem:[%s6 + $0x1c4] sm:$0xff]
    %v5072 = vld [vmem:[%s6 + $0x1cc] sm:$0xff]
    %v5073 = vld [vmem:[%s6 + $0x1d4] sm:$0xff]
    %v5074 = vld [vmem:[%s6 + $0x1dc] sm:$0xff]
    %v5075 = vld [vmem:[%s6 + $0x1e4] sm:$0xff]
    %v5076 = vld [vmem:[%s6 + $0x1ec] sm:$0xff]
    %v5077 = vld [vmem:[%s6 + $0x1f4] sm:$0xf]
    %v5078 = vld [vmem:[%s6 + $0x1f8] sm:$0xff]
    %v5079 = vld [vmem:[%s6 + $0x200] sm:$0xff]
    %v5080 = vld [vmem:[%s6 + $0x208] sm:$0xff]
    %v5081 = vld [vmem:[%s6 + $0x210] sm:$0xff]
    %v5082 = vld [vmem:[%s6 + $0x218] sm:$0xff]
    %v5083 = vld [vmem:[%s6 + $0x220] sm:$0xff]
    %v5084 = vld [vmem:[%s6 + $0x228] sm:$0xff]
    %v5085 = vld [vmem:[%s6 + $0x230] sm:$0xff]
    %v5086 = vld [vmem:[%s6 + $0x238] sm:$0xff]
    %v5087 = vld [vmem:[%s6 + $0x240] sm:$0xff]
    %v5088 = vld [vmem:[%s6 + $0x248] sm:$0xf]
    %v5089 = vld [vmem:[%s6 + $0x24c] sm:$0xff]
    %v5090 = vld [vmem:[%s6 + $0x254] sm:$0xff]
    %v5091 = vld [vmem:[%s6 + $0x25c] sm:$0xff]
    %v5092 = vld [vmem:[%s6 + $0x264] sm:$0xff]
    %v5093 = vld [vmem:[%s6 + $0x26c] sm:$0xff]
    %v5094 = vld [vmem:[%s6 + $0x274] sm:$0xff]
    %v5095 = vld [vmem:[%s6 + $0x27c] sm:$0xff]
    %v5096 = vld [vmem:[%s6 + $0x284] sm:$0xff]
    %v5097 = vld [vmem:[%s6 + $0x28c] sm:$0xff]
    %v5098 = vld [vmem:[%s6 + $0x294] sm:$0xff]
    %v5099 = vld [vmem:[%s6 + $0x29c] sm:$0xf]
    %v5188 = vunpack.c.l.b16 %v5012
    %v5189 = vunpack.c.h.b16 %v5012
    %v5190 = vunpack.c.l.b16 %v5013
    %v5191 = vunpack.c.h.b16 %v5013
    %v5192 = vunpack.c.l.b16 %v5014
    %v5193 = vunpack.c.h.b16 %v5014
    %v5194 = vunpack.c.l.b16 %v5015
    %v5195 = vunpack.c.h.b16 %v5015
    %v5196 = vunpack.c.l.b16 %v5016
    %v5197 = vunpack.c.h.b16 %v5016
    %v5198 = vunpack.c.l.b16 %v5017
    %v5199 = vunpack.c.h.b16 %v5017
    %v5200 = vunpack.c.l.b16 %v5018
    %v5201 = vunpack.c.h.b16 %v5018
    %v5202 = vunpack.c.l.b16 %v5019
    %v5203 = vunpack.c.h.b16 %v5019
    %v5204 = vunpack.c.l.b16 %v5020
    %v5205 = vunpack.c.h.b16 %v5020
    %v5206 = vunpack.c.l.b16 %v5021
    %v5207 = vunpack.c.h.b16 %v5021
    %v5208 = vunpack.c.l.b16 %v5022
    %v5209 = vunpack.c.l.b16 %v5023
    %v5210 = vunpack.c.h.b16 %v5023
    %v5211 = vunpack.c.l.b16 %v5024
    %v5212 = vunpack.c.h.b16 %v5024
    %v5213 = vunpack.c.l.b16 %v5025
    %v5214 = vunpack.c.h.b16 %v5025
    %v5215 = vunpack.c.l.b16 %v5026
    %v5216 = vunpack.c.h.b16 %v5026
    %v5217 = vunpack.c.l.b16 %v5027
    %v5218 = vunpack.c.h.b16 %v5027
    %v5219 = vunpack.c.l.b16 %v5028
    %v5220 = vunpack.c.h.b16 %v5028
    %v5221 = vunpack.c.l.b16 %v5029
    %v5222 = vunpack.c.h.b16 %v5029
    %v5223 = vunpack.c.l.b16 %v5030
    %v5224 = vunpack.c.h.b16 %v5030
    %v5225 = vunpack.c.l.b16 %v5031
    %v5226 = vunpack.c.h.b16 %v5031
    %v5227 = vunpack.c.l.b16 %v5032
    %v5228 = vunpack.c.h.b16 %v5032
    %v5229 = vunpack.c.l.b16 %v5033
    %v5230 = vunpack.c.l.b16 %v5034
    %v5231 = vunpack.c.h.b16 %v5034
    %v5232 = vunpack.c.l.b16 %v5035
    %v5233 = vunpack.c.h.b16 %v5035
    %v5234 = vunpack.c.l.b16 %v5036
    %v5235 = vunpack.c.h.b16 %v5036
    %v5236 = vunpack.c.l.b16 %v5037
    %v5237 = vunpack.c.h.b16 %v5037
    %v5238 = vunpack.c.l.b16 %v5038
    %v5239 = vunpack.c.h.b16 %v5038
    %v5240 = vunpack.c.l.b16 %v5039
    %v5241 = vunpack.c.h.b16 %v5039
    %v5242 = vunpack.c.l.b16 %v5040
    %v5243 = vunpack.c.h.b16 %v5040
    %v5244 = vunpack.c.l.b16 %v5041
    %v5245 = vunpack.c.h.b16 %v5041
    %v5246 = vunpack.c.l.b16 %v5042
    %v5247 = vunpack.c.h.b16 %v5042
    %v5248 = vunpack.c.l.b16 %v5043
    %v5249 = vunpack.c.h.b16 %v5043
    %v5250 = vunpack.c.l.b16 %v5044
    %v5251 = vunpack.c.l.b16 %v5045
    %v5252 = vunpack.c.h.b16 %v5045
    %v5253 = vunpack.c.l.b16 %v5046
    %v5254 = vunpack.c.h.b16 %v5046
    %v5255 = vunpack.c.l.b16 %v5047
    %v5256 = vunpack.c.h.b16 %v5047
    %v5257 = vunpack.c.l.b16 %v5048
    %v5258 = vunpack.c.h.b16 %v5048
    %v5259 = vunpack.c.l.b16 %v5049
    %v5260 = vunpack.c.h.b16 %v5049
    %v5261 = vunpack.c.l.b16 %v5050
    %v5262 = vunpack.c.h.b16 %v5050
    %v5263 = vunpack.c.l.b16 %v5051
    %v5264 = vunpack.c.h.b16 %v5051
    %v5265 = vunpack.c.l.b16 %v5052
    %v5266 = vunpack.c.h.b16 %v5052
    %v5267 = vunpack.c.l.b16 %v5053
    %v5268 = vunpack.c.h.b16 %v5053
    %v5269 = vunpack.c.l.b16 %v5054
    %v5270 = vunpack.c.h.b16 %v5054
    %v5271 = vunpack.c.l.b16 %v5055
    %v5272 = vunpack.c.l.b16 %v5056
    %v5273 = vunpack.c.h.b16 %v5056
    %v5274 = vunpack.c.l.b16 %v5057
    %v5275 = vunpack.c.h.b16 %v5057
    %v5276 = vunpack.c.l.b16 %v5058
    %v5277 = vunpack.c.h.b16 %v5058
    %v5278 = vunpack.c.l.b16 %v5059
    %v5279 = vunpack.c.h.b16 %v5059
    %v5280 = vunpack.c.l.b16 %v5060
    %v5281 = vunpack.c.h.b16 %v5060
    %v5282 = vunpack.c.l.b16 %v5061
    %v5283 = vunpack.c.h.b16 %v5061
    %v5284 = vunpack.c.l.b16 %v5062
    %v5285 = vunpack.c.h.b16 %v5062
    %v5286 = vunpack.c.l.b16 %v5063
    %v5287 = vunpack.c.h.b16 %v5063
    %v5288 = vunpack.c.l.b16 %v5064
    %v5289 = vunpack.c.h.b16 %v5064
    %v5290 = vunpack.c.l.b16 %v5065
    %v5291 = vunpack.c.h.b16 %v5065
    %v5292 = vunpack.c.l.b16 %v5066
    %v5293 = vunpack.c.l.b16 %v5067
    %v5294 = vunpack.c.h.b16 %v5067
    %v5295 = vunpack.c.l.b16 %v5068
    %v5296 = vunpack.c.h.b16 %v5068
    %v5297 = vunpack.c.l.b16 %v5069
    %v5298 = vunpack.c.h.b16 %v5069
    %v5299 = vunpack.c.l.b16 %v5070
    %v5300 = vunpack.c.h.b16 %v5070
    %v5301 = vunpack.c.l.b16 %v5071
    %v5302 = vunpack.c.h.b16 %v5071
    %v5303 = vunpack.c.l.b16 %v5072
    %v5304 = vunpack.c.h.b16 %v5072
    %v5305 = vunpack.c.l.b16 %v5073
    %v5306 = vunpack.c.h.b16 %v5073
    %v5307 = vunpack.c.l.b16 %v5074
    %v5308 = vunpack.c.h.b16 %v5074
    %v5309 = vunpack.c.l.b16 %v5075
    %v5310 = vunpack.c.h.b16 %v5075
    %v5311 = vunpack.c.l.b16 %v5076
    %v5312 = vunpack.c.h.b16 %v5076
    %v5313 = vunpack.c.l.b16 %v5077
    %v5314 = vunpack.c.l.b16 %v5078
    %v5315 = vunpack.c.h.b16 %v5078
    %v5316 = vunpack.c.l.b16 %v5079
    %v5317 = vunpack.c.h.b16 %v5079
    %v5318 = vunpack.c.l.b16 %v5080
    %v5319 = vunpack.c.h.b16 %v5080
    %v5320 = vunpack.c.l.b16 %v5081
    %v5321 = vunpack.c.h.b16 %v5081
    %v5322 = vunpack.c.l.b16 %v5082
    %v5323 = vunpack.c.h.b16 %v5082
    %v5324 = vunpack.c.l.b16 %v5083
    %v5325 = vunpack.c.h.b16 %v5083
    %v5326 = vunpack.c.l.b16 %v5084
    %v5327 = vunpack.c.h.b16 %v5084
    %v5328 = vunpack.c.l.b16 %v5085
    %v5329 = vunpack.c.h.b16 %v5085
    %v5330 = vunpack.c.l.b16 %v5086
    %v5331 = vunpack.c.h.b16 %v5086
    %v5332 = vunpack.c.l.b16 %v5087
    %v5333 = vunpack.c.h.b16 %v5087
    %v5334 = vunpack.c.l.b16 %v5088
    %v5335 = vunpack.c.l.b16 %v5089
    %v5336 = vunpack.c.h.b16 %v5089
    %v5337 = vunpack.c.l.b16 %v5090
    %v5338 = vunpack.c.h.b16 %v5090
    %v5339 = vunpack.c.l.b16 %v5091
    %v5340 = vunpack.c.h.b16 %v5091
    %v5341 = vunpack.c.l.b16 %v5092
    %v5342 = vunpack.c.h.b16 %v5092
    %v5343 = vunpack.c.l.b16 %v5093
    %v5344 = vunpack.c.h.b16 %v5093
    %v5345 = vunpack.c.l.b16 %v5094
    %v5346 = vunpack.c.h.b16 %v5094
    %v5347 = vunpack.c.l.b16 %v5095
    %v5348 = vunpack.c.h.b16 %v5095
    %v5349 = vunpack.c.l.b16 %v5096
    %v5350 = vunpack.c.h.b16 %v5096
    %v5351 = vunpack.c.l.b16 %v5097
    %v5352 = vunpack.c.h.b16 %v5097
    %v5353 = vunpack.c.l.b16 %v5098
    %v5354 = vunpack.c.h.b16 %v5098
    %v5355 = vunpack.c.l.b16 %v5099
    %v5356 = vpack.c.b16 %v5209, %v5188
    %v5357 = vpack.c.b16 %v5210, %v5189
    %v5358 = vpack.c.b16 %v5211, %v5190
    %v5359 = vpack.c.b16 %v5212, %v5191
    %v5360 = vpack.c.b16 %v5213, %v5192
    %v5361 = vpack.c.b16 %v5214, %v5193
    %v5362 = vpack.c.b16 %v5215, %v5194
    %v5363 = vpack.c.b16 %v5216, %v5195
    %v5364 = vpack.c.b16 %v5217, %v5196
    %v5365 = vpack.c.b16 %v5218, %v5197
    %v5366 = vpack.c.b16 %v5219, %v5198
    %v5367 = vpack.c.b16 %v5220, %v5199
    %v5368 = vpack.c.b16 %v5221, %v5200
    %v5369 = vpack.c.b16 %v5222, %v5201
    %v5370 = vpack.c.b16 %v5223, %v5202
    %v5371 = vpack.c.b16 %v5224, %v5203
    %v5372 = vpack.c.b16 %v5225, %v5204
    %v5373 = vpack.c.b16 %v5226, %v5205
    %v5374 = vpack.c.b16 %v5227, %v5206
    %v5375 = vpack.c.b16 %v5228, %v5207
    %v5376 = vpack.c.b16 %v5229, %v5208
    %v5377 = vpack.c.b16 %v5251, %v5230
    %v5378 = vpack.c.b16 %v5252, %v5231
    %v5379 = vpack.c.b16 %v5253, %v5232
    %v5380 = vpack.c.b16 %v5254, %v5233
    %v5381 = vpack.c.b16 %v5255, %v5234
    %v5382 = vpack.c.b16 %v5256, %v5235
    %v5383 = vpack.c.b16 %v5257, %v5236
    %v5384 = vpack.c.b16 %v5258, %v5237
    %v5385 = vpack.c.b16 %v5259, %v5238
    %v5386 = vpack.c.b16 %v5260, %v5239
    %v5387 = vpack.c.b16 %v5261, %v5240
    %v5388 = vpack.c.b16 %v5262, %v5241
    %v5389 = vpack.c.b16 %v5263, %v5242
    %v5390 = vpack.c.b16 %v5264, %v5243
    %v5391 = vpack.c.b16 %v5265, %v5244
    %v5392 = vpack.c.b16 %v5266, %v5245
    %v5393 = vpack.c.b16 %v5267, %v5246
    %v5394 = vpack.c.b16 %v5268, %v5247
    %v5395 = vpack.c.b16 %v5269, %v5248
    %v5396 = vpack.c.b16 %v5270, %v5249
    %v5397 = vpack.c.b16 %v5271, %v5250
    %v5398 = vpack.c.b16 %v5293, %v5272
    %v5399 = vpack.c.b16 %v5294, %v5273
    %v5400 = vpack.c.b16 %v5295, %v5274
    %v5401 = vpack.c.b16 %v5296, %v5275
    %v5402 = vpack.c.b16 %v5297, %v5276
    %v5403 = vpack.c.b16 %v5298, %v5277
    %v5404 = vpack.c.b16 %v5299, %v5278
    %v5405 = vpack.c.b16 %v5300, %v5279
    %v5406 = vpack.c.b16 %v5301, %v5280
    %v5407 = vpack.c.b16 %v5302, %v5281
    %v5408 = vpack.c.b16 %v5303, %v5282
    %v5409 = vpack.c.b16 %v5304, %v5283
    %v5410 = vpack.c.b16 %v5305, %v5284
    %v5411 = vpack.c.b16 %v5306, %v5285
    %v5412 = vpack.c.b16 %v5307, %v5286
    %v5413 = vpack.c.b16 %v5308, %v5287
    %v5414 = vpack.c.b16 %v5309, %v5288
    %v5415 = vpack.c.b16 %v5310, %v5289
    %v5416 = vpack.c.b16 %v5311, %v5290
    %v5417 = vpack.c.b16 %v5312, %v5291
    %v5418 = vpack.c.b16 %v5313, %v5292
    %v5419 = vpack.c.b16 %v5335, %v5314
    %v5420 = vpack.c.b16 %v5336, %v5315
    %v5421 = vpack.c.b16 %v5337, %v5316
    %v5422 = vpack.c.b16 %v5338, %v5317
    %v5423 = vpack.c.b16 %v5339, %v5318
    %v5424 = vpack.c.b16 %v5340, %v5319
    %v5425 = vpack.c.b16 %v5341, %v5320
    %v5426 = vpack.c.b16 %v5342, %v5321
    %v5427 = vpack.c.b16 %v5343, %v5322
    %v5428 = vpack.c.b16 %v5344, %v5323
    %v5429 = vpack.c.b16 %v5345, %v5324
    %v5430 = vpack.c.b16 %v5346, %v5325
    %v5431 = vpack.c.b16 %v5347, %v5326
    %v5432 = vpack.c.b16 %v5348, %v5327
    %v5433 = vpack.c.b16 %v5349, %v5328
    %v5434 = vpack.c.b16 %v5350, %v5329
    %v5435 = vpack.c.b16 %v5351, %v5330
    %v5436 = vpack.c.b16 %v5352, %v5331
    %v5437 = vpack.c.b16 %v5353, %v5332
    %v5438 = vpack.c.b16 %v5354, %v5333
    %v5439 = vpack.c.b16 %v5355, %v5334
    %vm5524 = vcmask 523264
    %v5526 = vsel %vm5524, %v5011, 0
    %5528 = vmatprep.subr.bf16.mxu0 0
    %5529 = vmatpush1.bf16.msra.mxu0 0
    %5530 = vmatprep.subr.bf16.mxu0 0
    %5531 = vmatpush1.bf16.msra.mxu0 0
    %5532 = vmatprep.subr.bf16.mxu0 0
    %5533 = vmatpush1.bf16.msra.mxu0 0
    %5534 = vmatprep.subr.bf16.mxu0 0
    %5535 = vmatpush1.bf16.msra.mxu0 0
    %5536 = vmatprep.subr.bf16.mxu0 %v5420
    %5537 = vmatpush1.bf16.msra.mxu0 %v5419
    %5538 = vmatprep.subr.bf16.mxu0 %v5399
    %5539 = vmatpush1.bf16.msra.mxu0 %v5398
    %5540 = vmatprep.subr.bf16.mxu0 %v5378
    %5541 = vmatpush1.bf16.msra.mxu0 %v5377
    %5542 = vmatprep.subr.bf16.mxu0 %v5357
    %5543 = vmatpush1.bf16.msra.mxu0 %v5356
    %5544 = vmatprep.subr.bf16.mxu0 0
    %5545 = vmatpush2.bf16.msra.mxu0 0
    %5546 = vmatprep.subr.bf16.mxu0 0
    %5547 = vmatpush2.bf16.msra.mxu0 0
    %5548 = vmatprep.subr.bf16.mxu0 0
    %5549 = vmatpush2.bf16.msra.mxu0 0
    %5550 = vmatprep.subr.bf16.mxu0 0
    %5551 = vmatpush2.bf16.msra.mxu0 0
    %5552 = vmatprep.subr.bf16.mxu0 0
    %5553 = vmatpush2.bf16.msra.mxu0 0
    %5554 = vmatprep.subr.bf16.mxu0 0
    %5555 = vmatpush2.bf16.msra.mxu0 0
    %5556 = vmatprep.subr.bf16.mxu0 0
    %5557 = vmatpush2.bf16.msra.mxu0 0
    %5558 = vmatprep.subr.bf16.mxu0 0
    %5559 = vmatpush2.bf16.msra.mxu0 0
    %5560 = vmatprep.mubr.bf16.mxu0 0
    %5561 = vmatmul.mubr.bf16.gmra.mxu0 %v5526
    %v5562 = vpop.f32.mrf.mxu0
    %v5563 = vadd.f32 0.0, %v5562
    %v5564 = vpop.f32.mrf.mxu0
    %v5565 = vadd.f32 0.0, %v5564
    %v5566 = vpop.f32.mrf.mxu0
    %v5567 = vpop.f32.mrf.mxu0
    %5568 = vdwg.mxu0
    %5569 = vmatprep.subr.bf16.mxu0 0
    %5570 = vmatpush1.bf16.msra.mxu0 0
    %5571 = vmatprep.subr.bf16.mxu0 0
    %5572 = vmatpush1.bf16.msra.mxu0 0
    %5573 = vmatprep.subr.bf16.mxu0 0
    %5574 = vmatpush1.bf16.msra.mxu0 0
    %5575 = vmatprep.subr.bf16.mxu0 0
    %5576 = vmatpush1.bf16.msra.mxu0 0
    %5577 = vmatprep.subr.bf16.mxu0 %v5422
    %5578 = vmatpush1.bf16.msra.mxu0 %v5421
    %5579 = vmatprep.subr.bf16.mxu0 %v5401
    %5580 = vmatpush1.bf16.msra.mxu0 %v5400
    %5581 = vmatprep.subr.bf16.mxu0 %v5380
    %5582 = vmatpush1.bf16.msra.mxu0 %v5379
    %5583 = vmatprep.subr.bf16.mxu0 %v5359
    %5584 = vmatpush1.bf16.msra.mxu0 %v5358
    %5585 = vmatprep.subr.bf16.mxu0 0
    %5586 = vmatpush2.bf16.msra.mxu0 0
    %5587 = vmatprep.subr.bf16.mxu0 0
    %5588 = vmatpush2.bf16.msra.mxu0 0
    %5589 = vmatprep.subr.bf16.mxu0 0
    %5590 = vmatpush2.bf16.msra.mxu0 0
    %5591 = vmatprep.subr.bf16.mxu0 0
    %5592 = vmatpush2.bf16.msra.mxu0 0
    %5593 = vmatprep.subr.bf16.mxu0 0
    %5594 = vmatpush2.bf16.msra.mxu0 0
    %5595 = vmatprep.subr.bf16.mxu0 0
    %5596 = vmatpush2.bf16.msra.mxu0 0
    %5597 = vmatprep.subr.bf16.mxu0 0
    %5598 = vmatpush2.bf16.msra.mxu0 0
    %5599 = vmatprep.subr.bf16.mxu0 0
    %5600 = vmatpush2.bf16.msra.mxu0 0
    %5601 = vmatprep.mubr.bf16.mxu0 0
    %5602 = vmatmul.mubr.bf16.gmra.mxu0 %v5526
    %v5603 = vpop.f32.mrf.mxu0
    %v5604 = vadd.f32 0.0, %v5603
    %v5605 = vpop.f32.mrf.mxu0
    %v5606 = vadd.f32 0.0, %v5605
    %v5607 = vpop.f32.mrf.mxu0
    %v5608 = vpop.f32.mrf.mxu0
    %5609 = vdwg.mxu0
    %5610 = vmatprep.subr.bf16.mxu0 0
    %5611 = vmatpush1.bf16.msra.mxu0 0
    %5612 = vmatprep.subr.bf16.mxu0 0
    %5613 = vmatpush1.bf16.msra.mxu0 0
    %5614 = vmatprep.subr.bf16.mxu0 0
    %5615 = vmatpush1.bf16.msra.mxu0 0
    %5616 = vmatprep.subr.bf16.mxu0 0
    %5617 = vmatpush1.bf16.msra.mxu0 0
    %5618 = vmatprep.subr.bf16.mxu0 %v5424
    %5619 = vmatpush1.bf16.msra.mxu0 %v5423
    %5620 = vmatprep.subr.bf16.mxu0 %v5403
    %5621 = vmatpush1.bf16.msra.mxu0 %v5402
    %5622 = vmatprep.subr.bf16.mxu0 %v5382
    %5623 = vmatpush1.bf16.msra.mxu0 %v5381
    %5624 = vmatprep.subr.bf16.mxu0 %v5361
    %5625 = vmatpush1.bf16.msra.mxu0 %v5360
    %5626 = vmatprep.subr.bf16.mxu0 0
    %5627 = vmatpush2.bf16.msra.mxu0 0
    %5628 = vmatprep.subr.bf16.mxu0 0
    %5629 = vmatpush2.bf16.msra.mxu0 0
    %5630 = vmatprep.subr.bf16.mxu0 0
    %5631 = vmatpush2.bf16.msra.mxu0 0
    %5632 = vmatprep.subr.bf16.mxu0 0
    %5633 = vmatpush2.bf16.msra.mxu0 0
    %5634 = vmatprep.subr.bf16.mxu0 0
    %5635 = vmatpush2.bf16.msra.mxu0 0
    %5636 = vmatprep.subr.bf16.mxu0 0
    %5637 = vmatpush2.bf16.msra.mxu0 0
    %5638 = vmatprep.subr.bf16.mxu0 0
    %5639 = vmatpush2.bf16.msra.mxu0 0
    %5640 = vmatprep.subr.bf16.mxu0 0
    %5641 = vmatpush2.bf16.msra.mxu0 0
    %5642 = vmatprep.mubr.bf16.mxu0 0
    %5643 = vmatmul.mubr.bf16.gmra.mxu0 %v5526
    %v5644 = vpop.f32.mrf.mxu0
    %v5645 = vadd.f32 0.0, %v5644
    %v5646 = vpop.f32.mrf.mxu0
    %v5647 = vadd.f32 0.0, %v5646
    %v5648 = vpop.f32.mrf.mxu0
    %v5649 = vpop.f32.mrf.mxu0
    %5650 = vdwg.mxu0
    %5651 = vmatprep.subr.bf16.mxu0 0
    %5652 = vmatpush1.bf16.msra.mxu0 0
    %5653 = vmatprep.subr.bf16.mxu0 0
    %5654 = vmatpush1.bf16.msra.mxu0 0
    %5655 = vmatprep.subr.bf16.mxu0 0
    %5656 = vmatpush1.bf16.msra.mxu0 0
    %5657 = vmatprep.subr.bf16.mxu0 0
    %5658 = vmatpush1.bf16.msra.mxu0 0
    %5659 = vmatprep.subr.bf16.mxu0 %v5426
    %5660 = vmatpush1.bf16.msra.mxu0 %v5425
    %5661 = vmatprep.subr.bf16.mxu0 %v5405
    %5662 = vmatpush1.bf16.msra.mxu0 %v5404
    %5663 = vmatprep.subr.bf16.mxu0 %v5384
    %5664 = vmatpush1.bf16.msra.mxu0 %v5383
    %5665 = vmatprep.subr.bf16.mxu0 %v5363
    %5666 = vmatpush1.bf16.msra.mxu0 %v5362
    %5667 = vmatprep.subr.bf16.mxu0 0
    %5668 = vmatpush2.bf16.msra.mxu0 0
    %5669 = vmatprep.subr.bf16.mxu0 0
    %5670 = vmatpush2.bf16.msra.mxu0 0
    %5671 = vmatprep.subr.bf16.mxu0 0
    %5672 = vmatpush2.bf16.msra.mxu0 0
    %5673 = vmatprep.subr.bf16.mxu0 0
    %5674 = vmatpush2.bf16.msra.mxu0 0
    %5675 = vmatprep.subr.bf16.mxu0 0
    %5676 = vmatpush2.bf16.msra.mxu0 0
    %5677 = vmatprep.subr.bf16.mxu0 0
    %5678 = vmatpush2.bf16.msra.mxu0 0
    %5679 = vmatprep.subr.bf16.mxu0 0
    %5680 = vmatpush2.bf16.msra.mxu0 0
    %5681 = vmatprep.subr.bf16.mxu0 0
    %5682 = vmatpush2.bf16.msra.mxu0 0
    %5683 = vmatprep.mubr.bf16.mxu0 0
    %5684 = vmatmul.mubr.bf16.gmra.mxu0 %v5526
    %v5685 = vpop.f32.mrf.mxu0
    %v5686 = vadd.f32 0.0, %v5685
    %v5687 = vpop.f32.mrf.mxu0
    %v5688 = vadd.f32 0.0, %v5687
    %v5689 = vpop.f32.mrf.mxu0
    %v5690 = vpop.f32.mrf.mxu0
    %5691 = vdwg.mxu0
    %5692 = vmatprep.subr.bf16.mxu0 0
    %5693 = vmatpush1.bf16.msra.mxu0 0
    %5694 = vmatprep.subr.bf16.mxu0 0
    %5695 = vmatpush1.bf16.msra.mxu0 0
    %5696 = vmatprep.subr.bf16.mxu0 0
    %5697 = vmatpush1.bf16.msra.mxu0 0
    %5698 = vmatprep.subr.bf16.mxu0 0
    %5699 = vmatpush1.bf16.msra.mxu0 0
    %5700 = vmatprep.subr.bf16.mxu0 %v5428
    %5701 = vmatpush1.bf16.msra.mxu0 %v5427
    %5702 = vmatprep.subr.bf16.mxu0 %v5407
    %5703 = vmatpush1.bf16.msra.mxu0 %v5406
    %5704 = vmatprep.subr.bf16.mxu0 %v5386
    %5705 = vmatpush1.bf16.msra.mxu0 %v5385
    %5706 = vmatprep.subr.bf16.mxu0 %v5365
    %5707 = vmatpush1.bf16.msra.mxu0 %v5364
    %5708 = vmatprep.subr.bf16.mxu0 0
    %5709 = vmatpush2.bf16.msra.mxu0 0
    %5710 = vmatprep.subr.bf16.mxu0 0
    %5711 = vmatpush2.bf16.msra.mxu0 0
    %5712 = vmatprep.subr.bf16.mxu0 0
    %5713 = vmatpush2.bf16.msra.mxu0 0
    %5714 = vmatprep.subr.bf16.mxu0 0
    %5715 = vmatpush2.bf16.msra.mxu0 0
    %5716 = vmatprep.subr.bf16.mxu0 0
    %5717 = vmatpush2.bf16.msra.mxu0 0
    %5718 = vmatprep.subr.bf16.mxu0 0
    %5719 = vmatpush2.bf16.msra.mxu0 0
    %5720 = vmatprep.subr.bf16.mxu0 0
    %5721 = vmatpush2.bf16.msra.mxu0 0
    %5722 = vmatprep.subr.bf16.mxu0 0
    %5723 = vmatpush2.bf16.msra.mxu0 0
    %5724 = vmatprep.mubr.bf16.mxu0 0
    %5725 = vmatmul.mubr.bf16.gmra.mxu0 %v5526
    %v5726 = vpop.f32.mrf.mxu0
    %v5727 = vadd.f32 0.0, %v5726
    %v5728 = vpop.f32.mrf.mxu0
    %v5729 = vadd.f32 0.0, %v5728
    %v5730 = vpop.f32.mrf.mxu0
    %v5731 = vpop.f32.mrf.mxu0
    %5732 = vdwg.mxu0
    %5733 = vmatprep.subr.bf16.mxu0 0
    %5734 = vmatpush1.bf16.msra.mxu0 0
    %5735 = vmatprep.subr.bf16.mxu0 0
    %5736 = vmatpush1.bf16.msra.mxu0 0
    %5737 = vmatprep.subr.bf16.mxu0 0
    %5738 = vmatpush1.bf16.msra.mxu0 0
    %5739 = vmatprep.subr.bf16.mxu0 0
    %5740 = vmatpush1.bf16.msra.mxu0 0
    %5741 = vmatprep.subr.bf16.mxu0 %v5430
    %5742 = vmatpush1.bf16.msra.mxu0 %v5429
    %5743 = vmatprep.subr.bf16.mxu0 %v5409
    %5744 = vmatpush1.bf16.msra.mxu0 %v5408
    %5745 = vmatprep.subr.bf16.mxu0 %v5388
    %5746 = vmatpush1.bf16.msra.mxu0 %v5387
    %5747 = vmatprep.subr.bf16.mxu0 %v5367
    %5748 = vmatpush1.bf16.msra.mxu0 %v5366
    %5749 = vmatprep.subr.bf16.mxu0 0
    %5750 = vmatpush2.bf16.msra.mxu0 0
    %5751 = vmatprep.subr.bf16.mxu0 0
    %5752 = vmatpush2.bf16.msra.mxu0 0
    %5753 = vmatprep.subr.bf16.mxu0 0
    %5754 = vmatpush2.bf16.msra.mxu0 0
    %5755 = vmatprep.subr.bf16.mxu0 0
    %5756 = vmatpush2.bf16.msra.mxu0 0
    %5757 = vmatprep.subr.bf16.mxu0 0
    %5758 = vmatpush2.bf16.msra.mxu0 0
    %5759 = vmatprep.subr.bf16.mxu0 0
    %5760 = vmatpush2.bf16.msra.mxu0 0
    %5761 = vmatprep.subr.bf16.mxu0 0
    %5762 = vmatpush2.bf16.msra.mxu0 0
    %5763 = vmatprep.subr.bf16.mxu0 0
    %5764 = vmatpush2.bf16.msra.mxu0 0
    %5765 = vmatprep.mubr.bf16.mxu0 0
    %5766 = vmatmul.mubr.bf16.gmra.mxu0 %v5526
    %v5767 = vpop.f32.mrf.mxu0
    %v5768 = vadd.f32 0.0, %v5767
    %v5769 = vpop.f32.mrf.mxu0
    %v5770 = vadd.f32 0.0, %v5769
    %v5771 = vpop.f32.mrf.mxu0
    %v5772 = vpop.f32.mrf.mxu0
    %5773 = vdwg.mxu0
    %5774 = vmatprep.subr.bf16.mxu0 0
    %5775 = vmatpush1.bf16.msra.mxu0 0
    %5776 = vmatprep.subr.bf16.mxu0 0
    %5777 = vmatpush1.bf16.msra.mxu0 0
    %5778 = vmatprep.subr.bf16.mxu0 0
    %5779 = vmatpush1.bf16.msra.mxu0 0
    %5780 = vmatprep.subr.bf16.mxu0 0
    %5781 = vmatpush1.bf16.msra.mxu0 0
    %5782 = vmatprep.subr.bf16.mxu0 %v5432
    %5783 = vmatpush1.bf16.msra.mxu0 %v5431
    %5784 = vmatprep.subr.bf16.mxu0 %v5411
    %5785 = vmatpush1.bf16.msra.mxu0 %v5410
    %5786 = vmatprep.subr.bf16.mxu0 %v5390
    %5787 = vmatpush1.bf16.msra.mxu0 %v5389
    %5788 = vmatprep.subr.bf16.mxu0 %v5369
    %5789 = vmatpush1.bf16.msra.mxu0 %v5368
    %5790 = vmatprep.subr.bf16.mxu0 0
    %5791 = vmatpush2.bf16.msra.mxu0 0
    %5792 = vmatprep.subr.bf16.mxu0 0
    %5793 = vmatpush2.bf16.msra.mxu0 0
    %5794 = vmatprep.subr.bf16.mxu0 0
    %5795 = vmatpush2.bf16.msra.mxu0 0
    %5796 = vmatprep.subr.bf16.mxu0 0
    %5797 = vmatpush2.bf16.msra.mxu0 0
    %5798 = vmatprep.subr.bf16.mxu0 0
    %5799 = vmatpush2.bf16.msra.mxu0 0
    %5800 = vmatprep.subr.bf16.mxu0 0
    %5801 = vmatpush2.bf16.msra.mxu0 0
    %5802 = vmatprep.subr.bf16.mxu0 0
    %5803 = vmatpush2.bf16.msra.mxu0 0
    %5804 = vmatprep.subr.bf16.mxu0 0
    %5805 = vmatpush2.bf16.msra.mxu0 0
    %5806 = vmatprep.mubr.bf16.mxu0 0
    %5807 = vmatmul.mubr.bf16.gmra.mxu0 %v5526
    %v5808 = vpop.f32.mrf.mxu0
    %v5809 = vadd.f32 0.0, %v5808
    %v5810 = vpop.f32.mrf.mxu0
    %v5811 = vadd.f32 0.0, %v5810
    %v5812 = vpop.f32.mrf.mxu0
    %v5813 = vpop.f32.mrf.mxu0
    %5814 = vdwg.mxu0
    %5815 = vmatprep.subr.bf16.mxu0 0
    %5816 = vmatpush1.bf16.msra.mxu0 0
    %5817 = vmatprep.subr.bf16.mxu0 0
    %5818 = vmatpush1.bf16.msra.mxu0 0
    %5819 = vmatprep.subr.bf16.mxu0 0
    %5820 = vmatpush1.bf16.msra.mxu0 0
    %5821 = vmatprep.subr.bf16.mxu0 0
    %5822 = vmatpush1.bf16.msra.mxu0 0
    %5823 = vmatprep.subr.bf16.mxu0 %v5434
    %5824 = vmatpush1.bf16.msra.mxu0 %v5433
    %5825 = vmatprep.subr.bf16.mxu0 %v5413
    %5826 = vmatpush1.bf16.msra.mxu0 %v5412
    %5827 = vmatprep.subr.bf16.mxu0 %v5392
    %5828 = vmatpush1.bf16.msra.mxu0 %v5391
    %5829 = vmatprep.subr.bf16.mxu0 %v5371
    %5830 = vmatpush1.bf16.msra.mxu0 %v5370
    %5831 = vmatprep.subr.bf16.mxu0 0
    %5832 = vmatpush2.bf16.msra.mxu0 0
    %5833 = vmatprep.subr.bf16.mxu0 0
    %5834 = vmatpush2.bf16.msra.mxu0 0
    %5835 = vmatprep.subr.bf16.mxu0 0
    %5836 = vmatpush2.bf16.msra.mxu0 0
    %5837 = vmatprep.subr.bf16.mxu0 0
    %5838 = vmatpush2.bf16.msra.mxu0 0
    %5839 = vmatprep.subr.bf16.mxu0 0
    %5840 = vmatpush2.bf16.msra.mxu0 0
    %5841 = vmatprep.subr.bf16.mxu0 0
    %5842 = vmatpush2.bf16.msra.mxu0 0
    %5843 = vmatprep.subr.bf16.mxu0 0
    %5844 = vmatpush2.bf16.msra.mxu0 0
    %5845 = vmatprep.subr.bf16.mxu0 0
    %5846 = vmatpush2.bf16.msra.mxu0 0
    %5847 = vmatprep.mubr.bf16.mxu0 0
    %5848 = vmatmul.mubr.bf16.gmra.mxu0 %v5526
    %v5849 = vpop.f32.mrf.mxu0
    %v5850 = vadd.f32 0.0, %v5849
    %v5851 = vpop.f32.mrf.mxu0
    %v5852 = vadd.f32 0.0, %v5851
    %v5853 = vpop.f32.mrf.mxu0
    %v5854 = vpop.f32.mrf.mxu0
    %5855 = vdwg.mxu0
    %5856 = vmatprep.subr.bf16.mxu0 0
    %5857 = vmatpush1.bf16.msra.mxu0 0
    %5858 = vmatprep.subr.bf16.mxu0 0
    %5859 = vmatpush1.bf16.msra.mxu0 0
    %5860 = vmatprep.subr.bf16.mxu0 0
    %5861 = vmatpush1.bf16.msra.mxu0 0
    %5862 = vmatprep.subr.bf16.mxu0 0
    %5863 = vmatpush1.bf16.msra.mxu0 0
    %5864 = vmatprep.subr.bf16.mxu0 %v5436
    %5865 = vmatpush1.bf16.msra.mxu0 %v5435
    %5866 = vmatprep.subr.bf16.mxu0 %v5415
    %5867 = vmatpush1.bf16.msra.mxu0 %v5414
    %5868 = vmatprep.subr.bf16.mxu0 %v5394
    %5869 = vmatpush1.bf16.msra.mxu0 %v5393
    %5870 = vmatprep.subr.bf16.mxu0 %v5373
    %5871 = vmatpush1.bf16.msra.mxu0 %v5372
    %5872 = vmatprep.subr.bf16.mxu0 0
    %5873 = vmatpush2.bf16.msra.mxu0 0
    %5874 = vmatprep.subr.bf16.mxu0 0
    %5875 = vmatpush2.bf16.msra.mxu0 0
    %5876 = vmatprep.subr.bf16.mxu0 0
    %5877 = vmatpush2.bf16.msra.mxu0 0
    %5878 = vmatprep.subr.bf16.mxu0 0
    %5879 = vmatpush2.bf16.msra.mxu0 0
    %5880 = vmatprep.subr.bf16.mxu0 0
    %5881 = vmatpush2.bf16.msra.mxu0 0
    %5882 = vmatprep.subr.bf16.mxu0 0
    %5883 = vmatpush2.bf16.msra.mxu0 0
    %5884 = vmatprep.subr.bf16.mxu0 0
    %5885 = vmatpush2.bf16.msra.mxu0 0
    %5886 = vmatprep.subr.bf16.mxu0 0
    %5887 = vmatpush2.bf16.msra.mxu0 0
    %5888 = vmatprep.mubr.bf16.mxu0 0
    %5889 = vmatmul.mubr.bf16.gmra.mxu0 %v5526
    %v5890 = vpop.f32.mrf.mxu0
    %v5891 = vadd.f32 0.0, %v5890
    %v5892 = vpop.f32.mrf.mxu0
    %v5893 = vadd.f32 0.0, %v5892
    %v5894 = vpop.f32.mrf.mxu0
    %v5895 = vpop.f32.mrf.mxu0
    %5896 = vdwg.mxu0
    %5897 = vmatprep.subr.bf16.mxu0 0
    %5898 = vmatpush1.bf16.msra.mxu0 0
    %5899 = vmatprep.subr.bf16.mxu0 0
    %5900 = vmatpush1.bf16.msra.mxu0 0
    %5901 = vmatprep.subr.bf16.mxu0 0
    %5902 = vmatpush1.bf16.msra.mxu0 0
    %5903 = vmatprep.subr.bf16.mxu0 0
    %5904 = vmatpush1.bf16.msra.mxu0 0
    %5905 = vmatprep.subr.bf16.mxu0 %v5438
    %5906 = vmatpush1.bf16.msra.mxu0 %v5437
    %5907 = vmatprep.subr.bf16.mxu0 %v5417
    %5908 = vmatpush1.bf16.msra.mxu0 %v5416
    %5909 = vmatprep.subr.bf16.mxu0 %v5396
    %5910 = vmatpush1.bf16.msra.mxu0 %v5395
    %5911 = vmatprep.subr.bf16.mxu0 %v5375
    %5912 = vmatpush1.bf16.msra.mxu0 %v5374
    %5913 = vmatprep.subr.bf16.mxu0 0
    %5914 = vmatpush2.bf16.msra.mxu0 0
    %5915 = vmatprep.subr.bf16.mxu0 0
    %5916 = vmatpush2.bf16.msra.mxu0 0
    %5917 = vmatprep.subr.bf16.mxu0 0
    %5918 = vmatpush2.bf16.msra.mxu0 0
    %5919 = vmatprep.subr.bf16.mxu0 0
    %5920 = vmatpush2.bf16.msra.mxu0 0
    %5921 = vmatprep.subr.bf16.mxu0 0
    %5922 = vmatpush2.bf16.msra.mxu0 0
    %5923 = vmatprep.subr.bf16.mxu0 0
    %5924 = vmatpush2.bf16.msra.mxu0 0
    %5925 = vmatprep.subr.bf16.mxu0 0
    %5926 = vmatpush2.bf16.msra.mxu0 0
    %5927 = vmatprep.subr.bf16.mxu0 0
    %5928 = vmatpush2.bf16.msra.mxu0 0
    %5929 = vmatprep.mubr.bf16.mxu0 0
    %5930 = vmatmul.mubr.bf16.gmra.mxu0 %v5526
    %v5931 = vpop.f32.mrf.mxu0
    %v5932 = vadd.f32 0.0, %v5931
    %v5933 = vpop.f32.mrf.mxu0
    %v5934 = vadd.f32 0.0, %v5933
    %v5935 = vpop.f32.mrf.mxu0
    %v5936 = vpop.f32.mrf.mxu0
    %5937 = vdwg.mxu0
    %5938 = vmatprep.subr.bf16.mxu0 0
    %5939 = vmatpush1.bf16.msra.mxu0 0
    %5940 = vmatprep.subr.bf16.mxu0 0
    %5941 = vmatpush1.bf16.msra.mxu0 0
    %5942 = vmatprep.subr.bf16.mxu0 0
    %5943 = vmatpush1.bf16.msra.mxu0 0
    %5944 = vmatprep.subr.bf16.mxu0 0
    %5945 = vmatpush1.bf16.msra.mxu0 0
    %5946 = vmatprep.subr.bf16.mxu0 0
    %5947 = vmatpush1.bf16.msra.mxu0 %v5439
    %5948 = vmatprep.subr.bf16.mxu0 0
    %5949 = vmatpush1.bf16.msra.mxu0 %v5418
    %5950 = vmatprep.subr.bf16.mxu0 0
    %5951 = vmatpush1.bf16.msra.mxu0 %v5397
    %5952 = vmatprep.subr.bf16.mxu0 0
    %5953 = vmatpush1.bf16.msra.mxu0 %v5376
    %5954 = vmatprep.subr.bf16.mxu0 0
    %5955 = vmatpush2.bf16.msra.mxu0 0
    %5956 = vmatprep.subr.bf16.mxu0 0
    %5957 = vmatpush2.bf16.msra.mxu0 0
    %5958 = vmatprep.subr.bf16.mxu0 0
    %5959 = vmatpush2.bf16.msra.mxu0 0
    %5960 = vmatprep.subr.bf16.mxu0 0
    %5961 = vmatpush2.bf16.msra.mxu0 0
    %5962 = vmatprep.subr.bf16.mxu0 0
    %5963 = vmatpush2.bf16.msra.mxu0 0
    %5964 = vmatprep.subr.bf16.mxu0 0
    %5965 = vmatpush2.bf16.msra.mxu0 0
    %5966 = vmatprep.subr.bf16.mxu0 0
    %5967 = vmatpush2.bf16.msra.mxu0 0
    %5968 = vmatprep.subr.bf16.mxu0 0
    %5969 = vmatpush2.bf16.msra.mxu0 0
    %5970 = vmatprep.mubr.bf16.mxu0 0
    %5971 = vmatmul.mubr.bf16.gmra.mxu0 %v5526
    %v5972 = vpop.f32.mrf.mxu0
    %v5973 = vadd.f32 0.0, %v5972
    %v5974 = vpop.f32.mrf.mxu0
    %v5975 = vpop.f32.mrf.mxu0
    %v5976 = vpop.f32.mrf.mxu0
    %5977 = vdwg.mxu0
    %v5999 = vcombine.low %v5563, %v5565
    %v6000 = vcombine.low %v5604, %v5606
    %v6002 = vunpack.c.l.s4 1983009808
    %v6003 = vunpack.c.0.s8 %v6002
    %v6004 = vlaneseq
    %v6005 = vshrl.u32 %v6004, 7
    %v6006 = vsub.s32 %v6003, %v6005
    %v6007 = vrot.slane %v5999, %v6006
    %v6009 = vunpack.c.l.s4 1983009808
    %v6010 = vunpack.c.0.s8 %v6009
    %v6011 = vlaneseq
    %v6012 = vshrl.u32 %v6011, 7
    %v6013 = vsub.s32 %v6010, %v6012
    %v6014 = vrot.slane %v6000, %v6013
    %v6015 = vcombine.low %v6007, %v6014
    %v6016 = vcombine.low %v5645, %v5647
    %v6017 = vcombine.low %v5686, %v5688
    %v6019 = vunpack.c.l.s4 1983009808
    %v6020 = vunpack.c.0.s8 %v6019
    %v6021 = vlaneseq
    %v6022 = vshrl.u32 %v6021, 7
    %v6023 = vsub.s32 %v6020, %v6022
    %v6024 = vrot.slane %v6016, %v6023
    %v6026 = vunpack.c.l.s4 1983009808
    %v6027 = vunpack.c.0.s8 %v6026
    %v6028 = vlaneseq
    %v6029 = vshrl.u32 %v6028, 7
    %v6030 = vsub.s32 %v6027, %v6029
    %v6031 = vrot.slane %v6017, %v6030
    %v6032 = vcombine.low %v6024, %v6031
    %v6033 = vcombine.low %v5727, %v5729
    %v6034 = vcombine.low %v5768, %v5770
    %v6036 = vunpack.c.l.s4 1983009808
    %v6037 = vunpack.c.0.s8 %v6036
    %v6038 = vlaneseq
    %v6039 = vshrl.u32 %v6038, 7
    %v6040 = vsub.s32 %v6037, %v6039
    %v6041 = vrot.slane %v6033, %v6040
    %v6043 = vunpack.c.l.s4 1983009808
    %v6044 = vunpack.c.0.s8 %v6043
    %v6045 = vlaneseq
    %v6046 = vshrl.u32 %v6045, 7
    %v6047 = vsub.s32 %v6044, %v6046
    %v6048 = vrot.slane %v6034, %v6047
    %v6049 = vcombine.low %v6041, %v6048
    %v6050 = vcombine.low %v5809, %v5811
    %v6051 = vcombine.low %v5850, %v5852
    %v6053 = vunpack.c.l.s4 1983009808
    %v6054 = vunpack.c.0.s8 %v6053
    %v6055 = vlaneseq
    %v6056 = vshrl.u32 %v6055, 7
    %v6057 = vsub.s32 %v6054, %v6056
    %v6058 = vrot.slane %v6050, %v6057
    %v6060 = vunpack.c.l.s4 1983009808
    %v6061 = vunpack.c.0.s8 %v6060
    %v6062 = vlaneseq
    %v6063 = vshrl.u32 %v6062, 7
    %v6064 = vsub.s32 %v6061, %v6063
    %v6065 = vrot.slane %v6051, %v6064
    %v6066 = vcombine.low %v6058, %v6065
    %v6067 = vcombine.low %v5891, %v5893
    %v6068 = vcombine.low %v5932, %v5934
    %v6070 = vunpack.c.l.s4 1983009808
    %v6071 = vunpack.c.0.s8 %v6070
    %v6072 = vlaneseq
    %v6073 = vshrl.u32 %v6072, 7
    %v6074 = vsub.s32 %v6071, %v6073
    %v6075 = vrot.slane %v6067, %v6074
    %v6077 = vunpack.c.l.s4 1983009808
    %v6078 = vunpack.c.0.s8 %v6077
    %v6079 = vlaneseq
    %v6080 = vshrl.u32 %v6079, 7
    %v6081 = vsub.s32 %v6078, %v6080
    %v6082 = vrot.slane %v6068, %v6081
    %v6083 = vcombine.low %v6075, %v6082
    %v6085 = vunpack.c.l.s4 1983009808
    %v6086 = vunpack.c.0.s8 %v6085
    %v6087 = vlaneseq
    %v6088 = vshrl.u32 %v6087, 7
    %v6089 = vsub.s32 %v6086, %v6088
    %v6090 = vrot.slane %v5973, %v6089
    %v6097 = vmul.f32 %v3021, %v6015
    %v6098 = vmul.f32 %v3022, %v6032
    %v6099 = vmul.f32 %v3023, %v6049
    %v6100 = vmul.f32 %v3024, %v6066
    %v6101 = vmul.f32 %v3025, %v6083
    %v6102 = vmul.f32 %v3026, %v6090
    %6103 = vst [vmem:[#allocation2] sm:$0xff] %v6097
    %6104 = vst [vmem:[#allocation2 + $0x8] sm:$0xff] %v6098
    %6105 = vst [vmem:[#allocation2 + $0x10] sm:$0xff] %v6099
    %6106 = vst [vmem:[#allocation2 + $0x18] sm:$0xff] %v6100
    %6107 = vst [vmem:[#allocation2 + $0x20] sm:$0xff] %v6101
    %6108 = vst [vmem:[#allocation2 + $0x28] sm:$0x3] %v6102
    // Predicated region
    $region30: #{tpu_custom_call.1} parent=1 // pred_check
      _
    $region31: #{tpu_custom_call.1} parent=1 // pred_check_branch
      %6110 = sbr.rel (0) target = $region33
    $region32: #{tpu_custom_call.1} parent=1 // pred_region
      %s6112 = ssub.s32 672, 672
      %6113 = vsyncadd [#allocation3], %s6112
      %s6115 = sshll.u32 [#allocation2], 4
      %s6116 = int_to_ptr.vmem [resolvable:$true] %s6115
      %6118 = dma.vmem_to_hbm [thread:$0]  %s6116, 672, %s7, [#allocation3]
    $region33: #{tpu_custom_call.1} parent=1 // pred_fallthru
      _
    // Predicated region
    $region34: #{tpu_custom_call.1} parent=1 // pred_check
      _
    $region35: #{tpu_custom_call.1} parent=1 // pred_check_branch
      %6120 = sbr.rel (0) target = $region37
    $region36: #{tpu_custom_call.1} parent=1 // pred_region
      %6121 = dma.done [#allocation3], 672
    $region37: #{tpu_custom_call.1} parent=1 // pred_fallthru
      _
    %6122 = vsyncpa [#allocation3], 1

</llo_original>
